<compile_context>
chip_gen: v7x
topology: tpu7x:2x2x1
jax: 0.10.0
libtpu: 0.0.40
codegen_flags: <defaults>
</compile_context>

<pallas_src>
import functools
import math

import jax
import jax.numpy as jnp
from jax.experimental import pallas as pl
from jax.experimental.pallas import tpu as pltpu


# ----------------------------------------------------------------------------- utils
_HEAD_COUNT = 4  # GATConvE head_count default


def _round_up(x, m):
    return ((x + m - 1) // m) * m


def fold_bn(w, b, gamma, beta, mean, var, eps=1e-5):
    """Fold eval-mode BatchNorm1d into the preceding Linear (exact algebra)."""
    inv = gamma / jnp.sqrt(var + eps)
    return w * inv[None, :], (b - mean) * inv + beta


def _derived_dims(cfg):
    D = cfg["concept_dim"]
    Hh = _HEAD_COUNT
    n_head = cfg["n_attention_head"]
    d_k = D // n_head
    return dict(
        D=D, Dh=D // 2, Hh=Hh, d_head=D // Hh, HD=n_head * d_k,
        OWX=_round_up(D, 128),                    # node feature / edge emb width
        OWS=_round_up(D + Hh, 128),               # kmq output [msg | scores | 0]
        OWKV=_round_up(2 * n_head * d_k, 128),    # fused pooler K|V width
        OWFC=_round_up(cfg["fc_dim"], 128),
        NTP=max(8, _round_up(cfg["n_ntype"], 8)),  # one-hot width (sublane mult)
    )


# tanh-approx GELU: the transcendental goes to the EUP slot (free alongside
# VPU/MXU).  |gelu_tanh - gelu_erf| <= ~1e-3, fine for eval.
_GELU_C = 0.7978845608028654  # sqrt(2/pi)


def _gelu(x):
    return 0.5 * x * (1.0 + jnp.tanh(_GELU_C * (x + 0.044715 * x * x * x)))


# ----------------------------------------------------------------------- Pallas kernels
def _fused_linear_kernel(*refs, n_parts, act, pre_relu):
    """y = act(sum_i maybe_relu(x_i) @ w_i + b); bf16 operands, f32 accum/epilogue."""
    xs = refs[:n_parts]
    ws = refs[n_parts:2 * n_parts]
    b_ref = refs[2 * n_parts]
    o_ref = refs[2 * n_parts + 1]
    y = None
    for x_ref, w_ref in zip(xs, ws):
        x = x_ref[...]
        if pre_relu:
            x = jnp.maximum(x, 0.0)
        d = jnp.dot(x, w_ref[...], preferred_element_type=jnp.float32)
        y = d if y is None else y + d
    y = y + b_ref[...]
    if act == "relu":
        y = jnp.maximum(y, 0.0)
    elif act == "gelu":
        y = _gelu(y)
    o_ref[...] = y.astype(o_ref.dtype)


def _gat_mlp_kernel(x_ref, w1_ref, b1_ref, w2_ref, b2_ref, o_ref):
    """GAT node MLP: Linear(BN folded) -> ReLU -> Linear, + the post-layer GELU."""
    h = jnp.dot(x_ref[...], w1_ref[...], preferred_element_type=jnp.float32) + b1_ref[...]
    h = jnp.maximum(h, 0.0).astype(w2_ref.dtype)
    y = jnp.dot(h, w2_ref[...], preferred_element_type=jnp.float32) + b2_ref[...]
    o_ref[...] = _gelu(y).astype(o_ref.dtype)


def _kmq_kernel(xi_ref, fi_ref, xj_ref, fj_ref, e_ref,
                wkx_ref, wkf_ref, wke_ref, wmx_ref, wmf_ref, wme_ref,
                wqx_ref, wqf_ref, bk_ref, bm_ref, bq_ref, sel_ref, o_ref,
                *, inv_sqrt_d):
    """GATConvE message kernel: key/msg/query from separate input refs plus the
    per-head attention score, written as one lane-dense [msg | scores | 0] block."""
    f32 = jnp.float32
    xi, fi = xi_ref[...], fi_ref[...]
    xj, fj = xj_ref[...], fj_ref[...]
    e = e_ref[...]
    key = (jnp.dot(xi, wkx_ref[...], preferred_element_type=f32)
           + jnp.dot(fi, wkf_ref[...], preferred_element_type=f32)
           + jnp.dot(e, wke_ref[...], preferred_element_type=f32) + bk_ref[...])
    msg = (jnp.dot(xj, wmx_ref[...], preferred_element_type=f32)
           + jnp.dot(fj, wmf_ref[...], preferred_element_type=f32)
           + jnp.dot(e, wme_ref[...], preferred_element_type=f32) + bm_ref[...])
    qry = (jnp.dot(xj, wqx_ref[...], preferred_element_type=f32)
           + jnp.dot(fj, wqf_ref[...], preferred_element_type=f32)
           + bq_ref[...]) * inv_sqrt_d
    # per-head reduction of key*query via a 0/1 selector matmul (tiny, f32); the
    # selector drops the head sums into output columns [D : D + n_heads].
    scores = jnp.dot(key * qry, sel_ref[...], preferred_element_type=f32)
    o_ref[...] = (msg + scores).astype(o_ref.dtype)


def _fc_ln_gelu_kernel(*refs, n_parts, n_valid, eps):
    """fc block: sum_i x_i @ w_i + b -> LayerNorm (over the first n_valid cols)
    -> GELU.  Padded columns are exactly zero (zero weight cols / gamma / beta)."""
    xs = refs[:n_parts]
    ws = refs[n_parts:2 * n_parts]
    b_ref, g_ref, bb_ref, o_ref = refs[2 * n_parts:2 * n_parts + 4]
    y = None
    for x_ref, w_ref in zip(xs, ws):
        d = jnp.dot(x_ref[...], w_ref[...], preferred_element_type=jnp.float32)
        y = d if y is None else y + d
    y = y + b_ref[...]
    ow = y.shape[-1]
    if n_valid == ow:
        mu = jnp.mean(y, axis=-1, keepdims=True)
        diff = y - mu
        var = jnp.mean(diff * diff, axis=-1, keepdims=True)
    else:
        lane = jax.lax.broadcasted_iota(jnp.int32, y.shape, 1)
        valid = (lane < n_valid).astype(jnp.float32)
        inv_n = 1.0 / n_valid
        mu = jnp.sum(y, axis=-1, keepdims=True) * inv_n    # padded cols are exact 0
        diff = (y - mu) * valid
        var = jnp.sum(diff * diff, axis=-1, keepdims=True) * inv_n
    yn = (y - mu) * jax.lax.rsqrt(var + eps)
    o_ref[...] = _gelu(yn * g_ref[...] + bb_ref[...]).astype(o_ref.dtype)


# --------------------------------------------------------------------- pallas dispatch
def _choose_block_rows(M, tm=512):
    """Row block: multiple of 16 (bf16 sublane packing), divides the 16-rounded M
    (no per-call row padding in the GNN loop), capped at tm (v6e sweet spot
    512-1024), and giving >= 2 grid steps when possible so both v7x TensorCores
    get work under dimension_semantics=('parallel',)."""
    Mp = _round_up(M, 16)
    if Mp < 32:
        return Mp, Mp
    best = 16
    b = 32
    cap = min(tm, Mp // 2)
    while b <= cap:
        if Mp % b == 0:
            best = b
        b += 16
    return best, Mp


def _pallas_rowwise(kernel, parts, consts, out_width, out_dtype, tm=512):
    """Row-tiled pallas_call: `parts` are (M, K_i) operand slabs tiled along M,
    `consts` (weights / biases / selectors) are broadcast as single full blocks."""
    M = parts[0].shape[0]
    bm, Mp = _choose_block_rows(M, tm)
    if Mp != M:
        parts = [jnp.pad(p, ((0, Mp - M), (0, 0))) for p in parts]
    in_specs = [pl.BlockSpec((bm, int(p.shape[1])), lambda i: (i, 0)) for p in parts]
    in_specs += [pl.BlockSpec(c.shape, lambda i: (0, 0)) for c in consts]
    out = pl.pallas_call(
        kernel,
        out_shape=jax.ShapeDtypeStruct((Mp, out_width), out_dtype),
        grid=(Mp // bm,),
        in_specs=in_specs,
        out_specs=pl.BlockSpec((bm, out_width), lambda i: (i, 0)),
        compiler_params=pltpu.CompilerParams(dimension_semantics=("parallel",)),
    )(*parts, *consts)
    return out[:M] if Mp != M else out


def fused_linear(parts, weights, bias, *, act=None, pre_relu=False,
                 out_dtype=jnp.float32, min_rows=8, tm=512):
    """act(sum_i x_i @ w_i + b).  Pallas when M >= min_rows, XLA fallback otherwise
    (tiny batch-sized matmuls are launch/glue bound; XLA fusion wins there)."""
    M = parts[0].shape[0]
    ow = bias.shape[-1]
    if M < min_rows:
        y = None
        for x, w in zip(parts, weights):
            x = x.astype(jnp.float32)
            if pre_relu:
                x = jnp.maximum(x, 0.0)
            d = x @ w.astype(jnp.float32)
            y = d if y is None else y + d
        y = y + bias
        if act == "relu":
            y = jnp.maximum(y, 0.0)
        elif act == "gelu":
            y = _gelu(y)
        return y.astype(out_dtype)
    kern = functools.partial(_fused_linear_kernel, n_parts=len(parts), act=act,
                             pre_relu=pre_relu)
    xb = [p.astype(jnp.bfloat16) for p in parts]
    return _pallas_rowwise(kern, xb, list(weights) + [bias], ow, out_dtype, tm=tm)


def kmq_forward(xi, fi, xj, fj, e, lq, d_head, min_rows, tm=512):
    inv = 1.0 / math.sqrt(d_head)
    M = xi.shape[0]
    if M < min_rows:
        f = lambda a: a.astype(jnp.float32)
        key = f(xi) @ f(lq["wk_x"]) + f(fi) @ f(lq["wk_f"]) + f(e) @ f(lq["wk_e"]) + lq["bk"]
        msg = f(xj) @ f(lq["wm_x"]) + f(fj) @ f(lq["wm_f"]) + f(e) @ f(lq["wm_e"]) + lq["bm"]
        qry = (f(xj) @ f(lq["wq_x"]) + f(fj) @ f(lq["wq_f"]) + lq["bq"]) * inv
        return msg + (key * qry) @ lq["sel"]
    kern = functools.partial(_kmq_kernel, inv_sqrt_d=inv)
    parts = [a.astype(jnp.bfloat16) for a in (xi, fi, xj, fj, e)]
    consts = [lq["wk_x"], lq["wk_f"], lq["wk_e"], lq["wm_x"], lq["wm_f"], lq["wm_e"],
              lq["wq_x"], lq["wq_f"], lq["bk"], lq["bm"], lq["bq"], lq["sel"]]
    ows = lq["bk"].shape[-1]
    return _pallas_rowwise(kern, parts, consts, ows, jnp.float32, tm=tm)


def gat_mlp_forward(aggr, lq, min_rows, tm=512):
    M = aggr.shape[0]
    if M < min_rows:
        h = jnp.maximum(aggr @ lq["mlp_w1"].astype(jnp.float32) + lq["mlp_b1"], 0.0)
        y = h @ lq["mlp_w2"].astype(jnp.float32) + lq["mlp_b2"]
        return _gelu(y).astype(jnp.bfloat16)
    consts = [lq["mlp_w1"], lq["mlp_b1"], lq["mlp_w2"], lq["mlp_b2"]]
    owx = lq["mlp_b2"].shape[-1]
    return _pallas_rowwise(_gat_mlp_kernel, [aggr.astype(jnp.bfloat16)], consts,
                           owx, jnp.bfloat16, tm=tm)


def fc_ln_gelu_forward(parts, lq, *, n_valid, eps=1e-5, min_rows=8, tm=512):
    M = parts[0].shape[0]
    ow = lq["b"].shape[-1]
    if M < min_rows:
        y = None
        for x, w in zip(parts, lq["ws"]):
            d = x.astype(jnp.float32) @ w.astype(jnp.float32)
            y = d if y is None else y + d
        y = (y + lq["b"])[:, :n_valid]
        mu = jnp.mean(y, axis=-1, keepdims=True)
        var = jnp.mean((y - mu) ** 2, axis=-1, keepdims=True)
        y = (y - mu) * jax.lax.rsqrt(var + eps)
        y = _gelu(y * lq["g"][:, :n_valid] + lq["bb"][:, :n_valid])
        return jnp.pad(y, ((0, 0), (0, ow - n_valid)))
    kern = functools.partial(_fc_ln_gelu_kernel, n_parts=len(parts),
                             n_valid=n_valid, eps=eps)
    xb = [p.astype(jnp.bfloat16) for p in parts]
    consts = list(lq["ws"]) + [lq["b"], lq["g"], lq["bb"]]
    return _pallas_rowwise(kern, xb, consts, ow, jnp.float32, tm=tm)


# -------------------------------------------------------------------------- parameters
def _init_linear(key, n_in, n_out, std):
    return {"w": std * jax.random.normal(key, (n_in, n_out), jnp.float32),
            "b": jnp.zeros((n_out,), jnp.float32)}


def init_params(key, cfg):
    D = cfg["concept_dim"]
    std = cfg["init_range"]
    keys = iter(jax.random.split(key, 64))
    p = {}
    p["concept_emb"] = std * jax.random.normal(
        next(keys), (cfg["n_concept"] + 2, cfg["concept_in_dim"]), jnp.float32)
    p["svec2nvec"] = _init_linear(next(keys), cfg["sent_dim"], D, std)
    p["emb_node_type"] = _init_linear(next(keys), cfg["n_ntype"], D // 2, std)
    p["emb_score"] = _init_linear(next(keys), D // 2, D // 2, std)
    e_in = cfg["n_etype"] + 1 + cfg["n_ntype"] * 2
    p["edge_enc_l1"] = _init_linear(next(keys), e_in, D, std)
    p["edge_enc_bn"] = dict(gamma=jnp.ones(D), beta=jnp.zeros(D),
                            mean=jnp.zeros(D), var=jnp.ones(D))
    p["edge_enc_l2"] = _init_linear(next(keys), D, D, std)
    p["gnn_layers"] = []
    for _ in range(cfg["k"]):
        p["gnn_layers"].append({
            "key": _init_linear(next(keys), 3 * D, D, std),
            "msg": _init_linear(next(keys), 3 * D, D, std),
            "query": _init_linear(next(keys), 2 * D, D, std),
            "mlp_l1": _init_linear(next(keys), D, D, std),
            "mlp_bn": dict(gamma=jnp.ones(D), beta=jnp.zeros(D),
                           mean=jnp.zeros(D), var=jnp.ones(D)),
            "mlp_l2": _init_linear(next(keys), D, D, std),
        })
    p["Vh"] = _init_linear(next(keys), D, D, std)
    p["Vx"] = _init_linear(next(keys), D, D, std)
    n_head = cfg["n_attention_head"]
    d_k = D // n_head
    p["w_qs"] = _init_linear(next(keys), cfg["sent_dim"], n_head * d_k, std)
    p["w_ks"] = _init_linear(next(keys), D, n_head * d_k, std)
    p["w_vs"] = _init_linear(next(keys), D, n_head * d_k, std)
    fc_in = D + cfg["sent_dim"] + D
    p["fc"] = []
    n_in = fc_in
    for _ in range(cfg["n_fc_layer"]):
        p["fc"].append({
            "lin": _init_linear(next(keys), n_in, cfg["fc_dim"], std),
            "ln_g": jnp.ones(cfg["fc_dim"]),
            "ln_b": jnp.zeros(cfg["fc_dim"]),
        })
        n_in = cfg["fc_dim"]
    p["fc_out"] = _init_linear(next(keys), n_in, 1, std)
    return p


def prepare_params(p, cfg):
    """One-time (outside the jitted forward) weight folding / fusion / padding:
    BN folded into Linears, adjacent projections merged, weights cast to bf16 and
    column-padded to multiples of 128 so every Pallas store is lane-dense."""
    dm = _derived_dims(cfg)
    D, Dh, Hh, d_head, HD = dm["D"], dm["Dh"], dm["Hh"], dm["d_head"], dm["HD"]
    OWX, OWS, OWKV, OWFC, NTP = dm["OWX"], dm["OWS"], dm["OWKV"], dm["OWFC"], dm["NTP"]
    n_ntype, n_etype = cfg["n_ntype"], cfg["n_etype"]
    sent_dim, fc_dim = cfg["sent_dim"], cfg["fc_dim"]

    bf = lambda a: a.astype(jnp.bfloat16)

    def padc(w, width):
        return jnp.pad(w, ((0, 0), (0, width - w.shape[1])))

    def padb(b, width):
        b = jnp.asarray(b, jnp.float32).reshape(1, -1)
        return jnp.pad(b, ((0, 0), (0, width - b.shape[1])))

    q = {}
    q["concept_emb"] = p["concept_emb"]
    q["svec2nvec"] = dict(w=p["svec2nvec"]["w"], b=p["svec2nvec"]["b"])     # tiny -> XLA

    # node-type emb -> output cols [0:Dh]; node-score emb -> cols [Dh:D]
    w_t = jnp.zeros((NTP, OWX), jnp.float32).at[:n_ntype, :Dh].set(p["emb_node_type"]["w"])
    w_s = jnp.zeros((Dh, OWX), jnp.float32).at[:, Dh:D].set(p["emb_score"]["w"])
    q["feat_extra"] = dict(
        w_t=bf(w_t), w_s=bf(w_s),
        b=padb(jnp.concatenate([p["emb_node_type"]["b"], p["emb_score"]["b"]]), OWX))

    # edge encoder: fold eval-BN into Linear1; Linear1 on one-hots == row gather of W1
    w1, b1 = fold_bn(p["edge_enc_l1"]["w"], p["edge_enc_l1"]["b"], **p["edge_enc_bn"])
    q["edge_enc"] = dict(w1=w1, b1=b1,
                         w2=bf(padc(p["edge_enc_l2"]["w"], OWX)),
                         b2=padb(p["edge_enc_l2"]["b"], OWX))

    # GAT layers: per-part key/msg/query row blocks (X part, node_feature_extra
    # part, edge part passed as separate refs); BN folded into the node MLP.
    cidx = jnp.arange(D)
    sel = jnp.zeros((OWS, OWS), jnp.float32).at[cidx, D + cidx // d_head].set(1.0)

    def place(wpart, rows):
        out = jnp.zeros((rows, OWS), jnp.float32)
        return bf(out.at[:wpart.shape[0], :D].set(wpart))

    layers = []
    for lp in p["gnn_layers"]:
        wk, wm, wq = lp["key"]["w"], lp["msg"]["w"], lp["query"]["w"]
        wm1, bm1 = fold_bn(lp["mlp_l1"]["w"], lp["mlp_l1"]["b"], **lp["mlp_bn"])
        layers.append(dict(
            wk_x=place(wk[:D], OWX), wk_f=place(wk[D:2 * D], OWX), wk_e=place(wk[2 * D:], OWX),
            wm_x=place(wm[:D], OWX), wm_f=place(wm[D:2 * D], OWX), wm_e=place(wm[2 * D:], OWX),
            wq_x=place(wq[:D], OWX), wq_f=place(wq[D:2 * D], OWX),
            bk=padb(lp["key"]["b"], OWS), bm=padb(lp["msg"]["b"], OWS),
            bq=padb(lp["query"]["b"], OWS), sel=sel,
            mlp_w1=bf(wm1), mlp_b1=padb(bm1, D),
            mlp_w2=bf(padc(lp["mlp_l2"]["w"], OWX)), mlp_b2=padb(lp["mlp_l2"]["b"], OWX)))
    q["gnn_layers"] = layers

    # fused gelu(Vh(H) + Vx(X)): two row blocks (H is D-wide, X is OWX-wide)
    q["vhx"] = dict(
        w_h=bf(padc(p["Vh"]["w"], OWX)),
        w_x=bf(jnp.zeros((OWX, OWX), jnp.float32).at[:D, :D].set(p["Vx"]["w"])),
        b=padb(p["Vh"]["b"] + p["Vx"]["b"], OWX))

    # pooler: query proj stays tiny (XLA); fused K|V projection, row-padded for the
    # padded graph features (rows >= D are zero)
    wkv = jnp.zeros((OWX, OWKV), jnp.float32)
    wkv = wkv.at[:D, :HD].set(p["w_ks"]["w"]).at[:D, HD:2 * HD].set(p["w_vs"]["w"])
    q["w_qs"] = p["w_qs"]
    q["kv"] = dict(w=bf(wkv),
                   b=padb(jnp.concatenate([p["w_ks"]["b"], p["w_vs"]["b"]]), OWKV))

    # fc head: first layer takes [graph_vecs | sent_vecs | Z_vecs] as 3 separate refs
    fc_layers = []
    in_widths = [HD, sent_dim, D]
    for li, lp in enumerate(p["fc"]):
        w = lp["lin"]["w"]
        if li == 0:
            splits, off = [], 0
            for wd in in_widths:
                splits.append(bf(padc(w[off:off + wd], OWFC)))
                off += wd
        else:
            splits = [bf(jnp.zeros((OWFC, OWFC), jnp.float32)
                         .at[:fc_dim, :].set(padc(w, OWFC)))]
        fc_layers.append(dict(ws=splits, b=padb(lp["lin"]["b"], OWFC),
                              g=padb(lp["ln_g"], OWFC), bb=padb(lp["ln_b"], OWFC)))
    q["fc"] = fc_layers
    q["fc_out"] = p["fc_out"]
    return q


# ------------------------------------------------------------------------------ GATConvE
def gatconv_forward(lq, X, src, tgt, fi, fj, edge_emb, count, Np, dims, min_rows):
    """One GATConvE layer (post-layer GELU fused into its node-MLP kernel)."""
    D, Hh, d_head = dims["D"], dims["Hh"], dims["d_head"]
    E2 = src.shape[0]
    xi = X[tgt]                 # x_i = target node states (PyG source_to_target)
    xj = X[src]                 # x_j = source node states
    out = kmq_forward(xi, fi, xj, fj, edge_emb, lq, d_head, min_rows)   # (E2, OWS)
    msg = out[:, :D]
    scores = out[:, D:D + Hh]

    # PyG softmax over edges grouped by SOURCE node + source-degree rescale.
    # TODO(synk): segment softmax / segment-sum (ragged scatter) stays in plain JAX.
    smax = jax.ops.segment_max(scores, src, num_segments=Np)
    ex = jnp.exp(scores - smax[src])
    denom = jax.ops.segment_sum(ex, src, num_segments=Np)[src] + 1e-16
    alpha = (ex / denom) * count[:, None]

    per_edge = (msg.reshape(E2, Hh, d_head) * alpha[:, :, None]).reshape(E2, D)
    aggr = jax.ops.segment_sum(per_edge, tgt, num_segments=Np)          # aggr='add'
    return gat_mlp_forward(aggr, lq, min_rows)                          # (Np, OWX) bf16


# ----------------------------------------------------------------- QAGNN_Message_Passing
def gnn_forward(q, H, edge_index, edge_type, node_type, node_score, cfg):
    B, n_node, D = H.shape
    dims = _derived_dims(cfg)
    OWX, NTP = dims["OWX"], dims["NTP"]
    n_ntype, n_etype = cfg["n_ntype"], cfg["n_etype"]
    min_rows = cfg.get("pallas_min_rows", 8)

    N = B * n_node
    Np = _round_up(N + 1, 16)       # >= 1 padded node acts as sink for dummy edges

    # node_feature_extra = [gelu(type_emb) | gelu(score_emb)], computed once
    node_type_f = node_type.reshape(-1)
    T = jax.nn.one_hot(node_type_f, NTP, dtype=jnp.float32)
    js = jnp.power(1.1, jnp.arange(D // 2, dtype=jnp.float32))
    sinB = jnp.sin(js[None, None, :] * node_score).reshape(N, D // 2)
    T = jnp.pad(T, ((0, Np - N), (0, 0)))
    sinB = jnp.pad(sinB, ((0, Np - N), (0, 0)))
    node_feature_extra = fused_linear(
        [T, sinB], [q["feat_extra"]["w_t"], q["feat_extra"]["w_s"]], q["feat_extra"]["b"],
        act="gelu", out_dtype=jnp.bfloat16, min_rows=min_rows)          # (Np, OWX)

    # initial node states, padded once: rows -> Np, cols -> OWX
    X = jnp.pad(H.reshape(N, D), ((0, Np - N), (0, OWX - D))).astype(jnp.bfloat16)

    # edge list: self loops for the N real nodes + dummy sink edges so E2 % 16 == 0
    loop = jnp.arange(N, dtype=edge_index.dtype)
    src = jnp.concatenate([edge_index[0], loop])
    tgt = jnp.concatenate([edge_index[1], loop])
    e_code = jnp.concatenate([edge_type, jnp.full((N,), n_etype, edge_type.dtype)])
    E2 = int(src.shape[0])
    E2p = _round_up(E2, 16)
    if E2p != E2:
        sink = jnp.full((E2p - E2,), N, src.dtype)   # padded sink node absorbs them
        src = jnp.concatenate([src, sink])
        tgt = jnp.concatenate([tgt, sink])
        e_code = jnp.concatenate([e_code, jnp.full((E2p - E2,), n_etype, e_code.dtype)])

    # shared edge encoder, computed once; Linear1(+BN) on one-hots == row gather of W1
    node_type_pad = jnp.pad(node_type_f, (0, Np - N))
    head_t = node_type_pad[src]
    tail_t = node_type_pad[tgt]
    w1, b1 = q["edge_enc"]["w1"], q["edge_enc"]["b1"]
    h1 = (w1[e_code] + w1[n_etype + 1 + head_t] + w1[n_etype + 1 + n_ntype + tail_t]
          + b1[None, :])
    edge_emb = fused_linear([h1], [q["edge_enc"]["w2"]], q["edge_enc"]["b2"],
                            pre_relu=True, out_dtype=jnp.bfloat16,
                            min_rows=min_rows)                          # (E2p, OWX)

    # per-edge gathers / degree count that do NOT depend on the evolving X
    fi = node_feature_extra[tgt]
    fj = node_feature_extra[src]
    count = jax.ops.segment_sum(jnp.ones((E2p,), jnp.float32), src,
                                num_segments=Np)[src]

    for layer in range(cfg["k"]):
        X = gatconv_forward(q["gnn_layers"][layer], X, src, tgt, fi, fj, edge_emb,
                            count, Np, dims, min_rows)

    # fused gelu(Vh(H) + Vx(X)): two input refs, no concat
    Hp = jnp.pad(H.reshape(N, D), ((0, Np - N), (0, 0)))
    out = fused_linear([Hp, X], [q["vhx"]["w_h"], q["vhx"]["w_x"]], q["vhx"]["b"],
                       act="gelu", out_dtype=jnp.float32, min_rows=min_rows)  # (Np, OWX)
    return out[:N].reshape(B, n_node, OWX)


# -------------------------------------------------------------------- MultiheadAttPooler
def pooler_forward(q, sent, gnn_out, mask, cfg, min_rows):
    B, L, OWX = gnn_out.shape
    dims = _derived_dims(cfg)
    HD = dims["HD"]
    n_head = cfg["n_attention_head"]
    d_k = dims["D"] // n_head
    qs = (sent @ q["w_qs"]["w"] + q["w_qs"]["b"]).reshape(B, n_head, d_k)   # tiny -> XLA
    kv = fused_linear([gnn_out.reshape(B * L, OWX)], [q["kv"]["w"]], q["kv"]["b"],
                      out_dtype=jnp.float32, min_rows=min_rows)             # fused K|V
    ks = kv[:, :HD].reshape(B, L, n_head, d_k)
    vs = kv[:, HD:2 * HD].reshape(B, L, n_head, d_k)
    attn = jnp.einsum("bhd,blhd->bhl", qs, ks) / math.sqrt(d_k)
    attn = jnp.where(mask[:, None, :], -jnp.inf, attn)
    attn = jax.nn.softmax(attn, axis=-1)
    out = jnp.einsum("bhl,blhd->bhd", attn, vs).reshape(B, HD)
    pool_attn = jnp.transpose(attn, (1, 0, 2)).reshape(n_head * B, L)       # torch layout
    return out, pool_attn


# ---------------------------------------------------------------------------------- QAGNN
def qagnn_forward(q, sent_vecs, concept_ids, node_type_ids, node_scores, adj_lengths,
                  edge_index, edge_type, cfg):
    D = cfg["concept_dim"]
    min_rows = cfg.get("pallas_min_rows", 8)

    # svec2nvec + GELU (M = batch, tiny -> XLA); concept embedding lookup
    # TODO(synk): data-dependent embedding gather stays in plain JAX.
    gnn_input0 = _gelu(sent_vecs @ q["svec2nvec"]["w"] + q["svec2nvec"]["b"])[:, None, :]
    gnn_input1 = q["concept_emb"][concept_ids[:, 1:] - 1]
    gnn_input = jnp.concatenate([gnn_input0, gnn_input1], axis=1)   # dropout_e: eval->id

    B, n_node = node_type_ids.shape
    _mask = (jnp.arange(n_node)[None, :] < adj_lengths[:, None]).astype(jnp.float32)
    ns = -node_scores
    ns = ns - ns[:, 0:1, :]
    ns = ns[:, :, 0] * _mask
    mean_norm = jnp.abs(ns).sum(axis=1) / adj_lengths.astype(jnp.float32)
    ns = ns / (mean_norm[:, None] + 1e-05)
    node_scores_n = ns[:, :, None]

    gnn_output = gnn_forward(q, gnn_input, edge_index, edge_type, node_type_ids,
                             node_scores_n, cfg)                    # (B, n_node, OWX)
    Z_vecs = gnn_output[:, 0, :D]

    mask = jnp.arange(n_node)[None, :] >= adj_lengths[:, None]
    mask = mask | (node_type_ids == 3)
    all_masked = mask.all(axis=1)
    mask = mask.at[:, 0].set(jnp.where(all_masked, False, mask[:, 0]))

    graph_vecs, pool_attn = pooler_forward(q, sent_vecs, gnn_output, mask, cfg, min_rows)

    # fc head: parts passed as separate refs (no concat); dropout_fc: eval -> identity
    parts = [graph_vecs, sent_vecs, Z_vecs]
    for layer in q["fc"]:
        parts = [fc_ln_gelu_forward(parts, layer, n_valid=cfg["fc_dim"],
                                    min_rows=min_rows)]
    h = parts[0][:, :cfg["fc_dim"]]
    logits = h @ q["fc_out"]["w"] + q["fc_out"]["b"]                 # N=1 output -> XLA
    return logits, pool_attn


# ------------------------------------------------------------------------------------ main
if __name__ == "__main__":
    cfg = dict(
        k=2, n_ntype=4, n_etype=6, sent_dim=64, n_concept=50, concept_dim=32,
        concept_in_dim=32, n_attention_head=2, fc_dim=64, n_fc_layer=1,
        p_emb=0.2, p_gnn=0.1, p_fc=0.2, init_range=0.02,
        # Pallas is used for calls with at least this many rows; tiny batch-sized
        # matmuls fall back to XLA fusion.  For production sizes raise to ~256-512.
        pallas_min_rows=8,
    )
    key = jax.random.PRNGKey(0)
    kp, kd = jax.random.split(key)
    params = init_params(kp, cfg)
    iparams = prepare_params(params, cfg)   # one-time fold / fuse / pad, off hot path

    B, n_node = 2, 8
    keys = jax.random.split(kd, 8)
    sent_vecs = jax.random.normal(keys[0], (B, cfg["sent_dim"]), jnp.float32)
    concept_ids = jax.random.randint(keys[1], (B, n_node), 1, cfg["n_concept"] + 1, dtype=jnp.int32)
    node_type_ids = jax.random.randint(keys[2], (B, n_node), 0, cfg["n_ntype"], dtype=jnp.int32)
    node_type_ids = node_type_ids.at[:, 0].set(3)          # node 0 = context node
    node_scores = jax.random.normal(keys[3], (B, n_node, 1), jnp.float32)
    adj_lengths = jnp.array([n_node, n_node - 2], dtype=jnp.int32)

    # edges in the flattened (B*n_node) node index space, kept within each graph
    E_per = 6
    s = jax.random.randint(keys[4], (B, E_per), 0, n_node, dtype=jnp.int32)
    d = jax.random.randint(keys[5], (B, E_per), 0, n_node, dtype=jnp.int32)
    offs = (jnp.arange(B, dtype=jnp.int32) * n_node)[:, None]
    edge_index = jnp.stack([(s + offs).reshape(-1), (d + offs).reshape(-1)], axis=0)
    edge_type = jax.random.randint(keys[6], (B * E_per,), 0, cfg["n_etype"], dtype=jnp.int32)

    fwd = jax.jit(functools.partial(qagnn_forward, cfg=cfg))
    logits, pool_attn = fwd(iparams, sent_vecs, concept_ids, node_type_ids, node_scores,
                            adj_lengths, edge_index, edge_type)
    jax.block_until_ready((logits, pool_attn))
    assert logits.shape == (B, 1)
    assert pool_attn.shape == (cfg["n_attention_head"] * B, n_node)
    assert bool(jnp.all(jnp.isfinite(logits)))

    # cross-check the Pallas path against the pure-XLA fallback path (same math,
    # f32 activations) -- guards against kernel-level regressions.
    cfg_ref = dict(cfg, pallas_min_rows=1 << 30)
    fwd_ref = jax.jit(functools.partial(qagnn_forward, cfg=cfg_ref))
    logits_ref, pool_attn_ref = fwd_ref(iparams, sent_vecs, concept_ids, node_type_ids,
                                        node_scores, adj_lengths, edge_index, edge_type)
    jax.block_until_ready((logits_ref, pool_attn_ref))
    assert bool(jnp.allclose(logits, logits_ref, atol=5e-2))
    assert bool(jnp.allclose(pool_attn, pool_attn_ref, atol=5e-2))
    print("KERNEL_OK")
</pallas_src>

<mosaic_0001>
module attributes {stable_mosaic.version = 11 : i64} {
  func.func private @main(%arg0: i32) attributes {dimension_semantics = [#tpu.dimension_semantics<core_parallel>], iteration_bounds = array<i64: 2>, tpu.core_type = #tpu.core_type<sc_scalar_subcore>, window_params = []} {
    return
  }
}

module attributes {stable_mosaic.version = 11 : i64} {
  func.func private @main(%arg0: i32) attributes {dimension_semantics = [#tpu.dimension_semantics<core_parallel>], iteration_bounds = array<i64: 2>, tpu.core_type = #tpu.core_type<sc_scalar_subcore>, window_params = []} {
    return
  }
}

module attributes {stable_mosaic.version = 11 : i64} {
  func.func @_fused_linear_kernel(%arg0: i32, %arg1: memref<16x8xbf16, #tpu.memory_space<vmem>>, %arg2: memref<16x16xbf16, #tpu.memory_space<vmem>>, %arg3: memref<8x128xbf16, #tpu.memory_space<vmem>>, %arg4: memref<16x128xbf16, #tpu.memory_space<vmem>>, %arg5: memref<1x128xf32, #tpu.memory_space<vmem>>, %arg6: memref<16x128xbf16, #tpu.memory_space<vmem>>) attributes {dimension_semantics = [#tpu.dimension_semantics<parallel>], iteration_bounds = array<i64: 2>, scalar_prefetch = 0 : i64, scratch_operands = 0 : i64, tpu.core_type = #tpu.core_type<tc>, window_params = [{transform_indices = @transform_0, window_bounds = array<i64: 16, 8>}, {transform_indices = @transform_1, window_bounds = array<i64: 16, 16>}, {pipeline_mode = #tpu.pipeline_mode<synchronous>, transform_indices = @transform_2, window_bounds = array<i64: 8, 128>}, {pipeline_mode = #tpu.pipeline_mode<synchronous>, transform_indices = @transform_3, window_bounds = array<i64: 16, 128>}, {pipeline_mode = #tpu.pipeline_mode<synchronous>, transform_indices = @transform_4, window_bounds = array<i64: 1, 128>}, {transform_indices = @transform_5, window_bounds = array<i64: 16, 128>}]} {
    %c0 = arith.constant 0 : index
    %c0_0 = arith.constant 0 : index
    %0 = vector.load %arg1[%c0, %c0_0] : memref<16x8xbf16, #tpu.memory_space<vmem>>, vector<16x8xbf16>
    %c0_1 = arith.constant 0 : index
    %c0_2 = arith.constant 0 : index
    %1 = vector.load %arg3[%c0_1, %c0_2] : memref<8x128xbf16, #tpu.memory_space<vmem>>, vector<8x128xbf16>
    %cst = arith.constant dense<0.000000e+00> : vector<16x128xf32>
    %2 = tpu.matmul %0, %1, %cst {dimension_numbers = #tpu.dot_dimension_numbers<[1], [0], [0], [1], [0, 0, 1, 1], [], []>} : vector<16x8xbf16>, vector<8x128xbf16>, vector<16x128xf32> -> vector<16x128xf32>
    %c0_3 = arith.constant 0 : index
    %c0_4 = arith.constant 0 : index
    %3 = vector.load %arg2[%c0_3, %c0_4] : memref<16x16xbf16, #tpu.memory_space<vmem>>, vector<16x16xbf16>
    %c0_5 = arith.constant 0 : index
    %c0_6 = arith.constant 0 : index
    %4 = vector.load %arg4[%c0_5, %c0_6] : memref<16x128xbf16, #tpu.memory_space<vmem>>, vector<16x128xbf16>
    %cst_7 = arith.constant dense<0.000000e+00> : vector<16x128xf32>
    %5 = tpu.matmul %3, %4, %cst_7 {dimension_numbers = #tpu.dot_dimension_numbers<[1], [0], [0], [1], [0, 0, 1, 1], [], []>} : vector<16x16xbf16>, vector<16x128xbf16>, vector<16x128xf32> -> vector<16x128xf32>
    %6 = arith.addf %2, %5 : vector<16x128xf32>
    %c0_8 = arith.constant 0 : index
    %c0_9 = arith.constant 0 : index
    %7 = vector.load %arg5[%c0_8, %c0_9] : memref<1x128xf32, #tpu.memory_space<vmem>>, vector<1x128xf32>
    %8 = vector.broadcast %7 : vector<1x128xf32> to vector<16x128xf32>
    %9 = arith.addf %6, %8 : vector<16x128xf32>
    %cst_10 = arith.constant 5.000000e-01 : f32
    %10 = vector.broadcast %cst_10 : f32 to vector<16x128xf32>
    %11 = arith.mulf %10, %9 : vector<16x128xf32>
    %cst_11 = arith.constant 4.471500e-02 : f32
    %12 = vector.broadcast %cst_11 : f32 to vector<16x128xf32>
    %13 = arith.mulf %12, %9 : vector<16x128xf32>
    %14 = arith.mulf %13, %9 : vector<16x128xf32>
    %15 = arith.mulf %14, %9 : vector<16x128xf32>
    %16 = arith.addf %9, %15 : vector<16x128xf32>
    %cst_12 = arith.constant 0.797884583 : f32
    %17 = vector.broadcast %cst_12 : f32 to vector<16x128xf32>
    %18 = arith.mulf %17, %16 : vector<16x128xf32>
    %19 = math.tanh %18 : vector<16x128xf32>
    %cst_13 = arith.constant 1.000000e+00 : f32
    %20 = vector.broadcast %cst_13 : f32 to vector<16x128xf32>
    %21 = arith.addf %20, %19 : vector<16x128xf32>
    %22 = arith.mulf %11, %21 : vector<16x128xf32>
    %23 = arith.truncf %22 : vector<16x128xf32> to vector<16x128xbf16>
    %c0_14 = arith.constant 0 : index
    %c0_15 = arith.constant 0 : index
    %24 = vector.load %arg6[%c0_14, %c0_15] : memref<16x128xbf16, #tpu.memory_space<vmem>>, vector<16x128xbf16>
    tpu.vector_store %arg6[%c0_14, %c0_15], %23 {strides = array<i32>} : memref<16x128xbf16, #tpu.memory_space<vmem>>, vector<16x128xbf16>,
    return
  }
  func.func @transform_0(%arg0: i32) -> (i32, i32) {
    %c0_i32 = arith.constant 0 : i32
    %c0_i32_0 = arith.constant 0 : i32
    return %arg0, %c0_i32 : i32, i32
  }
  func.func @transform_1(%arg0: i32) -> (i32, i32) {
    %c0_i32 = arith.constant 0 : i32
    %c0_i32_0 = arith.constant 0 : i32
    return %arg0, %c0_i32 : i32, i32
  }
  func.func @transform_2(%arg0: i32) -> (i32, i32) {
    %c0_i32 = arith.constant 0 : i32
    %c0_i32_0 = arith.constant 0 : i32
    %c0_i32_1 = arith.constant 0 : i32
    return %c0_i32, %c0_i32_0 : i32, i32
  }
  func.func @transform_3(%arg0: i32) -> (i32, i32) {
    %c0_i32 = arith.constant 0 : i32
    %c0_i32_0 = arith.constant 0 : i32
    %c0_i32_1 = arith.constant 0 : i32
    return %c0_i32, %c0_i32_0 : i32, i32
  }
  func.func @transform_4(%arg0: i32) -> (i32, i32) {
    %c0_i32 = arith.constant 0 : i32
    %c0_i32_0 = arith.constant 0 : i32
    %c0_i32_1 = arith.constant 0 : i32
    return %c0_i32, %c0_i32_0 : i32, i32
  }
  func.func @transform_5(%arg0: i32) -> (i32, i32) {
    %c0_i32 = arith.constant 0 : i32
    %c0_i32_0 = arith.constant 0 : i32
    return %arg0, %c0_i32 : i32, i32
  }
}

module attributes {stable_mosaic.version = 11 : i64} {
  func.func @_fused_linear_kernel(%arg0: i32, %arg1: memref<16x32xbf16, #tpu.memory_space<vmem>>, %arg2: memref<32x128xbf16, #tpu.memory_space<vmem>>, %arg3: memref<1x128xf32, #tpu.memory_space<vmem>>, %arg4: memref<16x128xbf16, #tpu.memory_space<vmem>>) attributes {dimension_semantics = [#tpu.dimension_semantics<parallel>], iteration_bounds = array<i64: 2>, scalar_prefetch = 0 : i64, scratch_operands = 0 : i64, tpu.core_type = #tpu.core_type<tc>, window_params = [{transform_indices = @transform_0, window_bounds = array<i64: 16, 32>}, {pipeline_mode = #tpu.pipeline_mode<synchronous>, transform_indices = @transform_1, window_bounds = array<i64: 32, 128>}, {pipeline_mode = #tpu.pipeline_mode<synchronous>, transform_indices = @transform_2, window_bounds = array<i64: 1, 128>}, {transform_indices = @transform_3, window_bounds = array<i64: 16, 128>}]} {
    %c0 = arith.constant 0 : index
    %c0_0 = arith.constant 0 : index
    %0 = vector.load %arg1[%c0, %c0_0] : memref<16x32xbf16, #tpu.memory_space<vmem>>, vector<16x32xbf16>
    %cst = arith.constant 0.000000e+00 : bf16
    %1 = vector.broadcast %cst : bf16 to vector<16x32xbf16>
    %2 = arith.maximumf %0, %1 : vector<16x32xbf16>
    %c0_1 = arith.constant 0 : index
    %c0_2 = arith.constant 0 : index
    %3 = vector.load %arg2[%c0_1, %c0_2] : memref<32x128xbf16, #tpu.memory_space<vmem>>, vector<32x128xbf16>
    %cst_3 = arith.constant dense<0.000000e+00> : vector<16x128xf32>
    %4 = tpu.matmul %2, %3, %cst_3 {dimension_numbers = #tpu.dot_dimension_numbers<[1], [0], [0], [1], [0, 0, 1, 1], [], []>} : vector<16x32xbf16>, vector<32x128xbf16>, vector<16x128xf32> -> vector<16x128xf32>
    %c0_4 = arith.constant 0 : index
    %c0_5 = arith.constant 0 : index
    %5 = vector.load %arg3[%c0_4, %c0_5] : memref<1x128xf32, #tpu.memory_space<vmem>>, vector<1x128xf32>
    %6 = vector.broadcast %5 : vector<1x128xf32> to vector<16x128xf32>
    %7 = arith.addf %4, %6 : vector<16x128xf32>
    %8 = arith.truncf %7 : vector<16x128xf32> to vector<16x128xbf16>
    %c0_6 = arith.constant 0 : index
    %c0_7 = arith.constant 0 : index
    %9 = vector.load %arg4[%c0_6, %c0_7] : memref<16x128xbf16, #tpu.memory_space<vmem>>, vector<16x128xbf16>
    tpu.vector_store %arg4[%c0_6, %c0_7], %8 {strides = array<i32>} : memref<16x128xbf16, #tpu.memory_space<vmem>>, vector<16x128xbf16>,
    return
  }
  func.func @transform_0(%arg0: i32) -> (i32, i32) {
    %c0_i32 = arith.constant 0 : i32
    %c0_i32_0 = arith.constant 0 : i32
    return %arg0, %c0_i32 : i32, i32
  }
  func.func @transform_1(%arg0: i32) -> (i32, i32) {
    %c0_i32 = arith.constant 0 : i32
    %c0_i32_0 = arith.constant 0 : i32
    %c0_i32_1 = arith.constant 0 : i32
    return %c0_i32, %c0_i32_0 : i32, i32
  }
  func.func @transform_2(%arg0: i32) -> (i32, i32) {
    %c0_i32 = arith.constant 0 : i32
    %c0_i32_0 = arith.constant 0 : i32
    %c0_i32_1 = arith.constant 0 : i32
    return %c0_i32, %c0_i32_0 : i32, i32
  }
  func.func @transform_3(%arg0: i32) -> (i32, i32) {
    %c0_i32 = arith.constant 0 : i32
    %c0_i32_0 = arith.constant 0 : i32
    return %arg0, %c0_i32 : i32, i32
  }
}

module attributes {stable_mosaic.version = 11 : i64} {
  func.func @_kmq_kernel(%arg0: i32, %arg1: memref<16x128xbf16, #tpu.memory_space<vmem>>, %arg2: memref<16x128xbf16, #tpu.memory_space<vmem>>, %arg3: memref<16x128xbf16, #tpu.memory_space<vmem>>, %arg4: memref<16x128xbf16, #tpu.memory_space<vmem>>, %arg5: memref<16x128xbf16, #tpu.memory_space<vmem>>, %arg6: memref<128x128xbf16, #tpu.memory_space<vmem>>, %arg7: memref<128x128xbf16, #tpu.memory_space<vmem>>, %arg8: memref<128x128xbf16, #tpu.memory_space<vmem>>, %arg9: memref<128x128xbf16, #tpu.memory_space<vmem>>, %arg10: memref<128x128xbf16, #tpu.memory_space<vmem>>, %arg11: memref<128x128xbf16, #tpu.memory_space<vmem>>, %arg12: memref<128x128xbf16, #tpu.memory_space<vmem>>, %arg13: memref<128x128xbf16, #tpu.memory_space<vmem>>, %arg14: memref<1x128xf32, #tpu.memory_space<vmem>>, %arg15: memref<1x128xf32, #tpu.memory_space<vmem>>, %arg16: memref<1x128xf32, #tpu.memory_space<vmem>>, %arg17: memref<128x128xf32, #tpu.memory_space<vmem>>, %arg18: memref<16x128xf32, #tpu.memory_space<vmem>>) attributes {dimension_semantics = [#tpu.dimension_semantics<parallel>], iteration_bounds = array<i64: 2>, scalar_prefetch = 0 : i64, scratch_operands = 0 : i64, tpu.core_type = #tpu.core_type<tc>, window_params = [{transform_indices = @transform_0, window_bounds = array<i64: 16, 128>}, {transform_indices = @transform_1, window_bounds = array<i64: 16, 128>}, {transform_indices = @transform_2, window_bounds = array<i64: 16, 128>}, {transform_indices = @transform_3, window_bounds = array<i64: 16, 128>}, {transform_indices = @transform_4, window_bounds = array<i64: 16, 128>}, {pipeline_mode = #tpu.pipeline_mode<synchronous>, transform_indices = @transform_5, window_bounds = array<i64: 128, 128>}, {pipeline_mode = #tpu.pipeline_mode<synchronous>, transform_indices = @transform_6, window_bounds = array<i64: 128, 128>}, {pipeline_mode = #tpu.pipeline_mode<synchronous>, transform_indices = @transform_7, window_bounds = array<i64: 128, 128>}, {pipeline_mode = #tpu.pipeline_mode<synchronous>, transform_indices = @transform_8, window_bounds = array<i64: 128, 128>}, {pipeline_mode = #tpu.pipeline_mode<synchronous>, transform_indices = @transform_9, window_bounds = array<i64: 128, 128>}, {pipeline_mode = #tpu.pipeline_mode<synchronous>, transform_indices = @transform_10, window_bounds = array<i64: 128, 128>}, {pipeline_mode = #tpu.pipeline_mode<synchronous>, transform_indices = @transform_11, window_bounds = array<i64: 128, 128>}, {pipeline_mode = #tpu.pipeline_mode<synchronous>, transform_indices = @transform_12, window_bounds = array<i64: 128, 128>}, {pipeline_mode = #tpu.pipeline_mode<synchronous>, transform_indices = @transform_13, window_bounds = array<i64: 1, 128>}, {pipeline_mode = #tpu.pipeline_mode<synchronous>, transform_indices = @transform_14, window_bounds = array<i64: 1, 128>}, {pipeline_mode = #tpu.pipeline_mode<synchronous>, transform_indices = @transform_15, window_bounds = array<i64: 1, 128>}, {pipeline_mode = #tpu.pipeline_mode<synchronous>, transform_indices = @transform_16, window_bounds = array<i64: 128, 128>}, {transform_indices = @transform_17, window_bounds = array<i64: 16, 128>}]} {
    %c0 = arith.constant 0 : index
    %c0_0 = arith.constant 0 : index
    %0 = vector.load %arg1[%c0, %c0_0] : memref<16x128xbf16, #tpu.memory_space<vmem>>, vector<16x128xbf16>
    %c0_1 = arith.constant 0 : index
    %c0_2 = arith.constant 0 : index
    %1 = vector.load %arg2[%c0_1, %c0_2] : memref<16x128xbf16, #tpu.memory_space<vmem>>, vector<16x128xbf16>
    %c0_3 = arith.constant 0 : index
    %c0_4 = arith.constant 0 : index
    %2 = vector.load %arg3[%c0_3, %c0_4] : memref<16x128xbf16, #tpu.memory_space<vmem>>, vector<16x128xbf16>
    %c0_5 = arith.constant 0 : index
    %c0_6 = arith.constant 0 : index
    %3 = vector.load %arg4[%c0_5, %c0_6] : memref<16x128xbf16, #tpu.memory_space<vmem>>, vector<16x128xbf16>
    %c0_7 = arith.constant 0 : index
    %c0_8 = arith.constant 0 : index
    %4 = vector.load %arg5[%c0_7, %c0_8] : memref<16x128xbf16, #tpu.memory_space<vmem>>, vector<16x128xbf16>
    %c0_9 = arith.constant 0 : index
    %c0_10 = arith.constant 0 : index
    %5 = vector.load %arg6[%c0_9, %c0_10] : memref<128x128xbf16, #tpu.memory_space<vmem>>, vector<128x128xbf16>
    %cst = arith.constant dense<0.000000e+00> : vector<16x128xf32>
    %6 = tpu.matmul %0, %5, %cst {dimension_numbers = #tpu.dot_dimension_numbers<[1], [0], [0], [1], [0, 0, 1, 1], [], []>} : vector<16x128xbf16>, vector<128x128xbf16>, vector<16x128xf32> -> vector<16x128xf32>
    %c0_11 = arith.constant 0 : index
    %c0_12 = arith.constant 0 : index
    %7 = vector.load %arg7[%c0_11, %c0_12] : memref<128x128xbf16, #tpu.memory_space<vmem>>, vector<128x128xbf16>
    %cst_13 = arith.constant dense<0.000000e+00> : vector<16x128xf32>
    %8 = tpu.matmul %1, %7, %cst_13 {dimension_numbers = #tpu.dot_dimension_numbers<[1], [0], [0], [1], [0, 0, 1, 1], [], []>} : vector<16x128xbf16>, vector<128x128xbf16>, vector<16x128xf32> -> vector<16x128xf32>
    %9 = arith.addf %6, %8 : vector<16x128xf32>
    %c0_14 = arith.constant 0 : index
    %c0_15 = arith.constant 0 : index
    %10 = vector.load %arg8[%c0_14, %c0_15] : memref<128x128xbf16, #tpu.memory_space<vmem>>, vector<128x128xbf16>
    %cst_16 = arith.constant dense<0.000000e+00> : vector<16x128xf32>
    %11 = tpu.matmul %4, %10, %cst_16 {dimension_numbers = #tpu.dot_dimension_numbers<[1], [0], [0], [1], [0, 0, 1, 1], [], []>} : vector<16x128xbf16>, vector<128x128xbf16>, vector<16x128xf32> -> vector<16x128xf32>
    %12 = arith.addf %9, %11 : vector<16x128xf32>
    %c0_17 = arith.constant 0 : index
    %c0_18 = arith.constant 0 : index
    %13 = vector.load %arg14[%c0_17, %c0_18] : memref<1x128xf32, #tpu.memory_space<vmem>>, vector<1x128xf32>
    %14 = vector.broadcast %13 : vector<1x128xf32> to vector<16x128xf32>
    %15 = arith.addf %12, %14 : vector<16x128xf32>
    %c0_19 = arith.constant 0 : index
    %c0_20 = arith.constant 0 : index
    %16 = vector.load %arg9[%c0_19, %c0_20] : memref<128x128xbf16, #tpu.memory_space<vmem>>, vector<128x128xbf16>
    %cst_21 = arith.constant dense<0.000000e+00> : vector<16x128xf32>
    %17 = tpu.matmul %2, %16, %cst_21 {dimension_numbers = #tpu.dot_dimension_numbers<[1], [0], [0], [1], [0, 0, 1, 1], [], []>} : vector<16x128xbf16>, vector<128x128xbf16>, vector<16x128xf32> -> vector<16x128xf32>
    %c0_22 = arith.constant 0 : index
    %c0_23 = arith.constant 0 : index
    %18 = vector.load %arg10[%c0_22, %c0_23] : memref<128x128xbf16, #tpu.memory_space<vmem>>, vector<128x128xbf16>
    %cst_24 = arith.constant dense<0.000000e+00> : vector<16x128xf32>
    %19 = tpu.matmul %3, %18, %cst_24 {dimension_numbers = #tpu.dot_dimension_numbers<[1], [0], [0], [1], [0, 0, 1, 1], [], []>} : vector<16x128xbf16>, vector<128x128xbf16>, vector<16x128xf32> -> vector<16x128xf32>
    %20 = arith.addf %17, %19 : vector<16x128xf32>
    %c0_25 = arith.constant 0 : index
    %c0_26 = arith.constant 0 : index
    %21 = vector.load %arg11[%c0_25, %c0_26] : memref<128x128xbf16, #tpu.memory_space<vmem>>, vector<128x128xbf16>
    %cst_27 = arith.constant dense<0.000000e+00> : vector<16x128xf32>
    %22 = tpu.matmul %4, %21, %cst_27 {dimension_numbers = #tpu.dot_dimension_numbers<[1], [0], [0], [1], [0, 0, 1, 1], [], []>} : vector<16x128xbf16>, vector<128x128xbf16>, vector<16x128xf32> -> vector<16x128xf32>
    %23 = arith.addf %20, %22 : vector<16x128xf32>
    %c0_28 = arith.constant 0 : index
    %c0_29 = arith.constant 0 : index
    %24 = vector.load %arg15[%c0_28, %c0_29] : memref<1x128xf32, #tpu.memory_space<vmem>>, vector<1x128xf32>
    %25 = vector.broadcast %24 : vector<1x128xf32> to vector<16x128xf32>
    %26 = arith.addf %23, %25 : vector<16x128xf32>
    %c0_30 = arith.constant 0 : index
    %c0_31 = arith.constant 0 : index
    %27 = vector.load %arg12[%c0_30, %c0_31] : memref<128x128xbf16, #tpu.memory_space<vmem>>, vector<128x128xbf16>
    %cst_32 = arith.constant dense<0.000000e+00> : vector<16x128xf32>
    %28 = tpu.matmul %2, %27, %cst_32 {dimension_numbers = #tpu.dot_dimension_numbers<[1], [0], [0], [1], [0, 0, 1, 1], [], []>} : vector<16x128xbf16>, vector<128x128xbf16>, vector<16x128xf32> -> vector<16x128xf32>
    %c0_33 = arith.constant 0 : index
    %c0_34 = arith.constant 0 : index
    %29 = vector.load %arg13[%c0_33, %c0_34] : memref<128x128xbf16, #tpu.memory_space<vmem>>, vector<128x128xbf16>
    %cst_35 = arith.constant dense<0.000000e+00> : vector<16x128xf32>
    %30 = tpu.matmul %3, %29, %cst_35 {dimension_numbers = #tpu.dot_dimension_numbers<[1], [0], [0], [1], [0, 0, 1, 1], [], []>} : vector<16x128xbf16>, vector<128x128xbf16>, vector<16x128xf32> -> vector<16x128xf32>
    %31 = arith.addf %28, %30 : vector<16x128xf32>
    %c0_36 = arith.constant 0 : index
    %c0_37 = arith.constant 0 : index
    %32 = vector.load %arg16[%c0_36, %c0_37] : memref<1x128xf32, #tpu.memory_space<vmem>>, vector<1x128xf32>
    %33 = vector.broadcast %32 : vector<1x128xf32> to vector<16x128xf32>
    %34 = arith.addf %31, %33 : vector<16x128xf32>
    %cst_38 = arith.constant 0.353553385 : f32
    %35 = vector.broadcast %cst_38 : f32 to vector<16x128xf32>
    %36 = arith.mulf %34, %35 : vector<16x128xf32>
    %37 = arith.mulf %15, %36 : vector<16x128xf32>
    %c0_39 = arith.constant 0 : index
    %c0_40 = arith.constant 0 : index
    %38 = vector.load %arg17[%c0_39, %c0_40] : memref<128x128xf32, #tpu.memory_space<vmem>>, vector<128x128xf32>
    %cst_41 = arith.constant dense<0.000000e+00> : vector<16x128xf32>
    %39 = tpu.matmul %37, %38, %cst_41 {dimension_numbers = #tpu.dot_dimension_numbers<[1], [0], [0], [1], [0, 0, 1, 1], [], []>} : vector<16x128xf32>, vector<128x128xf32>, vector<16x128xf32> -> vector<16x128xf32>
    %40 = arith.addf %26, %39 : vector<16x128xf32>
    %c0_42 = arith.constant 0 : index
    %c0_43 = arith.constant 0 : index
    %41 = vector.load %arg18[%c0_42, %c0_43] : memref<16x128xf32, #tpu.memory_space<vmem>>, vector<16x128xf32>
    tpu.vector_store %arg18[%c0_42, %c0_43], %40 {strides = array<i32>} : memref<16x128xf32, #tpu.memory_space<vmem>>, vector<16x128xf32>,
    return
  }
  func.func @transform_0(%arg0: i32) -> (i32, i32) {
    %c0_i32 = arith.constant 0 : i32
    %c0_i32_0 = arith.constant 0 : i32
    return %arg0, %c0_i32 : i32, i32
  }
  func.func @transform_1(%arg0: i32) -> (i32, i32) {
    %c0_i32 = arith.constant 0 : i32
    %c0_i32_0 = arith.constant 0 : i32
    return %arg0, %c0_i32 : i32, i32
  }
  func.func @transform_2(%arg0: i32) -> (i32, i32) {
    %c0_i32 = arith.constant 0 : i32
    %c0_i32_0 = arith.constant 0 : i32
    return %arg0, %c0_i32 : i32, i32
  }
  func.func @transform_3(%arg0: i32) -> (i32, i32) {
    %c0_i32 = arith.constant 0 : i32
    %c0_i32_0 = arith.constant 0 : i32
    return %arg0, %c0_i32 : i32, i32
  }
  func.func @transform_4(%arg0: i32) -> (i32, i32) {
    %c0_i32 = arith.constant 0 : i32
    %c0_i32_0 = arith.constant 0 : i32
    return %arg0, %c0_i32 : i32, i32
  }
  func.func @transform_5(%arg0: i32) -> (i32, i32) {
    %c0_i32 = arith.constant 0 : i32
    %c0_i32_0 = arith.constant 0 : i32
    %c0_i32_1 = arith.constant 0 : i32
    return %c0_i32, %c0_i32_0 : i32, i32
  }
  func.func @transform_6(%arg0: i32) -> (i32, i32) {
    %c0_i32 = arith.constant 0 : i32
    %c0_i32_0 = arith.constant 0 : i32
    %c0_i32_1 = arith.constant 0 : i32
    return %c0_i32, %c0_i32_0 : i32, i32
  }
  func.func @transform_7(%arg0: i32) -> (i32, i32) {
    %c0_i32 = arith.constant 0 : i32
    %c0_i32_0 = arith.constant 0 : i32
    %c0_i32_1 = arith.constant 0 : i32
    return %c0_i32, %c0_i32_0 : i32, i32
  }
  func.func @transform_8(%arg0: i32) -> (i32, i32) {
    %c0_i32 = arith.constant 0 : i32
    %c0_i32_0 = arith.constant 0 : i32
    %c0_i32_1 = arith.constant 0 : i32
    return %c0_i32, %c0_i32_0 : i32, i32
  }
  func.func @transform_9(%arg0: i32) -> (i32, i32) {
    %c0_i32 = arith.constant 0 : i32
    %c0_i32_0 = arith.constant 0 : i32
    %c0_i32_1 = arith.constant 0 : i32
    return %c0_i32, %c0_i32_0 : i32, i32
  }
  func.func @transform_10(%arg0: i32) -> (i32, i32) {
    %c0_i32 = arith.constant 0 : i32
    %c0_i32_0 = arith.constant 0 : i32
    %c0_i32_1 = arith.constant 0 : i32
    return %c0_i32, %c0_i32_0 : i32, i32
  }
  func.func @transform_11(%arg0: i32) -> (i32, i32) {
    %c0_i32 = arith.constant 0 : i32
    %c0_i32_0 = arith.constant 0 : i32
    %c0_i32_1 = arith.constant 0 : i32
    return %c0_i32, %c0_i32_0 : i32, i32
  }
  func.func @transform_12(%arg0: i32) -> (i32, i32) {
    %c0_i32 = arith.constant 0 : i32
    %c0_i32_0 = arith.constant 0 : i32
    %c0_i32_1 = arith.constant 0 : i32
    return %c0_i32, %c0_i32_0 : i32, i32
  }
  func.func @transform_13(%arg0: i32) -> (i32, i32) {
    %c0_i32 = arith.constant 0 : i32
    %c0_i32_0 = arith.constant 0 : i32
    %c0_i32_1 = arith.constant 0 : i32
    return %c0_i32, %c0_i32_0 : i32, i32
  }
  func.func @transform_14(%arg0: i32) -> (i32, i32) {
    %c0_i32 = arith.constant 0 : i32
    %c0_i32_0 = arith.constant 0 : i32
    %c0_i32_1 = arith.constant 0 : i32
    return %c0_i32, %c0_i32_0 : i32, i32
  }
  func.func @transform_15(%arg0: i32) -> (i32, i32) {
    %c0_i32 = arith.constant 0 : i32
    %c0_i32_0 = arith.constant 0 : i32
    %c0_i32_1 = arith.constant 0 : i32
    return %c0_i32, %c0_i32_0 : i32, i32
  }
  func.func @transform_16(%arg0: i32) -> (i32, i32) {
    %c0_i32 = arith.constant 0 : i32
    %c0_i32_0 = arith.constant 0 : i32
    %c0_i32_1 = arith.constant 0 : i32
    return %c0_i32, %c0_i32_0 : i32, i32
  }
  func.func @transform_17(%arg0: i32) -> (i32, i32) {
    %c0_i32 = arith.constant 0 : i32
    %c0_i32_0 = arith.constant 0 : i32
    return %arg0, %c0_i32 : i32, i32
  }
}

module attributes {stable_mosaic.version = 11 : i64} {
  func.func @_gat_mlp_kernel(%arg0: i32, %arg1: memref<16x32xbf16, #tpu.memory_space<vmem>>, %arg2: memref<32x32xbf16, #tpu.memory_space<vmem>>, %arg3: memref<1x32xf32, #tpu.memory_space<vmem>>, %arg4: memref<32x128xbf16, #tpu.memory_space<vmem>>, %arg5: memref<1x128xf32, #tpu.memory_space<vmem>>, %arg6: memref<16x128xbf16, #tpu.memory_space<vmem>>) attributes {dimension_semantics = [#tpu.dimension_semantics<parallel>], iteration_bounds = array<i64: 2>, scalar_prefetch = 0 : i64, scratch_operands = 0 : i64, tpu.core_type = #tpu.core_type<tc>, window_params = [{transform_indices = @transform_0, window_bounds = array<i64: 16, 32>}, {pipeline_mode = #tpu.pipeline_mode<synchronous>, transform_indices = @transform_1, window_bounds = array<i64: 32, 32>}, {pipeline_mode = #tpu.pipeline_mode<synchronous>, transform_indices = @transform_2, window_bounds = array<i64: 1, 32>}, {pipeline_mode = #tpu.pipeline_mode<synchronous>, transform_indices = @transform_3, window_bounds = array<i64: 32, 128>}, {pipeline_mode = #tpu.pipeline_mode<synchronous>, transform_indices = @transform_4, window_bounds = array<i64: 1, 128>}, {transform_indices = @transform_5, window_bounds = array<i64: 16, 128>}]} {
    %c0 = arith.constant 0 : index
    %c0_0 = arith.constant 0 : index
    %0 = vector.load %arg1[%c0, %c0_0] : memref<16x32xbf16, #tpu.memory_space<vmem>>, vector<16x32xbf16>
    %c0_1 = arith.constant 0 : index
    %c0_2 = arith.constant 0 : index
    %1 = vector.load %arg2[%c0_1, %c0_2] : memref<32x32xbf16, #tpu.memory_space<vmem>>, vector<32x32xbf16>
    %cst = arith.constant dense<0.000000e+00> : vector<16x32xf32>
    %2 = tpu.matmul %0, %1, %cst {dimension_numbers = #tpu.dot_dimension_numbers<[1], [0], [0], [1], [0, 0, 1, 1], [], []>} : vector<16x32xbf16>, vector<32x32xbf16>, vector<16x32xf32> -> vector<16x32xf32>
    %c0_3 = arith.constant 0 : index
    %c0_4 = arith.constant 0 : index
    %3 = vector.load %arg3[%c0_3, %c0_4] : memref<1x32xf32, #tpu.memory_space<vmem>>, vector<1x32xf32>
    %4 = vector.broadcast %3 : vector<1x32xf32> to vector<16x32xf32>
    %5 = arith.addf %2, %4 : vector<16x32xf32>
    %cst_5 = arith.constant 0.000000e+00 : f32
    %6 = vector.broadcast %cst_5 : f32 to vector<16x32xf32>
    %7 = arith.maximumf %5, %6 : vector<16x32xf32>
    %8 = arith.truncf %7 : vector<16x32xf32> to vector<16x32xbf16>
    %c0_6 = arith.constant 0 : index
    %c0_7 = arith.constant 0 : index
    %9 = vector.load %arg4[%c0_6, %c0_7] : memref<32x128xbf16, #tpu.memory_space<vmem>>, vector<32x128xbf16>
    %cst_8 = arith.constant dense<0.000000e+00> : vector<16x128xf32>
    %10 = tpu.matmul %8, %9, %cst_8 {dimension_numbers = #tpu.dot_dimension_numbers<[1], [0], [0], [1], [0, 0, 1, 1], [], []>} : vector<16x32xbf16>, vector<32x128xbf16>, vector<16x128xf32> -> vector<16x128xf32>
    %c0_9 = arith.constant 0 : index
    %c0_10 = arith.constant 0 : index
    %11 = vector.load %arg5[%c0_9, %c0_10] : memref<1x128xf32, #tpu.memory_space<vmem>>, vector<1x128xf32>
    %12 = vector.broadcast %11 : vector<1x128xf32> to vector<16x128xf32>
    %13 = arith.addf %10, %12 : vector<16x128xf32>
    %cst_11 = arith.constant 5.000000e-01 : f32
    %14 = vector.broadcast %cst_11 : f32 to vector<16x128xf32>
    %15 = arith.mulf %14, %13 : vector<16x128xf32>
    %cst_12 = arith.constant 4.471500e-02 : f32
    %16 = vector.broadcast %cst_12 : f32 to vector<16x128xf32>
    %17 = arith.mulf %16, %13 : vector<16x128xf32>
    %18 = arith.mulf %17, %13 : vector<16x128xf32>
    %19 = arith.mulf %18, %13 : vector<16x128xf32>
    %20 = arith.addf %13, %19 : vector<16x128xf32>
    %cst_13 = arith.constant 0.797884583 : f32
    %21 = vector.broadcast %cst_13 : f32 to vector<16x128xf32>
    %22 = arith.mulf %21, %20 : vector<16x128xf32>
    %23 = math.tanh %22 : vector<16x128xf32>
    %cst_14 = arith.constant 1.000000e+00 : f32
    %24 = vector.broadcast %cst_14 : f32 to vector<16x128xf32>
    %25 = arith.addf %24, %23 : vector<16x128xf32>
    %26 = arith.mulf %15, %25 : vector<16x128xf32>
    %27 = arith.truncf %26 : vector<16x128xf32> to vector<16x128xbf16>
    %c0_15 = arith.constant 0 : index
    %c0_16 = arith.constant 0 : index
    %28 = vector.load %arg6[%c0_15, %c0_16] : memref<16x128xbf16, #tpu.memory_space<vmem>>, vector<16x128xbf16>
    tpu.vector_store %arg6[%c0_15, %c0_16], %27 {strides = array<i32>} : memref<16x128xbf16, #tpu.memory_space<vmem>>, vector<16x128xbf16>,
    return
  }
  func.func @transform_0(%arg0: i32) -> (i32, i32) {
    %c0_i32 = arith.constant 0 : i32
    %c0_i32_0 = arith.constant 0 : i32
    return %arg0, %c0_i32 : i32, i32
  }
  func.func @transform_1(%arg0: i32) -> (i32, i32) {
    %c0_i32 = arith.constant 0 : i32
    %c0_i32_0 = arith.constant 0 : i32
    %c0_i32_1 = arith.constant 0 : i32
    return %c0_i32, %c0_i32_0 : i32, i32
  }
  func.func @transform_2(%arg0: i32) -> (i32, i32) {
    %c0_i32 = arith.constant 0 : i32
    %c0_i32_0 = arith.constant 0 : i32
    %c0_i32_1 = arith.constant 0 : i32
    return %c0_i32, %c0_i32_0 : i32, i32
  }
  func.func @transform_3(%arg0: i32) -> (i32, i32) {
    %c0_i32 = arith.constant 0 : i32
    %c0_i32_0 = arith.constant 0 : i32
    %c0_i32_1 = arith.constant 0 : i32
    return %c0_i32, %c0_i32_0 : i32, i32
  }
  func.func @transform_4(%arg0: i32) -> (i32, i32) {
    %c0_i32 = arith.constant 0 : i32
    %c0_i32_0 = arith.constant 0 : i32
    %c0_i32_1 = arith.constant 0 : i32
    return %c0_i32, %c0_i32_0 : i32, i32
  }
  func.func @transform_5(%arg0: i32) -> (i32, i32) {
    %c0_i32 = arith.constant 0 : i32
    %c0_i32_0 = arith.constant 0 : i32
    return %arg0, %c0_i32 : i32, i32
  }
}

module attributes {stable_mosaic.version = 11 : i64} {
  func.func @_fused_linear_kernel(%arg0: i32, %arg1: memref<16x32xbf16, #tpu.memory_space<vmem>>, %arg2: memref<16x128xbf16, #tpu.memory_space<vmem>>, %arg3: memref<32x128xbf16, #tpu.memory_space<vmem>>, %arg4: memref<128x128xbf16, #tpu.memory_space<vmem>>, %arg5: memref<1x128xf32, #tpu.memory_space<vmem>>, %arg6: memref<16x128xf32, #tpu.memory_space<vmem>>) attributes {dimension_semantics = [#tpu.dimension_semantics<parallel>], iteration_bounds = array<i64: 2>, scalar_prefetch = 0 : i64, scratch_operands = 0 : i64, tpu.core_type = #tpu.core_type<tc>, window_params = [{transform_indices = @transform_0, window_bounds = array<i64: 16, 32>}, {transform_indices = @transform_1, window_bounds = array<i64: 16, 128>}, {pipeline_mode = #tpu.pipeline_mode<synchronous>, transform_indices = @transform_2, window_bounds = array<i64: 32, 128>}, {pipeline_mode = #tpu.pipeline_mode<synchronous>, transform_indices = @transform_3, window_bounds = array<i64: 128, 128>}, {pipeline_mode = #tpu.pipeline_mode<synchronous>, transform_indices = @transform_4, window_bounds = array<i64: 1, 128>}, {transform_indices = @transform_5, window_bounds = array<i64: 16, 128>}]} {
    %c0 = arith.constant 0 : index
    %c0_0 = arith.constant 0 : index
    %0 = vector.load %arg1[%c0, %c0_0] : memref<16x32xbf16, #tpu.memory_space<vmem>>, vector<16x32xbf16>
    %c0_1 = arith.constant 0 : index
    %c0_2 = arith.constant 0 : index
    %1 = vector.load %arg3[%c0_1, %c0_2] : memref<32x128xbf16, #tpu.memory_space<vmem>>, vector<32x128xbf16>
    %cst = arith.constant dense<0.000000e+00> : vector<16x128xf32>
    %2 = tpu.matmul %0, %1, %cst {dimension_numbers = #tpu.dot_dimension_numbers<[1], [0], [0], [1], [0, 0, 1, 1], [], []>} : vector<16x32xbf16>, vector<32x128xbf16>, vector<16x128xf32> -> vector<16x128xf32>
    %c0_3 = arith.constant 0 : index
    %c0_4 = arith.constant 0 : index
    %3 = vector.load %arg2[%c0_3, %c0_4] : memref<16x128xbf16, #tpu.memory_space<vmem>>, vector<16x128xbf16>
    %c0_5 = arith.constant 0 : index
    %c0_6 = arith.constant 0 : index
    %4 = vector.load %arg4[%c0_5, %c0_6] : memref<128x128xbf16, #tpu.memory_space<vmem>>, vector<128x128xbf16>
    %cst_7 = arith.constant dense<0.000000e+00> : vector<16x128xf32>
    %5 = tpu.matmul %3, %4, %cst_7 {dimension_numbers = #tpu.dot_dimension_numbers<[1], [0], [0], [1], [0, 0, 1, 1], [], []>} : vector<16x128xbf16>, vector<128x128xbf16>, vector<16x128xf32> -> vector<16x128xf32>
    %6 = arith.addf %2, %5 : vector<16x128xf32>
    %c0_8 = arith.constant 0 : index
    %c0_9 = arith.constant 0 : index
    %7 = vector.load %arg5[%c0_8, %c0_9] : memref<1x128xf32, #tpu.memory_space<vmem>>, vector<1x128xf32>
    %8 = vector.broadcast %7 : vector<1x128xf32> to vector<16x128xf32>
    %9 = arith.addf %6, %8 : vector<16x128xf32>
    %cst_10 = arith.constant 5.000000e-01 : f32
    %10 = vector.broadcast %cst_10 : f32 to vector<16x128xf32>
    %11 = arith.mulf %10, %9 : vector<16x128xf32>
    %cst_11 = arith.constant 4.471500e-02 : f32
    %12 = vector.broadcast %cst_11 : f32 to vector<16x128xf32>
    %13 = arith.mulf %12, %9 : vector<16x128xf32>
    %14 = arith.mulf %13, %9 : vector<16x128xf32>
    %15 = arith.mulf %14, %9 : vector<16x128xf32>
    %16 = arith.addf %9, %15 : vector<16x128xf32>
    %cst_12 = arith.constant 0.797884583 : f32
    %17 = vector.broadcast %cst_12 : f32 to vector<16x128xf32>
    %18 = arith.mulf %17, %16 : vector<16x128xf32>
    %19 = math.tanh %18 : vector<16x128xf32>
    %cst_13 = arith.constant 1.000000e+00 : f32
    %20 = vector.broadcast %cst_13 : f32 to vector<16x128xf32>
    %21 = arith.addf %20, %19 : vector<16x128xf32>
    %22 = arith.mulf %11, %21 : vector<16x128xf32>
    %c0_14 = arith.constant 0 : index
    %c0_15 = arith.constant 0 : index
    %23 = vector.load %arg6[%c0_14, %c0_15] : memref<16x128xf32, #tpu.memory_space<vmem>>, vector<16x128xf32>
    tpu.vector_store %arg6[%c0_14, %c0_15], %22 {strides = array<i32>} : memref<16x128xf32, #tpu.memory_space<vmem>>, vector<16x128xf32>,
    return
  }
  func.func @transform_0(%arg0: i32) -> (i32, i32) {
    %c0_i32 = arith.constant 0 : i32
    %c0_i32_0 = arith.constant 0 : i32
    return %arg0, %c0_i32 : i32, i32
  }
  func.func @transform_1(%arg0: i32) -> (i32, i32) {
    %c0_i32 = arith.constant 0 : i32
    %c0_i32_0 = arith.constant 0 : i32
    return %arg0, %c0_i32 : i32, i32
  }
  func.func @transform_2(%arg0: i32) -> (i32, i32) {
    %c0_i32 = arith.constant 0 : i32
    %c0_i32_0 = arith.constant 0 : i32
    %c0_i32_1 = arith.constant 0 : i32
    return %c0_i32, %c0_i32_0 : i32, i32
  }
  func.func @transform_3(%arg0: i32) -> (i32, i32) {
    %c0_i32 = arith.constant 0 : i32
    %c0_i32_0 = arith.constant 0 : i32
    %c0_i32_1 = arith.constant 0 : i32
    return %c0_i32, %c0_i32_0 : i32, i32
  }
  func.func @transform_4(%arg0: i32) -> (i32, i32) {
    %c0_i32 = arith.constant 0 : i32
    %c0_i32_0 = arith.constant 0 : i32
    %c0_i32_1 = arith.constant 0 : i32
    return %c0_i32, %c0_i32_0 : i32, i32
  }
  func.func @transform_5(%arg0: i32) -> (i32, i32) {
    %c0_i32 = arith.constant 0 : i32
    %c0_i32_0 = arith.constant 0 : i32
    return %arg0, %c0_i32 : i32, i32
  }
}

module attributes {stable_mosaic.version = 11 : i64} {
  func.func @_fused_linear_kernel(%arg0: i32, %arg1: memref<16x128xbf16, #tpu.memory_space<vmem>>, %arg2: memref<128x128xbf16, #tpu.memory_space<vmem>>, %arg3: memref<1x128xf32, #tpu.memory_space<vmem>>, %arg4: memref<16x128xf32, #tpu.memory_space<vmem>>) attributes {dimension_semantics = [#tpu.dimension_semantics<parallel>], iteration_bounds = array<i64: 1>, scalar_prefetch = 0 : i64, scratch_operands = 0 : i64, tpu.core_type = #tpu.core_type<tc>, window_params = [{transform_indices = @transform_0, window_bounds = array<i64: 16, 128>}, {pipeline_mode = #tpu.pipeline_mode<synchronous>, transform_indices = @transform_1, window_bounds = array<i64: 128, 128>}, {pipeline_mode = #tpu.pipeline_mode<synchronous>, transform_indices = @transform_2, window_bounds = array<i64: 1, 128>}, {transform_indices = @transform_3, window_bounds = array<i64: 16, 128>}]} {
    %c0 = arith.constant 0 : index
    %c0_0 = arith.constant 0 : index
    %0 = vector.load %arg1[%c0, %c0_0] : memref<16x128xbf16, #tpu.memory_space<vmem>>, vector<16x128xbf16>
    %c0_1 = arith.constant 0 : index
    %c0_2 = arith.constant 0 : index
    %1 = vector.load %arg2[%c0_1, %c0_2] : memref<128x128xbf16, #tpu.memory_space<vmem>>, vector<128x128xbf16>
    %cst = arith.constant dense<0.000000e+00> : vector<16x128xf32>
    %2 = tpu.matmul %0, %1, %cst {dimension_numbers = #tpu.dot_dimension_numbers<[1], [0], [0], [1], [0, 0, 1, 1], [], []>} : vector<16x128xbf16>, vector<128x128xbf16>, vector<16x128xf32> -> vector<16x128xf32>
    %c0_3 = arith.constant 0 : index
    %c0_4 = arith.constant 0 : index
    %3 = vector.load %arg3[%c0_3, %c0_4] : memref<1x128xf32, #tpu.memory_space<vmem>>, vector<1x128xf32>
    %4 = vector.broadcast %3 : vector<1x128xf32> to vector<16x128xf32>
    %5 = arith.addf %2, %4 : vector<16x128xf32>
    %c0_5 = arith.constant 0 : index
    %c0_6 = arith.constant 0 : index
    %6 = vector.load %arg4[%c0_5, %c0_6] : memref<16x128xf32, #tpu.memory_space<vmem>>, vector<16x128xf32>
    tpu.vector_store %arg4[%c0_5, %c0_6], %5 {strides = array<i32>} : memref<16x128xf32, #tpu.memory_space<vmem>>, vector<16x128xf32>,
    return
  }
  func.func @transform_0(%arg0: i32) -> (i32, i32) {
    %c0_i32 = arith.constant 0 : i32
    %c0_i32_0 = arith.constant 0 : i32
    return %arg0, %c0_i32 : i32, i32
  }
  func.func @transform_1(%arg0: i32) -> (i32, i32) {
    %c0_i32 = arith.constant 0 : i32
    %c0_i32_0 = arith.constant 0 : i32
    %c0_i32_1 = arith.constant 0 : i32
    return %c0_i32, %c0_i32_0 : i32, i32
  }
  func.func @transform_2(%arg0: i32) -> (i32, i32) {
    %c0_i32 = arith.constant 0 : i32
    %c0_i32_0 = arith.constant 0 : i32
    %c0_i32_1 = arith.constant 0 : i32
    return %c0_i32, %c0_i32_0 : i32, i32
  }
  func.func @transform_3(%arg0: i32) -> (i32, i32) {
    %c0_i32 = arith.constant 0 : i32
    %c0_i32_0 = arith.constant 0 : i32
    return %arg0, %c0_i32 : i32, i32
  }
}

</mosaic_0001>

<llo_original>
// kernel: eq.1
$region0: #{eq.1}
  %s0 = inlined_call_operand.vmem [shape: s32[2,8], index: 0, kind: input, shape index: {}]
  %s1 = inlined_call_operand.vmem [shape: s32[16], index: 1, kind: output, shape index: {}]
  $region1: #{eq.1} parent=0
    #allocation0 [shape = 'u8[4096]{0}', space=vmem, size = 0x1000, scoped, tag = 'scoped mem for output reshape']
    #allocation1 [shape = 'u8[4096]{0}', space=vmem, size = 0x1000, scoped, tag = 'scoped mem for input reshape']
    %s3 = sshllo.u32 0, 2
    %v4 = vld [vmem:[%s0] sm:%s3]
    %5 = vst [vmem:[#allocation1] sm:%s3] %v4
    %v6 = vld [vmem:[#allocation1] sm:$0x1]
    %vm7 = vcmask 64512
    %8 = vst.msk [vmem:[#allocation0] sm:$0x1] %vm7, %v6
    %s9 = scalar_lea.vmem [#allocation1], 1
    %v10 = vld [vmem:[%s9] sm:$0x1]
    %11 = vrot.lane.b32.xlu0 %v10, 8
    %v12 = vpop.permute.xlu0 %11
    %vm13 = vcmask 130112
    %14 = vst.msk [vmem:[#allocation0] sm:$0x1] %vm13, %v12
    %s16 = sshllo.u32 0, 1
    %v18 = vld [vmem:[#allocation0] sm:%s16]
    %s19 = sshllo.u32 0, 1
    %20 = vst [vmem:[%s1] sm:%s19] %v18

// kernel: neg.1
$region0: #{neg.1}
  #allocation0 [shape = 's32[1]{0}', space=sflag, size = 0x4, scoped, tag = 'scoped memory for neg.1']
  %s0 = inlined_call_operand.vmem [shape: f32[2,8,1], index: 0, kind: input, shape index: {}]
  %s1 = inlined_call_operand.vmem [shape: f32[2,8,1], index: 1, kind: output, shape index: {}]
  %v2 = vld [vmem:[%s0] sm:$0x1]
  %3 = xla_tuple %v2
  %4 = xla_tuple %3
  %v5 = vxor.u32 %v2, 2147483648
  %6 = xla_tuple %v5
  %7 = vst [vmem:[%s1] sm:$0x1] %v5
  %s8 = scalar_lea.vmem %s0, 1
  %v9 = vld [vmem:[%s8] sm:$0x1]
  %10 = xla_tuple %v9
  %11 = xla_tuple %10
  %v12 = vxor.u32 %v9, 2147483648
  %13 = xla_tuple %v12
  %s14 = scalar_lea.vmem %s1, 1
  %15 = vst [vmem:[%s14] sm:$0x1] %v12

// kernel: qagnn_forward.8
$region0: #{qagnn_forward.8}
  #allocation0 [shape = 'u32[]', space=smem, size = 0x4, offset = 0x4, fixed_abs, tag = 'smem constant byte address 0x4 - core index']
  #allocation1 [shape = 'u32[144,128]{1,0:T(1,128)}', space=vmem, size = 0x12000, scoped, tag = 'internal scratch']
  %s0 = inlined_call_operand.vmem [shape: bf16[32,8], index: 0, kind: input, shape index: {}]
  %s1 = inlined_call_operand.vmem [shape: bf16[32,16], index: 1, kind: input, shape index: {}]
  %s2 = inlined_call_operand.vmem [shape: bf16[8,128], index: 2, kind: input, shape index: {}]
  %s3 = inlined_call_operand.vmem [shape: bf16[16,128], index: 3, kind: input, shape index: {}]
  %s4 = inlined_call_operand.vmem [shape: f32[1,128], index: 4, kind: input, shape index: {}]
  %s5 = inlined_call_operand.vmem [shape: bf16[32,128], index: 5, kind: output, shape index: {}]
  %s6 = sld [smem:[#allocation0]]
  $region53: #{qagnn_forward.8} parent=0
    _
  %s8 = ssub.s32 1, %s6
  %s9 = scalar_select 0, %s8, %s6
  loop: start=0, step=1, limit=4
  $region2: #{qagnn_forward.8} parent=0 // loop_pre_header
    _
  $region3: #{qagnn_forward.8} parent=0 // loop_header
    %s11 = sphi 0, %s15
    %p12 = scmp.ge.s32.totalorder %s11, 4
    %s21 = sphi 0, %s23
    %s24 = sphi 0, %s21
    %s25 = sphi 0, %s24
    %s41 = sphi 0, %s25
    %s47 = sphi 0, %s49
    %s50 = sphi 0, %s47
    %s51 = sphi 0, %s50
    %s67 = sphi 0, %s51
    %s71 = sphi 0, %s71
    %s73 = sphi 0, %s71
    %s74 = sphi 0, %s73
    %s88 = sphi 0, %s74
    %s92 = sphi 0, %s92
    %s94 = sphi 0, %s92
    %s95 = sphi 0, %s94
    %s109 = sphi 0, %s95
    %s113 = sphi 0, %s113
    %s115 = sphi 0, %s113
    %s116 = sphi 0, %s115
    %s130 = sphi 0, %s116
    %s136 = sphi 0, %s138
    %s139 = sphi 0, %s136
    %s140 = sphi 0, %s139
    %s156 = sphi 0, %s140
  $region4: #{qagnn_forward.8} parent=0 // loop_header_branch
    %14 = sbr.rel (%p12) target = $region8
  $region5: #{qagnn_forward.8} parent=0 // loop_body
    %s16 = ssub.s32 %s11, 1
    %s17 = ssub.s32 %s11, 2
    %s18 = sadd.s32 %s11, 1
    %s19 = ssub.s32 %s11, %s18
    %p20 = scmp.eq.s32.totalorder %s19, 0
    %s22 = sadd.s32 %s21, 1
    %s23 = scalar_select %p20, %s21, %s22
    %p26 = pneg %p20
    %p27 = scmp.eq.s32.totalorder %s11, 1
    %p28 = por %p26, %p27
    %p29 = scmp.ne.s32.totalorder %s21, %s24
    %p30 = scmp.eq.s32.totalorder %s11, 0
    %p31 = por %p29, %p30
    %p32 = scmp.ne.s32.totalorder %s21, %s24
    %p33 = scmp.eq.s32.totalorder %s16, 1
    %p34 = por %p32, %p33
    %p35 = scmp.ne.s32.totalorder %s24, %s25
    %p36 = scmp.eq.s32.totalorder %s16, 0
    %p37 = por %p35, %p36
    %p38 = scmp.ne.s32.totalorder %s24, %s25
    %p39 = scmp.eq.s32.totalorder %s17, 1
    %p40 = por %p38, %p39
    %p42 = scmp.ne.s32.totalorder %s25, %s41
    %p43 = scmp.eq.s32.totalorder %s17, 0
    %p44 = por %p42, %p43
    %s45 = ssub.s32 %s11, %s18
    %p46 = scmp.eq.s32.totalorder %s45, 0
    %s48 = sadd.s32 %s47, 1
    %s49 = scalar_select %p46, %s47, %s48
    %p52 = pneg %p46
    %p53 = scmp.eq.s32.totalorder %s11, 1
    %p54 = por %p52, %p53
    %p55 = scmp.ne.s32.totalorder %s47, %s50
    %p56 = scmp.eq.s32.totalorder %s11, 0
    %p57 = por %p55, %p56
    %p58 = scmp.ne.s32.totalorder %s47, %s50
    %p59 = scmp.eq.s32.totalorder %s16, 1
    %p60 = por %p58, %p59
    %p61 = scmp.ne.s32.totalorder %s50, %s51
    %p62 = scmp.eq.s32.totalorder %s16, 0
    %p63 = por %p61, %p62
    %p64 = scmp.ne.s32.totalorder %s50, %s51
    %p65 = scmp.eq.s32.totalorder %s17, 1
    %p66 = por %p64, %p65
    %p68 = scmp.ne.s32.totalorder %s51, %s67
    %p69 = scmp.eq.s32.totalorder %s17, 0
    %p70 = por %p68, %p69
    %s72 = sadd.s32 %s71, 1
    %p75 = scmp.eq.s32.totalorder %s11, 1
    %p76 = scmp.ne.s32.totalorder %s71, %s73
    %p77 = scmp.eq.s32.totalorder %s11, 0
    %p78 = por %p76, %p77
    %p79 = scmp.ne.s32.totalorder %s71, %s73
    %p80 = scmp.eq.s32.totalorder %s16, 1
    %p81 = por %p79, %p80
    %p82 = scmp.ne.s32.totalorder %s73, %s74
    %p83 = scmp.eq.s32.totalorder %s16, 0
    %p84 = por %p82, %p83
    %p85 = scmp.ne.s32.totalorder %s73, %s74
    %p86 = scmp.eq.s32.totalorder %s17, 1
    %p87 = por %p85, %p86
    %p89 = scmp.ne.s32.totalorder %s74, %s88
    %p90 = scmp.eq.s32.totalorder %s17, 0
    %p91 = por %p89, %p90
    %s93 = sadd.s32 %s92, 1
    %p96 = scmp.eq.s32.totalorder %s11, 1
    %p97 = scmp.ne.s32.totalorder %s92, %s94
    %p98 = scmp.eq.s32.totalorder %s11, 0
    %p99 = por %p97, %p98
    %p100 = scmp.ne.s32.totalorder %s92, %s94
    %p101 = scmp.eq.s32.totalorder %s16, 1
    %p102 = por %p100, %p101
    %p103 = scmp.ne.s32.totalorder %s94, %s95
    %p104 = scmp.eq.s32.totalorder %s16, 0
    %p105 = por %p103, %p104
    %p106 = scmp.ne.s32.totalorder %s94, %s95
    %p107 = scmp.eq.s32.totalorder %s17, 1
    %p108 = por %p106, %p107
    %p110 = scmp.ne.s32.totalorder %s95, %s109
    %p111 = scmp.eq.s32.totalorder %s17, 0
    %p112 = por %p110, %p111
    %s114 = sadd.s32 %s113, 1
    %p117 = scmp.eq.s32.totalorder %s11, 1
    %p118 = scmp.ne.s32.totalorder %s113, %s115
    %p119 = scmp.eq.s32.totalorder %s11, 0
    %p120 = por %p118, %p119
    %p121 = scmp.ne.s32.totalorder %s113, %s115
    %p122 = scmp.eq.s32.totalorder %s16, 1
    %p123 = por %p121, %p122
    %p124 = scmp.ne.s32.totalorder %s115, %s116
    %p125 = scmp.eq.s32.totalorder %s16, 0
    %p126 = por %p124, %p125
    %p127 = scmp.ne.s32.totalorder %s115, %s116
    %p128 = scmp.eq.s32.totalorder %s17, 1
    %p129 = por %p127, %p128
    %p131 = scmp.ne.s32.totalorder %s116, %s130
    %p132 = scmp.eq.s32.totalorder %s17, 0
    %p133 = por %p131, %p132
    %s134 = ssub.s32 %s11, %s18
    %p135 = scmp.eq.s32.totalorder %s134, 0
    %s137 = sadd.s32 %s136, 1
    %s138 = scalar_select %p135, %s136, %s137
    %p141 = pneg %p135
    %p142 = scmp.eq.s32.totalorder %s11, 1
    %p143 = por %p141, %p142
    %p144 = scmp.ne.s32.totalorder %s136, %s139
    %p145 = scmp.eq.s32.totalorder %s11, 0
    %p146 = por %p144, %p145
    %p147 = scmp.ne.s32.totalorder %s136, %s139
    %p148 = scmp.eq.s32.totalorder %s16, 1
    %p149 = por %p147, %p148
    %p150 = scmp.ne.s32.totalorder %s139, %s140
    %p151 = scmp.eq.s32.totalorder %s16, 0
    %p152 = por %p150, %p151
    %p153 = scmp.ne.s32.totalorder %s139, %s140
    %p154 = scmp.eq.s32.totalorder %s17, 1
    %p155 = por %p153, %p154
    %p157 = scmp.ne.s32.totalorder %s140, %s156
    %p158 = scmp.eq.s32.totalorder %s17, 0
    %p159 = por %p157, %p158
    %p160 = scmp.le.s32.totalorder 1, %s11
    %p161 = scmp.lt.s32.totalorder %s11, 3
    %p162 = pnand %p160, %p161
    %p163 = pneg %p162
    // Predicated region
    $region9: #{qagnn_forward.8} parent=5 // pred_check
      _
    $region10: #{qagnn_forward.8} parent=5 // pred_check_branch
      %165 = sbr.rel (%p162) target = $region12
    $region11: #{qagnn_forward.8} parent=5 // pred_region
      %s166 = ssub.s32 %s11, 1
      // Predicated region
      $region13: #{qagnn_forward.8} parent=11 // pred_check
        %p167 = pneg %p84
      $region14: #{qagnn_forward.8} parent=11 // pred_check_branch
        %169 = sbr.rel (%p167) target = $region16
      $region15: #{qagnn_forward.8} parent=11 // pred_region
        _
      $region16: #{qagnn_forward.8} parent=11 // pred_fallthru
        _
      // Predicated region
      $region17: #{qagnn_forward.8} parent=11 // pred_check
        %p170 = pneg %p105
      $region18: #{qagnn_forward.8} parent=11 // pred_check_branch
        %172 = sbr.rel (%p170) target = $region20
      $region19: #{qagnn_forward.8} parent=11 // pred_region
        _
      $region20: #{qagnn_forward.8} parent=11 // pred_fallthru
        _
      // Predicated region
      $region21: #{qagnn_forward.8} parent=11 // pred_check
        %p173 = pneg %p126
      $region22: #{qagnn_forward.8} parent=11 // pred_check_branch
        %175 = sbr.rel (%p173) target = $region24
      $region23: #{qagnn_forward.8} parent=11 // pred_region
        _
      $region24: #{qagnn_forward.8} parent=11 // pred_fallthru
        _
    $region12: #{qagnn_forward.8} parent=5 // pred_fallthru
      _
    %p176 = scmp.lt.s32.totalorder %s11, 2
    // Predicated region
    $region25: #{qagnn_forward.8} parent=5 // pred_check
      %p177 = pneg %p176
    $region26: #{qagnn_forward.8} parent=5 // pred_check_branch
      %179 = sbr.rel (%p177) target = $region28
    $region27: #{qagnn_forward.8} parent=5 // pred_region
      // Predicated region
      $region29: #{qagnn_forward.8} parent=27 // pred_check
        %p180 = pneg %p31
      $region30: #{qagnn_forward.8} parent=27 // pred_check_branch
        %182 = sbr.rel (%p180) target = $region32
      $region31: #{qagnn_forward.8} parent=27 // pred_region
        %s183 = smul.u32 2, %s11
        %p184 = scmp.lt.s32.totalorder %s183, 3
        %s185 = scalar_select %p184, %s183, 3
        %s186 = smul.addr %s185, 4
        %s187 = scalar_lea.vmem %s0, %s186
        %s188 = smul.u32 2, %s11
      $region32: #{qagnn_forward.8} parent=27 // pred_fallthru
        _
      // Predicated region
      $region33: #{qagnn_forward.8} parent=27 // pred_check
        %p189 = pneg %p57
      $region34: #{qagnn_forward.8} parent=27 // pred_check_branch
        %191 = sbr.rel (%p189) target = $region36
      $region35: #{qagnn_forward.8} parent=27 // pred_region
        %s192 = smul.u32 2, %s11
        %p193 = scmp.lt.s32.totalorder %s192, 3
        %s194 = scalar_select %p193, %s192, 3
        %s195 = smul.addr %s194, 4
        %s196 = scalar_lea.vmem %s1, %s195
        %s197 = smul.u32 2, %s11
      $region36: #{qagnn_forward.8} parent=27 // pred_fallthru
        _
    $region28: #{qagnn_forward.8} parent=5 // pred_fallthru
      _
    %p198 = scmp.le.s32.totalorder 1, %s11
    %p199 = scmp.lt.s32.totalorder %s11, 3
    %p200 = pnand %p198, %p199
    %p201 = pneg %p200
    // Predicated region
    $region37: #{qagnn_forward.8} parent=5 // pred_check
      _
    $region38: #{qagnn_forward.8} parent=5 // pred_check_branch
      %203 = sbr.rel (%p200) target = $region40
    $region39: #{qagnn_forward.8} parent=5 // pred_region
      %s204 = ssub.s32 %s11, 1
      %s205 = smul.u32 2, %s16
      %p206 = scmp.lt.s32.totalorder %s205, 3
      %s207 = scalar_select %p206, %s205, 3
      %s208 = smul.addr %s207, 4
      %s209 = scalar_lea.vmem %s0, %s208
      %p210 = pneg %p37
      %p211 = pneg %p34
      %s212 = smul.u32 2, %s16
      %p213 = scmp.lt.s32.totalorder %s212, 3
      %s214 = scalar_select %p213, %s212, 3
      %s215 = smul.addr %s214, 4
      %s216 = scalar_lea.vmem %s1, %s215
      %p217 = pneg %p63
      %p218 = pneg %p60
      %p219 = pneg %p84
      %p220 = pneg %p81
      %p221 = pneg %p105
      %p222 = pneg %p102
      %p223 = pneg %p126
      %p224 = pneg %p123
      %p225 = pneg %p152
      %p226 = pneg %p149
      %s227 = smul.u32 2, %s16
      %p228 = scmp.lt.s32.totalorder %s227, 3
      %s229 = scalar_select %p228, %s227, 3
      %s230 = smul.addr %s229, 4
      %s231 = scalar_lea.vmem %s5, %s230
      %s232 = smul.u32 2, %s16
      %p233 = scmp.lt.s32.totalorder %s232, 3
      %s234 = scalar_select %p233, %s232, 3
      %s235 = smul.addr %s234, 4
      %s236 = scalar_lea.vmem %s0, %s235
      %s237 = smul.u32 2, %s16
      %s238 = smul.u32 2, %s16
      %p239 = scmp.lt.s32.totalorder %s238, 3
      %s240 = scalar_select %p239, %s238, 3
      %s241 = smul.addr %s240, 4
      %s242 = scalar_lea.vmem %s1, %s241
      %s243 = smul.u32 2, %s16
      %s244 = smul.u32 2, %s16
      %p245 = scmp.lt.s32.totalorder %s244, 3
      %s246 = scalar_select %p245, %s244, 3
      %s247 = smul.addr %s246, 4
      %s248 = scalar_lea.vmem %s5, %s247
      %s249 = smul.u32 2, %s16
      %v251 = vld [vmem:[%s236] sm:$0xf]
      %v252 = vld [vmem:[%s236 + $0x4] sm:$0xf]
      %v253 = vld [vmem:[%s2] sm:$0xf]
      %v254 = vld [vmem:[%s242] sm:$0xf]
      %v255 = vld [vmem:[%s242 + $0x4] sm:$0xf]
      %v256 = vld [vmem:[%s3] sm:$0xf]
      %v257 = vld [vmem:[%s3 + $0x4] sm:$0xf]
      %v260 = vunpack.c.l.b16 %v254
      %v261 = vunpack.c.l.b16 %v255
      %v262 = vpack.c.b16 %v261, %v260
      %v265 = vunpack.c.l.b16 %v256
      %v266 = vunpack.c.l.b16 %v257
      %v267 = vpack.c.b16 %v266, %v265
      %vm269 = vcmask 130048
      %v271 = vsel %vm269, %v262, 0
      %273 = vmatprep.subr.bf16.mxu0 0
      %274 = vmatpush1.bf16.msra.mxu0 %v267
      %275 = vmatprep.subr.bf16.mxu0 0
      %276 = vmatpush1.bf16.msra.mxu0 0
      %277 = vmatprep.subr.bf16.mxu0 0
      %278 = vmatpush1.bf16.msra.mxu0 0
      %279 = vmatprep.subr.bf16.mxu0 0
      %280 = vmatpush1.bf16.msra.mxu0 0
      %281 = vmatprep.subr.bf16.mxu0 0
      %282 = vmatpush1.bf16.msra.mxu0 0
      %283 = vmatprep.subr.bf16.mxu0 0
      %284 = vmatpush1.bf16.msra.mxu0 0
      %285 = vmatprep.subr.bf16.mxu0 0
      %286 = vmatpush1.bf16.msra.mxu0 0
      %287 = vmatprep.subr.bf16.mxu0 0
      %288 = vmatpush1.bf16.msra.mxu0 0
      %289 = vmatprep.subr.bf16.mxu0 0
      %290 = vmatpush1.bf16.msra.mxu0 0
      %291 = vmatprep.subr.bf16.mxu0 0
      %292 = vmatpush1.bf16.msra.mxu0 0
      %293 = vmatprep.subr.bf16.mxu0 0
      %294 = vmatpush1.bf16.msra.mxu0 0
      %295 = vmatprep.subr.bf16.mxu0 0
      %296 = vmatpush1.bf16.msra.mxu0 0
      %297 = vmatprep.subr.bf16.mxu0 0
      %298 = vmatpush1.bf16.msra.mxu0 0
      %299 = vmatprep.subr.bf16.mxu0 0
      %300 = vmatpush1.bf16.msra.mxu0 0
      %301 = vmatprep.subr.bf16.mxu0 0
      %302 = vmatpush1.bf16.msra.mxu0 0
      %303 = vmatprep.subr.bf16.mxu0 0
      %304 = vmatpush1.bf16.msra.mxu0 0
      %305 = vmatprep.mubr.bf16.mxu0 0
      %306 = vmatmul.mubr.bf16.gmra.mrb[0].mxu0 %v271
      %v307 = vpop.f32.mrb[0].mxu0
      %v308 = vadd.f32 0.0, %v307
      %v309 = vpop.f32.mrb[0].mxu0
      %v310 = vpop.f32.mrb[0].mxu0
      %v311 = vadd.f32 0.0, %v310
      %v312 = vpop.f32.mrb[0].mxu0
      %313 = vdwg.mxu0
      %v316 = vunpack.c.l.b16 %v251
      %v317 = vunpack.c.l.b16 %v252
      %v318 = vpack.c.b16 %v317, %v316
      %vm319 = vcmask 64512
      %v321 = vsel %vm319, %v318, 0
      %vm323 = vcmask 1043456
      %v325 = vsel %vm323, %v253, 0
      %327 = vmatprep.subr.bf16.mxu0 0
      %328 = vmatpush1.bf16.msra.mxu0 %v325
      %329 = vmatprep.subr.bf16.mxu0 0
      %330 = vmatpush1.bf16.msra.mxu0 0
      %331 = vmatprep.subr.bf16.mxu0 0
      %332 = vmatpush1.bf16.msra.mxu0 0
      %333 = vmatprep.subr.bf16.mxu0 0
      %334 = vmatpush1.bf16.msra.mxu0 0
      %335 = vmatprep.subr.bf16.mxu0 0
      %336 = vmatpush1.bf16.msra.mxu0 0
      %337 = vmatprep.subr.bf16.mxu0 0
      %338 = vmatpush1.bf16.msra.mxu0 0
      %339 = vmatprep.subr.bf16.mxu0 0
      %340 = vmatpush1.bf16.msra.mxu0 0
      %341 = vmatprep.subr.bf16.mxu0 0
      %342 = vmatpush1.bf16.msra.mxu0 0
      %343 = vmatprep.subr.bf16.mxu0 0
      %344 = vmatpush1.bf16.msra.mxu0 0
      %345 = vmatprep.subr.bf16.mxu0 0
      %346 = vmatpush1.bf16.msra.mxu0 0
      %347 = vmatprep.subr.bf16.mxu0 0
      %348 = vmatpush1.bf16.msra.mxu0 0
      %349 = vmatprep.subr.bf16.mxu0 0
      %350 = vmatpush1.bf16.msra.mxu0 0
      %351 = vmatprep.subr.bf16.mxu0 0
      %352 = vmatpush1.bf16.msra.mxu0 0
      %353 = vmatprep.subr.bf16.mxu0 0
      %354 = vmatpush1.bf16.msra.mxu0 0
      %355 = vmatprep.subr.bf16.mxu0 0
      %356 = vmatpush1.bf16.msra.mxu0 0
      %357 = vmatprep.subr.bf16.mxu0 0
      %358 = vmatpush1.bf16.msra.mxu0 0
      %359 = vmatprep.mubr.bf16.mxu0 0
      %360 = vmatmul.mubr.bf16.gmra.mrb[0].mxu0 %v321
      %v361 = vpop.f32.mrb[0].mxu0
      %v362 = vadd.f32 %v308, %v361
      %v363 = vpop.f32.mrb[0].mxu0
      %v364 = vpop.f32.mrb[0].mxu0
      %v365 = vadd.f32 %v311, %v364
      %v366 = vpop.f32.mrb[0].mxu0
      %367 = vdwg.mxu0
      %v368 = vld [vmem:[%s4] sm:$0x1]
      %v370 = vlaneseq
      %v371 = vshrl.u32 %v370, 7
      %v372 = vsub.s32 0, %v371
      %v373 = vrot.slane %v368, %v372
      %v375 = vadd.f32 %v362, %v373
      %v376 = vadd.f32 %v365, %v373
      %v377 = vmul.f32 %v375, 0.5
      %v378 = vmul.f32 %v376, 0.5
      %v379 = vmul.f32 %v375, 0.044715
      %v380 = vmul.f32 %v376, 0.044715
      %v381 = vmul.f32 %v379, %v375
      %v382 = vmul.f32 %v380, %v376
      %v383 = vmul.f32 %v381, %v375
      %v384 = vmul.f32 %v382, %v376
      %v385 = vadd.f32 %v375, %v383
      %v386 = vadd.f32 %v376, %v384
      %v387 = vmul.f32 %v385, 0.7978846
      %v388 = vmul.f32 %v386, 0.7978846
      %v389 = vtanh.pop %v387
      %v390 = vtanh.pop %v388
      %v391 = vadd.f32 %v389, 1.0
      %v392 = vadd.f32 %v390, 1.0
      %v393 = vmul.f32 %v377, %v391
      %v394 = vmul.f32 %v378, %v392
      %v395 = vpack.c.bf16 %v394, %v393
      %v397 = vunpack.c.l.b16 %v395
      %v398 = vunpack.c.h.b16 %v395
      %v399 = vpack.c.b16 %v397, %v397
      %v400 = vpack.c.b16 %v398, %v398
      %403 = vst [vmem:[%s248] sm:$0xf] %v399
      %404 = vst [vmem:[%s248 + $0x4] sm:$0xf] %v400
      %s405 = smul.u32 2, %s16
      %p406 = scmp.lt.s32.totalorder %s405, 3
      %s407 = scalar_select %p406, %s405, 3
      %s408 = smul.addr %s407, 4
      %s409 = scalar_lea.vmem %s5, %s408
      // Predicated region
      $region41: #{qagnn_forward.8} parent=39 // pred_check
        %p410 = pneg %p149
      $region42: #{qagnn_forward.8} parent=39 // pred_check_branch
        %412 = sbr.rel (%p410) target = $region44
      $region43: #{qagnn_forward.8} parent=39 // pred_region
        %s413 = smul.u32 2, %s16
      $region44: #{qagnn_forward.8} parent=39 // pred_fallthru
        _
    $region40: #{qagnn_forward.8} parent=5 // pred_fallthru
      _
    %p414 = scmp.le.s32.totalorder 2, %s11
    // Predicated region
    $region45: #{qagnn_forward.8} parent=5 // pred_check
      %p415 = pneg %p414
    $region46: #{qagnn_forward.8} parent=5 // pred_check_branch
      %417 = sbr.rel (%p415) target = $region48
    $region47: #{qagnn_forward.8} parent=5 // pred_region
      %s418 = ssub.s32 %s11, 2
      // Predicated region
      $region49: #{qagnn_forward.8} parent=47 // pred_check
        %p419 = pneg %p155
      $region50: #{qagnn_forward.8} parent=47 // pred_check_branch
        %421 = sbr.rel (%p419) target = $region52
      $region51: #{qagnn_forward.8} parent=47 // pred_region
        %s422 = smul.u32 2, %s17
        %p423 = scmp.lt.s32.totalorder %s422, 3
        %s424 = scalar_select %p423, %s422, 3
        %s425 = smul.addr %s424, 4
        %s426 = scalar_lea.vmem %s5, %s425
      $region52: #{qagnn_forward.8} parent=47 // pred_fallthru
        _
    $region48: #{qagnn_forward.8} parent=5 // pred_fallthru
      _
  $region6: #{qagnn_forward.8} parent=0 // loop_footer
    %s15 = sadd.s32 1, %s11
  $region7: #{qagnn_forward.8} parent=0 // loop_footer_branch
    %10 = sbr.rel target = $region3
  $region8: #{qagnn_forward.8} parent=0 // loop_exit
    _

// kernel: qagnn_forward.9
$region0: #{qagnn_forward.9}
  #allocation0 [shape = 'u32[]', space=smem, size = 0x4, offset = 0x4, fixed_abs, tag = 'smem constant byte address 0x4 - core index']
  #allocation1 [shape = 'u32[144,128]{1,0:T(1,128)}', space=vmem, size = 0x12000, scoped, tag = 'internal scratch']
  %s0 = inlined_call_operand.vmem [shape: bf16[32,32], index: 0, kind: input, shape index: {}]
  %s1 = inlined_call_operand.vmem [shape: bf16[32,128], index: 1, kind: input, shape index: {}]
  %s2 = inlined_call_operand.vmem [shape: f32[1,128], index: 2, kind: input, shape index: {}]
  %s3 = inlined_call_operand.vmem [shape: bf16[32,128], index: 3, kind: output, shape index: {}]
  %s4 = sld [smem:[#allocation0]]
  $region45: #{qagnn_forward.9} parent=0
    _
  %s6 = ssub.s32 1, %s4
  %s7 = scalar_select 0, %s6, %s4
  loop: start=0, step=1, limit=4
  $region2: #{qagnn_forward.9} parent=0 // loop_pre_header
    _
  $region3: #{qagnn_forward.9} parent=0 // loop_header
    %s9 = sphi 0, %s13
    %p10 = scmp.ge.s32.totalorder %s9, 4
    %s19 = sphi 0, %s21
    %s22 = sphi 0, %s19
    %s23 = sphi 0, %s22
    %s39 = sphi 0, %s23
    %s43 = sphi 0, %s43
    %s45 = sphi 0, %s43
    %s46 = sphi 0, %s45
    %s60 = sphi 0, %s46
    %s64 = sphi 0, %s64
    %s66 = sphi 0, %s64
    %s67 = sphi 0, %s66
    %s81 = sphi 0, %s67
    %s87 = sphi 0, %s89
    %s90 = sphi 0, %s87
    %s91 = sphi 0, %s90
    %s107 = sphi 0, %s91
  $region4: #{qagnn_forward.9} parent=0 // loop_header_branch
    %12 = sbr.rel (%p10) target = $region8
  $region5: #{qagnn_forward.9} parent=0 // loop_body
    %s14 = ssub.s32 %s9, 1
    %s15 = ssub.s32 %s9, 2
    %s16 = sadd.s32 %s9, 1
    %s17 = ssub.s32 %s9, %s16
    %p18 = scmp.eq.s32.totalorder %s17, 0
    %s20 = sadd.s32 %s19, 1
    %s21 = scalar_select %p18, %s19, %s20
    %p24 = pneg %p18
    %p25 = scmp.eq.s32.totalorder %s9, 1
    %p26 = por %p24, %p25
    %p27 = scmp.ne.s32.totalorder %s19, %s22
    %p28 = scmp.eq.s32.totalorder %s9, 0
    %p29 = por %p27, %p28
    %p30 = scmp.ne.s32.totalorder %s19, %s22
    %p31 = scmp.eq.s32.totalorder %s14, 1
    %p32 = por %p30, %p31
    %p33 = scmp.ne.s32.totalorder %s22, %s23
    %p34 = scmp.eq.s32.totalorder %s14, 0
    %p35 = por %p33, %p34
    %p36 = scmp.ne.s32.totalorder %s22, %s23
    %p37 = scmp.eq.s32.totalorder %s15, 1
    %p38 = por %p36, %p37
    %p40 = scmp.ne.s32.totalorder %s23, %s39
    %p41 = scmp.eq.s32.totalorder %s15, 0
    %p42 = por %p40, %p41
    %s44 = sadd.s32 %s43, 1
    %p47 = scmp.eq.s32.totalorder %s9, 1
    %p48 = scmp.ne.s32.totalorder %s43, %s45
    %p49 = scmp.eq.s32.totalorder %s9, 0
    %p50 = por %p48, %p49
    %p51 = scmp.ne.s32.totalorder %s43, %s45
    %p52 = scmp.eq.s32.totalorder %s14, 1
    %p53 = por %p51, %p52
    %p54 = scmp.ne.s32.totalorder %s45, %s46
    %p55 = scmp.eq.s32.totalorder %s14, 0
    %p56 = por %p54, %p55
    %p57 = scmp.ne.s32.totalorder %s45, %s46
    %p58 = scmp.eq.s32.totalorder %s15, 1
    %p59 = por %p57, %p58
    %p61 = scmp.ne.s32.totalorder %s46, %s60
    %p62 = scmp.eq.s32.totalorder %s15, 0
    %p63 = por %p61, %p62
    %s65 = sadd.s32 %s64, 1
    %p68 = scmp.eq.s32.totalorder %s9, 1
    %p69 = scmp.ne.s32.totalorder %s64, %s66
    %p70 = scmp.eq.s32.totalorder %s9, 0
    %p71 = por %p69, %p70
    %p72 = scmp.ne.s32.totalorder %s64, %s66
    %p73 = scmp.eq.s32.totalorder %s14, 1
    %p74 = por %p72, %p73
    %p75 = scmp.ne.s32.totalorder %s66, %s67
    %p76 = scmp.eq.s32.totalorder %s14, 0
    %p77 = por %p75, %p76
    %p78 = scmp.ne.s32.totalorder %s66, %s67
    %p79 = scmp.eq.s32.totalorder %s15, 1
    %p80 = por %p78, %p79
    %p82 = scmp.ne.s32.totalorder %s67, %s81
    %p83 = scmp.eq.s32.totalorder %s15, 0
    %p84 = por %p82, %p83
    %s85 = ssub.s32 %s9, %s16
    %p86 = scmp.eq.s32.totalorder %s85, 0
    %s88 = sadd.s32 %s87, 1
    %s89 = scalar_select %p86, %s87, %s88
    %p92 = pneg %p86
    %p93 = scmp.eq.s32.totalorder %s9, 1
    %p94 = por %p92, %p93
    %p95 = scmp.ne.s32.totalorder %s87, %s90
    %p96 = scmp.eq.s32.totalorder %s9, 0
    %p97 = por %p95, %p96
    %p98 = scmp.ne.s32.totalorder %s87, %s90
    %p99 = scmp.eq.s32.totalorder %s14, 1
    %p100 = por %p98, %p99
    %p101 = scmp.ne.s32.totalorder %s90, %s91
    %p102 = scmp.eq.s32.totalorder %s14, 0
    %p103 = por %p101, %p102
    %p104 = scmp.ne.s32.totalorder %s90, %s91
    %p105 = scmp.eq.s32.totalorder %s15, 1
    %p106 = por %p104, %p105
    %p108 = scmp.ne.s32.totalorder %s91, %s107
    %p109 = scmp.eq.s32.totalorder %s15, 0
    %p110 = por %p108, %p109
    %p111 = scmp.le.s32.totalorder 1, %s9
    %p112 = scmp.lt.s32.totalorder %s9, 3
    %p113 = pnand %p111, %p112
    %p114 = pneg %p113
    // Predicated region
    $region9: #{qagnn_forward.9} parent=5 // pred_check
      _
    $region10: #{qagnn_forward.9} parent=5 // pred_check_branch
      %116 = sbr.rel (%p113) target = $region12
    $region11: #{qagnn_forward.9} parent=5 // pred_region
      %s117 = ssub.s32 %s9, 1
      // Predicated region
      $region13: #{qagnn_forward.9} parent=11 // pred_check
        %p118 = pneg %p56
      $region14: #{qagnn_forward.9} parent=11 // pred_check_branch
        %120 = sbr.rel (%p118) target = $region16
      $region15: #{qagnn_forward.9} parent=11 // pred_region
        _
      $region16: #{qagnn_forward.9} parent=11 // pred_fallthru
        _
      // Predicated region
      $region17: #{qagnn_forward.9} parent=11 // pred_check
        %p121 = pneg %p77
      $region18: #{qagnn_forward.9} parent=11 // pred_check_branch
        %123 = sbr.rel (%p121) target = $region20
      $region19: #{qagnn_forward.9} parent=11 // pred_region
        _
      $region20: #{qagnn_forward.9} parent=11 // pred_fallthru
        _
    $region12: #{qagnn_forward.9} parent=5 // pred_fallthru
      _
    %p124 = scmp.lt.s32.totalorder %s9, 2
    // Predicated region
    $region21: #{qagnn_forward.9} parent=5 // pred_check
      %p125 = pneg %p124
    $region22: #{qagnn_forward.9} parent=5 // pred_check_branch
      %127 = sbr.rel (%p125) target = $region24
    $region23: #{qagnn_forward.9} parent=5 // pred_region
      // Predicated region
      $region25: #{qagnn_forward.9} parent=23 // pred_check
        %p128 = pneg %p29
      $region26: #{qagnn_forward.9} parent=23 // pred_check_branch
        %130 = sbr.rel (%p128) target = $region28
      $region27: #{qagnn_forward.9} parent=23 // pred_region
        %s131 = smul.u32 2, %s9
        %p132 = scmp.lt.s32.totalorder %s131, 3
        %s133 = scalar_select %p132, %s131, 3
        %s134 = smul.addr %s133, 4
        %s135 = scalar_lea.vmem %s0, %s134
        %s136 = smul.u32 2, %s9
      $region28: #{qagnn_forward.9} parent=23 // pred_fallthru
        _
    $region24: #{qagnn_forward.9} parent=5 // pred_fallthru
      _
    %p137 = scmp.le.s32.totalorder 1, %s9
    %p138 = scmp.lt.s32.totalorder %s9, 3
    %p139 = pnand %p137, %p138
    %p140 = pneg %p139
    // Predicated region
    $region29: #{qagnn_forward.9} parent=5 // pred_check
      _
    $region30: #{qagnn_forward.9} parent=5 // pred_check_branch
      %142 = sbr.rel (%p139) target = $region32
    $region31: #{qagnn_forward.9} parent=5 // pred_region
      %s143 = ssub.s32 %s9, 1
      %s144 = smul.u32 2, %s14
      %p145 = scmp.lt.s32.totalorder %s144, 3
      %s146 = scalar_select %p145, %s144, 3
      %s147 = smul.addr %s146, 4
      %s148 = scalar_lea.vmem %s0, %s147
      %p149 = pneg %p35
      %p150 = pneg %p32
      %p151 = pneg %p56
      %p152 = pneg %p53
      %p153 = pneg %p77
      %p154 = pneg %p74
      %p155 = pneg %p103
      %p156 = pneg %p100
      %s157 = smul.u32 2, %s14
      %p158 = scmp.lt.s32.totalorder %s157, 3
      %s159 = scalar_select %p158, %s157, 3
      %s160 = smul.addr %s159, 4
      %s161 = scalar_lea.vmem %s3, %s160
      %s162 = smul.u32 2, %s14
      %p163 = scmp.lt.s32.totalorder %s162, 3
      %s164 = scalar_select %p163, %s162, 3
      %s165 = smul.addr %s164, 4
      %s166 = scalar_lea.vmem %s0, %s165
      %s167 = smul.u32 2, %s14
      %s168 = smul.u32 2, %s14
      %p169 = scmp.lt.s32.totalorder %s168, 3
      %s170 = scalar_select %p169, %s168, 3
      %s171 = smul.addr %s170, 4
      %s172 = scalar_lea.vmem %s3, %s171
      %s173 = smul.u32 2, %s14
      %v175 = vld [vmem:[%s166] sm:$0xf]
      %v176 = vld [vmem:[%s166 + $0x4] sm:$0xf]
      %v177 = vmax.bf16 %v175, 0
      %v178 = vmax.bf16 %v176, 0
      %v179 = vld [vmem:[%s1] sm:$0xf]
      %v180 = vld [vmem:[%s1 + $0x4] sm:$0xf]
      %v181 = vld [vmem:[%s1 + $0x8] sm:$0xf]
      %v182 = vld [vmem:[%s1 + $0xc] sm:$0xf]
      %v183 = vld [vmem:[%s2] sm:$0x1]
      %v185 = vlaneseq
      %v186 = vshrl.u32 %v185, 7
      %v187 = vsub.s32 0, %v186
      %v188 = vrot.slane %v183, %v187
      %v192 = vunpack.c.l.b16 %v177
      %v193 = vunpack.c.l.b16 %v178
      %v194 = vpack.c.b16 %v193, %v192
      %v199 = vunpack.c.l.b16 %v179
      %v200 = vunpack.c.l.b16 %v180
      %v201 = vunpack.c.l.b16 %v181
      %v202 = vunpack.c.l.b16 %v182
      %v203 = vpack.c.b16 %v200, %v199
      %v204 = vpack.c.b16 %v202, %v201
      %vm207 = vcmask 261120
      %v209 = vsel %vm207, %v194, 0
      %211 = vmatprep.subr.bf16.mxu0 0
      %212 = vmatpush1.bf16.msra.mxu0 %v203
      %213 = vmatprep.subr.bf16.mxu0 0
      %214 = vmatpush1.bf16.msra.mxu0 %v204
      %215 = vmatprep.subr.bf16.mxu0 0
      %216 = vmatpush1.bf16.msra.mxu0 0
      %217 = vmatprep.subr.bf16.mxu0 0
      %218 = vmatpush1.bf16.msra.mxu0 0
      %219 = vmatprep.subr.bf16.mxu0 0
      %220 = vmatpush1.bf16.msra.mxu0 0
      %221 = vmatprep.subr.bf16.mxu0 0
      %222 = vmatpush1.bf16.msra.mxu0 0
      %223 = vmatprep.subr.bf16.mxu0 0
      %224 = vmatpush1.bf16.msra.mxu0 0
      %225 = vmatprep.subr.bf16.mxu0 0
      %226 = vmatpush1.bf16.msra.mxu0 0
      %227 = vmatprep.subr.bf16.mxu0 0
      %228 = vmatpush1.bf16.msra.mxu0 0
      %229 = vmatprep.subr.bf16.mxu0 0
      %230 = vmatpush1.bf16.msra.mxu0 0
      %231 = vmatprep.subr.bf16.mxu0 0
      %232 = vmatpush1.bf16.msra.mxu0 0
      %233 = vmatprep.subr.bf16.mxu0 0
      %234 = vmatpush1.bf16.msra.mxu0 0
      %235 = vmatprep.subr.bf16.mxu0 0
      %236 = vmatpush1.bf16.msra.mxu0 0
      %237 = vmatprep.subr.bf16.mxu0 0
      %238 = vmatpush1.bf16.msra.mxu0 0
      %239 = vmatprep.subr.bf16.mxu0 0
      %240 = vmatpush1.bf16.msra.mxu0 0
      %241 = vmatprep.subr.bf16.mxu0 0
      %242 = vmatpush1.bf16.msra.mxu0 0
      %243 = vmatprep.mubr.bf16.mxu0 0
      %244 = vmatmul.mubr.bf16.gmra.mrb[0].mxu0 %v209
      %v245 = vpop.f32.mrb[0].mxu0
      %v246 = vadd.f32 %v188, %v245
      %v247 = vpop.f32.mrb[0].mxu0
      %v248 = vpop.f32.mrb[0].mxu0
      %v249 = vadd.f32 %v188, %v248
      %v250 = vpop.f32.mrb[0].mxu0
      %251 = vdwg.mxu0
      %v252 = vpack.c.bf16 %v249, %v246
      %v254 = vunpack.c.l.b16 %v252
      %v255 = vunpack.c.h.b16 %v252
      %v256 = vpack.c.b16 %v254, %v254
      %v257 = vpack.c.b16 %v255, %v255
      %260 = vst [vmem:[%s172] sm:$0xf] %v256
      %261 = vst [vmem:[%s172 + $0x4] sm:$0xf] %v257
      %s262 = smul.u32 2, %s14
      %p263 = scmp.lt.s32.totalorder %s262, 3
      %s264 = scalar_select %p263, %s262, 3
      %s265 = smul.addr %s264, 4
      %s266 = scalar_lea.vmem %s3, %s265
      // Predicated region
      $region33: #{qagnn_forward.9} parent=31 // pred_check
        %p267 = pneg %p100
      $region34: #{qagnn_forward.9} parent=31 // pred_check_branch
        %269 = sbr.rel (%p267) target = $region36
      $region35: #{qagnn_forward.9} parent=31 // pred_region
        %s270 = smul.u32 2, %s14
      $region36: #{qagnn_forward.9} parent=31 // pred_fallthru
        _
    $region32: #{qagnn_forward.9} parent=5 // pred_fallthru
      _
    %p271 = scmp.le.s32.totalorder 2, %s9
    // Predicated region
    $region37: #{qagnn_forward.9} parent=5 // pred_check
      %p272 = pneg %p271
    $region38: #{qagnn_forward.9} parent=5 // pred_check_branch
      %274 = sbr.rel (%p272) target = $region40
    $region39: #{qagnn_forward.9} parent=5 // pred_region
      %s275 = ssub.s32 %s9, 2
      // Predicated region
      $region41: #{qagnn_forward.9} parent=39 // pred_check
        %p276 = pneg %p106
      $region42: #{qagnn_forward.9} parent=39 // pred_check_branch
        %278 = sbr.rel (%p276) target = $region44
      $region43: #{qagnn_forward.9} parent=39 // pred_region
        %s279 = smul.u32 2, %s15
        %p280 = scmp.lt.s32.totalorder %s279, 3
        %s281 = scalar_select %p280, %s279, 3
        %s282 = smul.addr %s281, 4
        %s283 = scalar_lea.vmem %s3, %s282
      $region44: #{qagnn_forward.9} parent=39 // pred_fallthru
        _
    $region40: #{qagnn_forward.9} parent=5 // pred_fallthru
      _
  $region6: #{qagnn_forward.9} parent=0 // loop_footer
    %s13 = sadd.s32 1, %s9
  $region7: #{qagnn_forward.9} parent=0 // loop_footer_branch
    %8 = sbr.rel target = $region3
  $region8: #{qagnn_forward.9} parent=0 // loop_exit
    _

// kernel: qagnn_forward.10
$region0: #{qagnn_forward.10}
  #allocation0 [shape = 'u32[]', space=smem, size = 0x4, offset = 0x4, fixed_abs, tag = 'smem constant byte address 0x4 - core index']
  #allocation1 [shape = 'u32[144,128]{1,0:T(1,128)}', space=vmem, size = 0x12000, scoped, tag = 'internal scratch']
  %s0 = inlined_call_operand.vmem [shape: bf16[32,128], index: 0, kind: input, shape index: {}]
  %s1 = inlined_call_operand.vmem [shape: bf16[32,128], index: 1, kind: input, shape index: {}]
  %s2 = inlined_call_operand.vmem [shape: bf16[32,128], index: 2, kind: input, shape index: {}]
  %s3 = inlined_call_operand.vmem [shape: bf16[32,128], index: 3, kind: input, shape index: {}]
  %s4 = inlined_call_operand.vmem [shape: bf16[32,128], index: 4, kind: input, shape index: {}]
  %s5 = inlined_call_operand.vmem [shape: bf16[128,128], index: 5, kind: input, shape index: {}]
  %s6 = inlined_call_operand.vmem [shape: bf16[128,128], index: 6, kind: input, shape index: {}]
  %s7 = inlined_call_operand.vmem [shape: bf16[128,128], index: 7, kind: input, shape index: {}]
  %s8 = inlined_call_operand.vmem [shape: bf16[128,128], index: 8, kind: input, shape index: {}]
  %s9 = inlined_call_operand.vmem [shape: bf16[128,128], index: 9, kind: input, shape index: {}]
  %s10 = inlined_call_operand.vmem [shape: bf16[128,128], index: 10, kind: input, shape index: {}]
  %s11 = inlined_call_operand.vmem [shape: bf16[128,128], index: 11, kind: input, shape index: {}]
  %s12 = inlined_call_operand.vmem [shape: bf16[128,128], index: 12, kind: input, shape index: {}]
  %s13 = inlined_call_operand.vmem [shape: f32[1,128], index: 13, kind: input, shape index: {}]
  %s14 = inlined_call_operand.vmem [shape: f32[1,128], index: 14, kind: input, shape index: {}]
  %s15 = inlined_call_operand.vmem [shape: f32[1,128], index: 15, kind: input, shape index: {}]
  %s16 = inlined_call_operand.vmem [shape: f32[128,128], index: 16, kind: input, shape index: {}]
  %s17 = inlined_call_operand.vmem [shape: f32[32,128], index: 17, kind: output, shape index: {}]
  %s18 = sld [smem:[#allocation0]]
  $region101: #{qagnn_forward.10} parent=0
    _
  %s20 = ssub.s32 1, %s18
  %s21 = scalar_select 0, %s20, %s18
  loop: start=0, step=1, limit=4
  $region2: #{qagnn_forward.10} parent=0 // loop_pre_header
    _
  $region3: #{qagnn_forward.10} parent=0 // loop_header
    %s23 = sphi 0, %s27
    %p24 = scmp.ge.s32.totalorder %s23, 4
    %s33 = sphi 0, %s35
    %s36 = sphi 0, %s33
    %s37 = sphi 0, %s36
    %s53 = sphi 0, %s37
    %s59 = sphi 0, %s61
    %s62 = sphi 0, %s59
    %s63 = sphi 0, %s62
    %s79 = sphi 0, %s63
    %s85 = sphi 0, %s87
    %s88 = sphi 0, %s85
    %s89 = sphi 0, %s88
    %s105 = sphi 0, %s89
    %s111 = sphi 0, %s113
    %s114 = sphi 0, %s111
    %s115 = sphi 0, %s114
    %s131 = sphi 0, %s115
    %s137 = sphi 0, %s139
    %s140 = sphi 0, %s137
    %s141 = sphi 0, %s140
    %s157 = sphi 0, %s141
    %s161 = sphi 0, %s161
    %s163 = sphi 0, %s161
    %s164 = sphi 0, %s163
    %s178 = sphi 0, %s164
    %s182 = sphi 0, %s182
    %s184 = sphi 0, %s182
    %s185 = sphi 0, %s184
    %s199 = sphi 0, %s185
    %s203 = sphi 0, %s203
    %s205 = sphi 0, %s203
    %s206 = sphi 0, %s205
    %s220 = sphi 0, %s206
    %s224 = sphi 0, %s224
    %s226 = sphi 0, %s224
    %s227 = sphi 0, %s226
    %s241 = sphi 0, %s227
    %s245 = sphi 0, %s245
    %s247 = sphi 0, %s245
    %s248 = sphi 0, %s247
    %s262 = sphi 0, %s248
    %s266 = sphi 0, %s266
    %s268 = sphi 0, %s266
    %s269 = sphi 0, %s268
    %s283 = sphi 0, %s269
    %s287 = sphi 0, %s287
    %s289 = sphi 0, %s287
    %s290 = sphi 0, %s289
    %s304 = sphi 0, %s290
    %s308 = sphi 0, %s308
    %s310 = sphi 0, %s308
    %s311 = sphi 0, %s310
    %s325 = sphi 0, %s311
    %s329 = sphi 0, %s329
    %s331 = sphi 0, %s329
    %s332 = sphi 0, %s331
    %s346 = sphi 0, %s332
    %s350 = sphi 0, %s350
    %s352 = sphi 0, %s350
    %s353 = sphi 0, %s352
    %s367 = sphi 0, %s353
    %s371 = sphi 0, %s371
    %s373 = sphi 0, %s371
    %s374 = sphi 0, %s373
    %s388 = sphi 0, %s374
    %s392 = sphi 0, %s392
    %s394 = sphi 0, %s392
    %s395 = sphi 0, %s394
    %s409 = sphi 0, %s395
    %s415 = sphi 0, %s417
    %s418 = sphi 0, %s415
    %s419 = sphi 0, %s418
    %s435 = sphi 0, %s419
  $region4: #{qagnn_forward.10} parent=0 // loop_header_branch
    %26 = sbr.rel (%p24) target = $region8
  $region5: #{qagnn_forward.10} parent=0 // loop_body
    %s28 = ssub.s32 %s23, 1
    %s29 = ssub.s32 %s23, 2
    %s30 = sadd.s32 %s23, 1
    %s31 = ssub.s32 %s23, %s30
    %p32 = scmp.eq.s32.totalorder %s31, 0
    %s34 = sadd.s32 %s33, 1
    %s35 = scalar_select %p32, %s33, %s34
    %p38 = pneg %p32
    %p39 = scmp.eq.s32.totalorder %s23, 1
    %p40 = por %p38, %p39
    %p41 = scmp.ne.s32.totalorder %s33, %s36
    %p42 = scmp.eq.s32.totalorder %s23, 0
    %p43 = por %p41, %p42
    %p44 = scmp.ne.s32.totalorder %s33, %s36
    %p45 = scmp.eq.s32.totalorder %s28, 1
    %p46 = por %p44, %p45
    %p47 = scmp.ne.s32.totalorder %s36, %s37
    %p48 = scmp.eq.s32.totalorder %s28, 0
    %p49 = por %p47, %p48
    %p50 = scmp.ne.s32.totalorder %s36, %s37
    %p51 = scmp.eq.s32.totalorder %s29, 1
    %p52 = por %p50, %p51
    %p54 = scmp.ne.s32.totalorder %s37, %s53
    %p55 = scmp.eq.s32.totalorder %s29, 0
    %p56 = por %p54, %p55
    %s57 = ssub.s32 %s23, %s30
    %p58 = scmp.eq.s32.totalorder %s57, 0
    %s60 = sadd.s32 %s59, 1
    %s61 = scalar_select %p58, %s59, %s60
    %p64 = pneg %p58
    %p65 = scmp.eq.s32.totalorder %s23, 1
    %p66 = por %p64, %p65
    %p67 = scmp.ne.s32.totalorder %s59, %s62
    %p68 = scmp.eq.s32.totalorder %s23, 0
    %p69 = por %p67, %p68
    %p70 = scmp.ne.s32.totalorder %s59, %s62
    %p71 = scmp.eq.s32.totalorder %s28, 1
    %p72 = por %p70, %p71
    %p73 = scmp.ne.s32.totalorder %s62, %s63
    %p74 = scmp.eq.s32.totalorder %s28, 0
    %p75 = por %p73, %p74
    %p76 = scmp.ne.s32.totalorder %s62, %s63
    %p77 = scmp.eq.s32.totalorder %s29, 1
    %p78 = por %p76, %p77
    %p80 = scmp.ne.s32.totalorder %s63, %s79
    %p81 = scmp.eq.s32.totalorder %s29, 0
    %p82 = por %p80, %p81
    %s83 = ssub.s32 %s23, %s30
    %p84 = scmp.eq.s32.totalorder %s83, 0
    %s86 = sadd.s32 %s85, 1
    %s87 = scalar_select %p84, %s85, %s86
    %p90 = pneg %p84
    %p91 = scmp.eq.s32.totalorder %s23, 1
    %p92 = por %p90, %p91
    %p93 = scmp.ne.s32.totalorder %s85, %s88
    %p94 = scmp.eq.s32.totalorder %s23, 0
    %p95 = por %p93, %p94
    %p96 = scmp.ne.s32.totalorder %s85, %s88
    %p97 = scmp.eq.s32.totalorder %s28, 1
    %p98 = por %p96, %p97
    %p99 = scmp.ne.s32.totalorder %s88, %s89
    %p100 = scmp.eq.s32.totalorder %s28, 0
    %p101 = por %p99, %p100
    %p102 = scmp.ne.s32.totalorder %s88, %s89
    %p103 = scmp.eq.s32.totalorder %s29, 1
    %p104 = por %p102, %p103
    %p106 = scmp.ne.s32.totalorder %s89, %s105
    %p107 = scmp.eq.s32.totalorder %s29, 0
    %p108 = por %p106, %p107
    %s109 = ssub.s32 %s23, %s30
    %p110 = scmp.eq.s32.totalorder %s109, 0
    %s112 = sadd.s32 %s111, 1
    %s113 = scalar_select %p110, %s111, %s112
    %p116 = pneg %p110
    %p117 = scmp.eq.s32.totalorder %s23, 1
    %p118 = por %p116, %p117
    %p119 = scmp.ne.s32.totalorder %s111, %s114
    %p120 = scmp.eq.s32.totalorder %s23, 0
    %p121 = por %p119, %p120
    %p122 = scmp.ne.s32.totalorder %s111, %s114
    %p123 = scmp.eq.s32.totalorder %s28, 1
    %p124 = por %p122, %p123
    %p125 = scmp.ne.s32.totalorder %s114, %s115
    %p126 = scmp.eq.s32.totalorder %s28, 0
    %p127 = por %p125, %p126
    %p128 = scmp.ne.s32.totalorder %s114, %s115
    %p129 = scmp.eq.s32.totalorder %s29, 1
    %p130 = por %p128, %p129
    %p132 = scmp.ne.s32.totalorder %s115, %s131
    %p133 = scmp.eq.s32.totalorder %s29, 0
    %p134 = por %p132, %p133
    %s135 = ssub.s32 %s23, %s30
    %p136 = scmp.eq.s32.totalorder %s135, 0
    %s138 = sadd.s32 %s137, 1
    %s139 = scalar_select %p136, %s137, %s138
    %p142 = pneg %p136
    %p143 = scmp.eq.s32.totalorder %s23, 1
    %p144 = por %p142, %p143
    %p145 = scmp.ne.s32.totalorder %s137, %s140
    %p146 = scmp.eq.s32.totalorder %s23, 0
    %p147 = por %p145, %p146
    %p148 = scmp.ne.s32.totalorder %s137, %s140
    %p149 = scmp.eq.s32.totalorder %s28, 1
    %p150 = por %p148, %p149
    %p151 = scmp.ne.s32.totalorder %s140, %s141
    %p152 = scmp.eq.s32.totalorder %s28, 0
    %p153 = por %p151, %p152
    %p154 = scmp.ne.s32.totalorder %s140, %s141
    %p155 = scmp.eq.s32.totalorder %s29, 1
    %p156 = por %p154, %p155
    %p158 = scmp.ne.s32.totalorder %s141, %s157
    %p159 = scmp.eq.s32.totalorder %s29, 0
    %p160 = por %p158, %p159
    %s162 = sadd.s32 %s161, 1
    %p165 = scmp.eq.s32.totalorder %s23, 1
    %p166 = scmp.ne.s32.totalorder %s161, %s163
    %p167 = scmp.eq.s32.totalorder %s23, 0
    %p168 = por %p166, %p167
    %p169 = scmp.ne.s32.totalorder %s161, %s163
    %p170 = scmp.eq.s32.totalorder %s28, 1
    %p171 = por %p169, %p170
    %p172 = scmp.ne.s32.totalorder %s163, %s164
    %p173 = scmp.eq.s32.totalorder %s28, 0
    %p174 = por %p172, %p173
    %p175 = scmp.ne.s32.totalorder %s163, %s164
    %p176 = scmp.eq.s32.totalorder %s29, 1
    %p177 = por %p175, %p176
    %p179 = scmp.ne.s32.totalorder %s164, %s178
    %p180 = scmp.eq.s32.totalorder %s29, 0
    %p181 = por %p179, %p180
    %s183 = sadd.s32 %s182, 1
    %p186 = scmp.eq.s32.totalorder %s23, 1
    %p187 = scmp.ne.s32.totalorder %s182, %s184
    %p188 = scmp.eq.s32.totalorder %s23, 0
    %p189 = por %p187, %p188
    %p190 = scmp.ne.s32.totalorder %s182, %s184
    %p191 = scmp.eq.s32.totalorder %s28, 1
    %p192 = por %p190, %p191
    %p193 = scmp.ne.s32.totalorder %s184, %s185
    %p194 = scmp.eq.s32.totalorder %s28, 0
    %p195 = por %p193, %p194
    %p196 = scmp.ne.s32.totalorder %s184, %s185
    %p197 = scmp.eq.s32.totalorder %s29, 1
    %p198 = por %p196, %p197
    %p200 = scmp.ne.s32.totalorder %s185, %s199
    %p201 = scmp.eq.s32.totalorder %s29, 0
    %p202 = por %p200, %p201
    %s204 = sadd.s32 %s203, 1
    %p207 = scmp.eq.s32.totalorder %s23, 1
    %p208 = scmp.ne.s32.totalorder %s203, %s205
    %p209 = scmp.eq.s32.totalorder %s23, 0
    %p210 = por %p208, %p209
    %p211 = scmp.ne.s32.totalorder %s203, %s205
    %p212 = scmp.eq.s32.totalorder %s28, 1
    %p213 = por %p211, %p212
    %p214 = scmp.ne.s32.totalorder %s205, %s206
    %p215 = scmp.eq.s32.totalorder %s28, 0
    %p216 = por %p214, %p215
    %p217 = scmp.ne.s32.totalorder %s205, %s206
    %p218 = scmp.eq.s32.totalorder %s29, 1
    %p219 = por %p217, %p218
    %p221 = scmp.ne.s32.totalorder %s206, %s220
    %p222 = scmp.eq.s32.totalorder %s29, 0
    %p223 = por %p221, %p222
    %s225 = sadd.s32 %s224, 1
    %p228 = scmp.eq.s32.totalorder %s23, 1
    %p229 = scmp.ne.s32.totalorder %s224, %s226
    %p230 = scmp.eq.s32.totalorder %s23, 0
    %p231 = por %p229, %p230
    %p232 = scmp.ne.s32.totalorder %s224, %s226
    %p233 = scmp.eq.s32.totalorder %s28, 1
    %p234 = por %p232, %p233
    %p235 = scmp.ne.s32.totalorder %s226, %s227
    %p236 = scmp.eq.s32.totalorder %s28, 0
    %p237 = por %p235, %p236
    %p238 = scmp.ne.s32.totalorder %s226, %s227
    %p239 = scmp.eq.s32.totalorder %s29, 1
    %p240 = por %p238, %p239
    %p242 = scmp.ne.s32.totalorder %s227, %s241
    %p243 = scmp.eq.s32.totalorder %s29, 0
    %p244 = por %p242, %p243
    %s246 = sadd.s32 %s245, 1
    %p249 = scmp.eq.s32.totalorder %s23, 1
    %p250 = scmp.ne.s32.totalorder %s245, %s247
    %p251 = scmp.eq.s32.totalorder %s23, 0
    %p252 = por %p250, %p251
    %p253 = scmp.ne.s32.totalorder %s245, %s247
    %p254 = scmp.eq.s32.totalorder %s28, 1
    %p255 = por %p253, %p254
    %p256 = scmp.ne.s32.totalorder %s247, %s248
    %p257 = scmp.eq.s32.totalorder %s28, 0
    %p258 = por %p256, %p257
    %p259 = scmp.ne.s32.totalorder %s247, %s248
    %p260 = scmp.eq.s32.totalorder %s29, 1
    %p261 = por %p259, %p260
    %p263 = scmp.ne.s32.totalorder %s248, %s262
    %p264 = scmp.eq.s32.totalorder %s29, 0
    %p265 = por %p263, %p264
    %s267 = sadd.s32 %s266, 1
    %p270 = scmp.eq.s32.totalorder %s23, 1
    %p271 = scmp.ne.s32.totalorder %s266, %s268
    %p272 = scmp.eq.s32.totalorder %s23, 0
    %p273 = por %p271, %p272
    %p274 = scmp.ne.s32.totalorder %s266, %s268
    %p275 = scmp.eq.s32.totalorder %s28, 1
    %p276 = por %p274, %p275
    %p277 = scmp.ne.s32.totalorder %s268, %s269
    %p278 = scmp.eq.s32.totalorder %s28, 0
    %p279 = por %p277, %p278
    %p280 = scmp.ne.s32.totalorder %s268, %s269
    %p281 = scmp.eq.s32.totalorder %s29, 1
    %p282 = por %p280, %p281
    %p284 = scmp.ne.s32.totalorder %s269, %s283
    %p285 = scmp.eq.s32.totalorder %s29, 0
    %p286 = por %p284, %p285
    %s288 = sadd.s32 %s287, 1
    %p291 = scmp.eq.s32.totalorder %s23, 1
    %p292 = scmp.ne.s32.totalorder %s287, %s289
    %p293 = scmp.eq.s32.totalorder %s23, 0
    %p294 = por %p292, %p293
    %p295 = scmp.ne.s32.totalorder %s287, %s289
    %p296 = scmp.eq.s32.totalorder %s28, 1
    %p297 = por %p295, %p296
    %p298 = scmp.ne.s32.totalorder %s289, %s290
    %p299 = scmp.eq.s32.totalorder %s28, 0
    %p300 = por %p298, %p299
    %p301 = scmp.ne.s32.totalorder %s289, %s290
    %p302 = scmp.eq.s32.totalorder %s29, 1
    %p303 = por %p301, %p302
    %p305 = scmp.ne.s32.totalorder %s290, %s304
    %p306 = scmp.eq.s32.totalorder %s29, 0
    %p307 = por %p305, %p306
    %s309 = sadd.s32 %s308, 1
    %p312 = scmp.eq.s32.totalorder %s23, 1
    %p313 = scmp.ne.s32.totalorder %s308, %s310
    %p314 = scmp.eq.s32.totalorder %s23, 0
    %p315 = por %p313, %p314
    %p316 = scmp.ne.s32.totalorder %s308, %s310
    %p317 = scmp.eq.s32.totalorder %s28, 1
    %p318 = por %p316, %p317
    %p319 = scmp.ne.s32.totalorder %s310, %s311
    %p320 = scmp.eq.s32.totalorder %s28, 0
    %p321 = por %p319, %p320
    %p322 = scmp.ne.s32.totalorder %s310, %s311
    %p323 = scmp.eq.s32.totalorder %s29, 1
    %p324 = por %p322, %p323
    %p326 = scmp.ne.s32.totalorder %s311, %s325
    %p327 = scmp.eq.s32.totalorder %s29, 0
    %p328 = por %p326, %p327
    %s330 = sadd.s32 %s329, 1
    %p333 = scmp.eq.s32.totalorder %s23, 1
    %p334 = scmp.ne.s32.totalorder %s329, %s331
    %p335 = scmp.eq.s32.totalorder %s23, 0
    %p336 = por %p334, %p335
    %p337 = scmp.ne.s32.totalorder %s329, %s331
    %p338 = scmp.eq.s32.totalorder %s28, 1
    %p339 = por %p337, %p338
    %p340 = scmp.ne.s32.totalorder %s331, %s332
    %p341 = scmp.eq.s32.totalorder %s28, 0
    %p342 = por %p340, %p341
    %p343 = scmp.ne.s32.totalorder %s331, %s332
    %p344 = scmp.eq.s32.totalorder %s29, 1
    %p345 = por %p343, %p344
    %p347 = scmp.ne.s32.totalorder %s332, %s346
    %p348 = scmp.eq.s32.totalorder %s29, 0
    %p349 = por %p347, %p348
    %s351 = sadd.s32 %s350, 1
    %p354 = scmp.eq.s32.totalorder %s23, 1
    %p355 = scmp.ne.s32.totalorder %s350, %s352
    %p356 = scmp.eq.s32.totalorder %s23, 0
    %p357 = por %p355, %p356
    %p358 = scmp.ne.s32.totalorder %s350, %s352
    %p359 = scmp.eq.s32.totalorder %s28, 1
    %p360 = por %p358, %p359
    %p361 = scmp.ne.s32.totalorder %s352, %s353
    %p362 = scmp.eq.s32.totalorder %s28, 0
    %p363 = por %p361, %p362
    %p364 = scmp.ne.s32.totalorder %s352, %s353
    %p365 = scmp.eq.s32.totalorder %s29, 1
    %p366 = por %p364, %p365
    %p368 = scmp.ne.s32.totalorder %s353, %s367
    %p369 = scmp.eq.s32.totalorder %s29, 0
    %p370 = por %p368, %p369
    %s372 = sadd.s32 %s371, 1
    %p375 = scmp.eq.s32.totalorder %s23, 1
    %p376 = scmp.ne.s32.totalorder %s371, %s373
    %p377 = scmp.eq.s32.totalorder %s23, 0
    %p378 = por %p376, %p377
    %p379 = scmp.ne.s32.totalorder %s371, %s373
    %p380 = scmp.eq.s32.totalorder %s28, 1
    %p381 = por %p379, %p380
    %p382 = scmp.ne.s32.totalorder %s373, %s374
    %p383 = scmp.eq.s32.totalorder %s28, 0
    %p384 = por %p382, %p383
    %p385 = scmp.ne.s32.totalorder %s373, %s374
    %p386 = scmp.eq.s32.totalorder %s29, 1
    %p387 = por %p385, %p386
    %p389 = scmp.ne.s32.totalorder %s374, %s388
    %p390 = scmp.eq.s32.totalorder %s29, 0
    %p391 = por %p389, %p390
    %s393 = sadd.s32 %s392, 1
    %p396 = scmp.eq.s32.totalorder %s23, 1
    %p397 = scmp.ne.s32.totalorder %s392, %s394
    %p398 = scmp.eq.s32.totalorder %s23, 0
    %p399 = por %p397, %p398
    %p400 = scmp.ne.s32.totalorder %s392, %s394
    %p401 = scmp.eq.s32.totalorder %s28, 1
    %p402 = por %p400, %p401
    %p403 = scmp.ne.s32.totalorder %s394, %s395
    %p404 = scmp.eq.s32.totalorder %s28, 0
    %p405 = por %p403, %p404
    %p406 = scmp.ne.s32.totalorder %s394, %s395
    %p407 = scmp.eq.s32.totalorder %s29, 1
    %p408 = por %p406, %p407
    %p410 = scmp.ne.s32.totalorder %s395, %s409
    %p411 = scmp.eq.s32.totalorder %s29, 0
    %p412 = por %p410, %p411
    %s413 = ssub.s32 %s23, %s30
    %p414 = scmp.eq.s32.totalorder %s413, 0
    %s416 = sadd.s32 %s415, 1
    %s417 = scalar_select %p414, %s415, %s416
    %p420 = pneg %p414
    %p421 = scmp.eq.s32.totalorder %s23, 1
    %p422 = por %p420, %p421
    %p423 = scmp.ne.s32.totalorder %s415, %s418
    %p424 = scmp.eq.s32.totalorder %s23, 0
    %p425 = por %p423, %p424
    %p426 = scmp.ne.s32.totalorder %s415, %s418
    %p427 = scmp.eq.s32.totalorder %s28, 1
    %p428 = por %p426, %p427
    %p429 = scmp.ne.s32.totalorder %s418, %s419
    %p430 = scmp.eq.s32.totalorder %s28, 0
    %p431 = por %p429, %p430
    %p432 = scmp.ne.s32.totalorder %s418, %s419
    %p433 = scmp.eq.s32.totalorder %s29, 1
    %p434 = por %p432, %p433
    %p436 = scmp.ne.s32.totalorder %s419, %s435
    %p437 = scmp.eq.s32.totalorder %s29, 0
    %p438 = por %p436, %p437
    %p439 = scmp.le.s32.totalorder 1, %s23
    %p440 = scmp.lt.s32.totalorder %s23, 3
    %p441 = pnand %p439, %p440
    %p442 = pneg %p441
    // Predicated region
    $region9: #{qagnn_forward.10} parent=5 // pred_check
      _
    $region10: #{qagnn_forward.10} parent=5 // pred_check_branch
      %444 = sbr.rel (%p441) target = $region12
    $region11: #{qagnn_forward.10} parent=5 // pred_region
      %s445 = ssub.s32 %s23, 1
      // Predicated region
      $region13: #{qagnn_forward.10} parent=11 // pred_check
        %p446 = pneg %p174
      $region14: #{qagnn_forward.10} parent=11 // pred_check_branch
        %448 = sbr.rel (%p446) target = $region16
      $region15: #{qagnn_forward.10} parent=11 // pred_region
        _
      $region16: #{qagnn_forward.10} parent=11 // pred_fallthru
        _
      // Predicated region
      $region17: #{qagnn_forward.10} parent=11 // pred_check
        %p449 = pneg %p195
      $region18: #{qagnn_forward.10} parent=11 // pred_check_branch
        %451 = sbr.rel (%p449) target = $region20
      $region19: #{qagnn_forward.10} parent=11 // pred_region
        _
      $region20: #{qagnn_forward.10} parent=11 // pred_fallthru
        _
      // Predicated region
      $region21: #{qagnn_forward.10} parent=11 // pred_check
        %p452 = pneg %p216
      $region22: #{qagnn_forward.10} parent=11 // pred_check_branch
        %454 = sbr.rel (%p452) target = $region24
      $region23: #{qagnn_forward.10} parent=11 // pred_region
        _
      $region24: #{qagnn_forward.10} parent=11 // pred_fallthru
        _
      // Predicated region
      $region25: #{qagnn_forward.10} parent=11 // pred_check
        %p455 = pneg %p237
      $region26: #{qagnn_forward.10} parent=11 // pred_check_branch
        %457 = sbr.rel (%p455) target = $region28
      $region27: #{qagnn_forward.10} parent=11 // pred_region
        _
      $region28: #{qagnn_forward.10} parent=11 // pred_fallthru
        _
      // Predicated region
      $region29: #{qagnn_forward.10} parent=11 // pred_check
        %p458 = pneg %p258
      $region30: #{qagnn_forward.10} parent=11 // pred_check_branch
        %460 = sbr.rel (%p458) target = $region32
      $region31: #{qagnn_forward.10} parent=11 // pred_region
        _
      $region32: #{qagnn_forward.10} parent=11 // pred_fallthru
        _
      // Predicated region
      $region33: #{qagnn_forward.10} parent=11 // pred_check
        %p461 = pneg %p279
      $region34: #{qagnn_forward.10} parent=11 // pred_check_branch
        %463 = sbr.rel (%p461) target = $region36
      $region35: #{qagnn_forward.10} parent=11 // pred_region
        _
      $region36: #{qagnn_forward.10} parent=11 // pred_fallthru
        _
      // Predicated region
      $region37: #{qagnn_forward.10} parent=11 // pred_check
        %p464 = pneg %p300
      $region38: #{qagnn_forward.10} parent=11 // pred_check_branch
        %466 = sbr.rel (%p464) target = $region40
      $region39: #{qagnn_forward.10} parent=11 // pred_region
        _
      $region40: #{qagnn_forward.10} parent=11 // pred_fallthru
        _
      // Predicated region
      $region41: #{qagnn_forward.10} parent=11 // pred_check
        %p467 = pneg %p321
      $region42: #{qagnn_forward.10} parent=11 // pred_check_branch
        %469 = sbr.rel (%p467) target = $region44
      $region43: #{qagnn_forward.10} parent=11 // pred_region
        _
      $region44: #{qagnn_forward.10} parent=11 // pred_fallthru
        _
      // Predicated region
      $region45: #{qagnn_forward.10} parent=11 // pred_check
        %p470 = pneg %p342
      $region46: #{qagnn_forward.10} parent=11 // pred_check_branch
        %472 = sbr.rel (%p470) target = $region48
      $region47: #{qagnn_forward.10} parent=11 // pred_region
        _
      $region48: #{qagnn_forward.10} parent=11 // pred_fallthru
        _
      // Predicated region
      $region49: #{qagnn_forward.10} parent=11 // pred_check
        %p473 = pneg %p363
      $region50: #{qagnn_forward.10} parent=11 // pred_check_branch
        %475 = sbr.rel (%p473) target = $region52
      $region51: #{qagnn_forward.10} parent=11 // pred_region
        _
      $region52: #{qagnn_forward.10} parent=11 // pred_fallthru
        _
      // Predicated region
      $region53: #{qagnn_forward.10} parent=11 // pred_check
        %p476 = pneg %p384
      $region54: #{qagnn_forward.10} parent=11 // pred_check_branch
        %478 = sbr.rel (%p476) target = $region56
      $region55: #{qagnn_forward.10} parent=11 // pred_region
        _
      $region56: #{qagnn_forward.10} parent=11 // pred_fallthru
        _
      // Predicated region
      $region57: #{qagnn_forward.10} parent=11 // pred_check
        %p479 = pneg %p405
      $region58: #{qagnn_forward.10} parent=11 // pred_check_branch
        %481 = sbr.rel (%p479) target = $region60
      $region59: #{qagnn_forward.10} parent=11 // pred_region
        _
      $region60: #{qagnn_forward.10} parent=11 // pred_fallthru
        _
    $region12: #{qagnn_forward.10} parent=5 // pred_fallthru
      _
    %p482 = scmp.lt.s32.totalorder %s23, 2
    // Predicated region
    $region61: #{qagnn_forward.10} parent=5 // pred_check
      %p483 = pneg %p482
    $region62: #{qagnn_forward.10} parent=5 // pred_check_branch
      %485 = sbr.rel (%p483) target = $region64
    $region63: #{qagnn_forward.10} parent=5 // pred_region
      // Predicated region
      $region65: #{qagnn_forward.10} parent=63 // pred_check
        %p486 = pneg %p43
      $region66: #{qagnn_forward.10} parent=63 // pred_check_branch
        %488 = sbr.rel (%p486) target = $region68
      $region67: #{qagnn_forward.10} parent=63 // pred_region
        %s489 = smul.u32 2, %s23
        %p490 = scmp.lt.s32.totalorder %s489, 3
        %s491 = scalar_select %p490, %s489, 3
        %s492 = smul.addr %s491, 4
        %s493 = scalar_lea.vmem %s0, %s492
        %s494 = smul.u32 2, %s23
      $region68: #{qagnn_forward.10} parent=63 // pred_fallthru
        _
      // Predicated region
      $region69: #{qagnn_forward.10} parent=63 // pred_check
        %p495 = pneg %p69
      $region70: #{qagnn_forward.10} parent=63 // pred_check_branch
        %497 = sbr.rel (%p495) target = $region72
      $region71: #{qagnn_forward.10} parent=63 // pred_region
        %s498 = smul.u32 2, %s23
        %p499 = scmp.lt.s32.totalorder %s498, 3
        %s500 = scalar_select %p499, %s498, 3
        %s501 = smul.addr %s500, 4
        %s502 = scalar_lea.vmem %s1, %s501
        %s503 = smul.u32 2, %s23
      $region72: #{qagnn_forward.10} parent=63 // pred_fallthru
        _
      // Predicated region
      $region73: #{qagnn_forward.10} parent=63 // pred_check
        %p504 = pneg %p95
      $region74: #{qagnn_forward.10} parent=63 // pred_check_branch
        %506 = sbr.rel (%p504) target = $region76
      $region75: #{qagnn_forward.10} parent=63 // pred_region
        %s507 = smul.u32 2, %s23
        %p508 = scmp.lt.s32.totalorder %s507, 3
        %s509 = scalar_select %p508, %s507, 3
        %s510 = smul.addr %s509, 4
        %s511 = scalar_lea.vmem %s2, %s510
        %s512 = smul.u32 2, %s23
      $region76: #{qagnn_forward.10} parent=63 // pred_fallthru
        _
      // Predicated region
      $region77: #{qagnn_forward.10} parent=63 // pred_check
        %p513 = pneg %p121
      $region78: #{qagnn_forward.10} parent=63 // pred_check_branch
        %515 = sbr.rel (%p513) target = $region80
      $region79: #{qagnn_forward.10} parent=63 // pred_region
        %s516 = smul.u32 2, %s23
        %p517 = scmp.lt.s32.totalorder %s516, 3
        %s518 = scalar_select %p517, %s516, 3
        %s519 = smul.addr %s518, 4
        %s520 = scalar_lea.vmem %s3, %s519
        %s521 = smul.u32 2, %s23
      $region80: #{qagnn_forward.10} parent=63 // pred_fallthru
        _
      // Predicated region
      $region81: #{qagnn_forward.10} parent=63 // pred_check
        %p522 = pneg %p147
      $region82: #{qagnn_forward.10} parent=63 // pred_check_branch
        %524 = sbr.rel (%p522) target = $region84
      $region83: #{qagnn_forward.10} parent=63 // pred_region
        %s525 = smul.u32 2, %s23
        %p526 = scmp.lt.s32.totalorder %s525, 3
        %s527 = scalar_select %p526, %s525, 3
        %s528 = smul.addr %s527, 4
        %s529 = scalar_lea.vmem %s4, %s528
        %s530 = smul.u32 2, %s23
      $region84: #{qagnn_forward.10} parent=63 // pred_fallthru
        _
    $region64: #{qagnn_forward.10} parent=5 // pred_fallthru
      _
    %p531 = scmp.le.s32.totalorder 1, %s23
    %p532 = scmp.lt.s32.totalorder %s23, 3
    %p533 = pnand %p531, %p532
    %p534 = pneg %p533
    // Predicated region
    $region85: #{qagnn_forward.10} parent=5 // pred_check
      _
    $region86: #{qagnn_forward.10} parent=5 // pred_check_branch
      %536 = sbr.rel (%p533) target = $region88
    $region87: #{qagnn_forward.10} parent=5 // pred_region
      %s537 = ssub.s32 %s23, 1
      %s538 = smul.u32 2, %s28
      %p539 = scmp.lt.s32.totalorder %s538, 3
      %s540 = scalar_select %p539, %s538, 3
      %s541 = smul.addr %s540, 4
      %s542 = scalar_lea.vmem %s0, %s541
      %p543 = pneg %p49
      %p544 = pneg %p46
      %s545 = smul.u32 2, %s28
      %p546 = scmp.lt.s32.totalorder %s545, 3
      %s547 = scalar_select %p546, %s545, 3
      %s548 = smul.addr %s547, 4
      %s549 = scalar_lea.vmem %s1, %s548
      %p550 = pneg %p75
      %p551 = pneg %p72
      %s552 = smul.u32 2, %s28
      %p553 = scmp.lt.s32.totalorder %s552, 3
      %s554 = scalar_select %p553, %s552, 3
      %s555 = smul.addr %s554, 4
      %s556 = scalar_lea.vmem %s2, %s555
      %p557 = pneg %p101
      %p558 = pneg %p98
      %s559 = smul.u32 2, %s28
      %p560 = scmp.lt.s32.totalorder %s559, 3
      %s561 = scalar_select %p560, %s559, 3
      %s562 = smul.addr %s561, 4
      %s563 = scalar_lea.vmem %s3, %s562
      %p564 = pneg %p127
      %p565 = pneg %p124
      %s566 = smul.u32 2, %s28
      %p567 = scmp.lt.s32.totalorder %s566, 3
      %s568 = scalar_select %p567, %s566, 3
      %s569 = smul.addr %s568, 4
      %s570 = scalar_lea.vmem %s4, %s569
      %p571 = pneg %p153
      %p572 = pneg %p150
      %p573 = pneg %p174
      %p574 = pneg %p171
      %p575 = pneg %p195
      %p576 = pneg %p192
      %p577 = pneg %p216
      %p578 = pneg %p213
      %p579 = pneg %p237
      %p580 = pneg %p234
      %p581 = pneg %p258
      %p582 = pneg %p255
      %p583 = pneg %p279
      %p584 = pneg %p276
      %p585 = pneg %p300
      %p586 = pneg %p297
      %p587 = pneg %p321
      %p588 = pneg %p318
      %p589 = pneg %p342
      %p590 = pneg %p339
      %p591 = pneg %p363
      %p592 = pneg %p360
      %p593 = pneg %p384
      %p594 = pneg %p381
      %p595 = pneg %p405
      %p596 = pneg %p402
      %p597 = pneg %p431
      %p598 = pneg %p428
      %s599 = smul.u32 2, %s28
      %p600 = scmp.lt.s32.totalorder %s599, 3
      %s601 = scalar_select %p600, %s599, 3
      %s602 = smul.addr %s601, 8
      %s603 = scalar_lea.vmem %s17, %s602
      %s604 = smul.u32 2, %s28
      %p605 = scmp.lt.s32.totalorder %s604, 3
      %s606 = scalar_select %p605, %s604, 3
      %s607 = smul.addr %s606, 4
      %s608 = scalar_lea.vmem %s0, %s607
      %s609 = smul.u32 2, %s28
      %s610 = smul.u32 2, %s28
      %p611 = scmp.lt.s32.totalorder %s610, 3
      %s612 = scalar_select %p611, %s610, 3
      %s613 = smul.addr %s612, 4
      %s614 = scalar_lea.vmem %s1, %s613
      %s615 = smul.u32 2, %s28
      %s616 = smul.u32 2, %s28
      %p617 = scmp.lt.s32.totalorder %s616, 3
      %s618 = scalar_select %p617, %s616, 3
      %s619 = smul.addr %s618, 4
      %s620 = scalar_lea.vmem %s2, %s619
      %s621 = smul.u32 2, %s28
      %s622 = smul.u32 2, %s28
      %p623 = scmp.lt.s32.totalorder %s622, 3
      %s624 = scalar_select %p623, %s622, 3
      %s625 = smul.addr %s624, 4
      %s626 = scalar_lea.vmem %s3, %s625
      %s627 = smul.u32 2, %s28
      %s628 = smul.u32 2, %s28
      %p629 = scmp.lt.s32.totalorder %s628, 3
      %s630 = scalar_select %p629, %s628, 3
      %s631 = smul.addr %s630, 4
      %s632 = scalar_lea.vmem %s4, %s631
      %s633 = smul.u32 2, %s28
      %s634 = smul.u32 2, %s28
      %p635 = scmp.lt.s32.totalorder %s634, 3
      %s636 = scalar_select %p635, %s634, 3
      %s637 = smul.addr %s636, 8
      %s638 = scalar_lea.vmem %s17, %s637
      %s639 = smul.u32 2, %s28
      %v641 = vld [vmem:[%s608] sm:$0xf]
      %v642 = vld [vmem:[%s608 + $0x4] sm:$0xf]
      %v643 = vld [vmem:[%s614] sm:$0xf]
      %v644 = vld [vmem:[%s614 + $0x4] sm:$0xf]
      %v645 = vld [vmem:[%s620] sm:$0xf]
      %v646 = vld [vmem:[%s620 + $0x4] sm:$0xf]
      %v647 = vld [vmem:[%s626] sm:$0xf]
      %v648 = vld [vmem:[%s626 + $0x4] sm:$0xf]
      %v649 = vld [vmem:[%s632] sm:$0xf]
      %v650 = vld [vmem:[%s632 + $0x4] sm:$0xf]
      %v651 = vld [vmem:[%s5] sm:$0xf]
      %v652 = vld [vmem:[%s5 + $0x4] sm:$0xf]
      %v653 = vld [vmem:[%s5 + $0x8] sm:$0xf]
      %v654 = vld [vmem:[%s5 + $0xc] sm:$0xf]
      %v655 = vld [vmem:[%s5 + $0x10] sm:$0xf]
      %v656 = vld [vmem:[%s5 + $0x14] sm:$0xf]
      %v657 = vld [vmem:[%s5 + $0x18] sm:$0xf]
      %v658 = vld [vmem:[%s5 + $0x1c] sm:$0xf]
      %v659 = vld [vmem:[%s5 + $0x20] sm:$0xf]
      %v660 = vld [vmem:[%s5 + $0x24] sm:$0xf]
      %v661 = vld [vmem:[%s5 + $0x28] sm:$0xf]
      %v662 = vld [vmem:[%s5 + $0x2c] sm:$0xf]
      %v663 = vld [vmem:[%s5 + $0x30] sm:$0xf]
      %v664 = vld [vmem:[%s5 + $0x34] sm:$0xf]
      %v665 = vld [vmem:[%s5 + $0x38] sm:$0xf]
      %v666 = vld [vmem:[%s5 + $0x3c] sm:$0xf]
      %v667 = vld [vmem:[%s6] sm:$0xf]
      %v668 = vld [vmem:[%s6 + $0x4] sm:$0xf]
      %v669 = vld [vmem:[%s6 + $0x8] sm:$0xf]
      %v670 = vld [vmem:[%s6 + $0xc] sm:$0xf]
      %v671 = vld [vmem:[%s6 + $0x10] sm:$0xf]
      %v672 = vld [vmem:[%s6 + $0x14] sm:$0xf]
      %v673 = vld [vmem:[%s6 + $0x18] sm:$0xf]
      %v674 = vld [vmem:[%s6 + $0x1c] sm:$0xf]
      %v675 = vld [vmem:[%s6 + $0x20] sm:$0xf]
      %v676 = vld [vmem:[%s6 + $0x24] sm:$0xf]
      %v677 = vld [vmem:[%s6 + $0x28] sm:$0xf]
      %v678 = vld [vmem:[%s6 + $0x2c] sm:$0xf]
      %v679 = vld [vmem:[%s6 + $0x30] sm:$0xf]
      %v680 = vld [vmem:[%s6 + $0x34] sm:$0xf]
      %v681 = vld [vmem:[%s6 + $0x38] sm:$0xf]
      %v682 = vld [vmem:[%s6 + $0x3c] sm:$0xf]
      %v685 = vunpack.c.l.b16 %v643
      %v686 = vunpack.c.l.b16 %v644
      %v687 = vpack.c.b16 %v686, %v685
      %v705 = vunpack.c.l.b16 %v667
      %v706 = vunpack.c.l.b16 %v668
      %v707 = vunpack.c.l.b16 %v669
      %v708 = vunpack.c.l.b16 %v670
      %v709 = vunpack.c.l.b16 %v671
      %v710 = vunpack.c.l.b16 %v672
      %v711 = vunpack.c.l.b16 %v673
      %v712 = vunpack.c.l.b16 %v674
      %v713 = vunpack.c.l.b16 %v675
      %v714 = vunpack.c.l.b16 %v676
      %v715 = vunpack.c.l.b16 %v677
      %v716 = vunpack.c.l.b16 %v678
      %v717 = vunpack.c.l.b16 %v679
      %v718 = vunpack.c.l.b16 %v680
      %v719 = vunpack.c.l.b16 %v681
      %v720 = vunpack.c.l.b16 %v682
      %v721 = vpack.c.b16 %v706, %v705
      %v722 = vpack.c.b16 %v708, %v707
      %v723 = vpack.c.b16 %v710, %v709
      %v724 = vpack.c.b16 %v712, %v711
      %v725 = vpack.c.b16 %v714, %v713
      %v726 = vpack.c.b16 %v716, %v715
      %v727 = vpack.c.b16 %v718, %v717
      %v728 = vpack.c.b16 %v720, %v719
      %737 = vmatprep.subr.bf16.mxu0 0
      %738 = vmatpush1.bf16.msra.mxu0 %v721
      %739 = vmatprep.subr.bf16.mxu0 0
      %740 = vmatpush1.bf16.msra.mxu0 %v722
      %741 = vmatprep.subr.bf16.mxu0 0
      %742 = vmatpush1.bf16.msra.mxu0 %v723
      %743 = vmatprep.subr.bf16.mxu0 0
      %744 = vmatpush1.bf16.msra.mxu0 %v724
      %745 = vmatprep.subr.bf16.mxu0 0
      %746 = vmatpush1.bf16.msra.mxu0 %v725
      %747 = vmatprep.subr.bf16.mxu0 0
      %748 = vmatpush1.bf16.msra.mxu0 %v726
      %749 = vmatprep.subr.bf16.mxu0 0
      %750 = vmatpush1.bf16.msra.mxu0 %v727
      %751 = vmatprep.subr.bf16.mxu0 0
      %752 = vmatpush1.bf16.msra.mxu0 %v728
      %753 = vmatprep.subr.bf16.mxu0 0
      %754 = vmatpush1.bf16.msra.mxu0 0
      %755 = vmatprep.subr.bf16.mxu0 0
      %756 = vmatpush1.bf16.msra.mxu0 0
      %757 = vmatprep.subr.bf16.mxu0 0
      %758 = vmatpush1.bf16.msra.mxu0 0
      %759 = vmatprep.subr.bf16.mxu0 0
      %760 = vmatpush1.bf16.msra.mxu0 0
      %761 = vmatprep.subr.bf16.mxu0 0
      %762 = vmatpush1.bf16.msra.mxu0 0
      %763 = vmatprep.subr.bf16.mxu0 0
      %764 = vmatpush1.bf16.msra.mxu0 0
      %765 = vmatprep.subr.bf16.mxu0 0
      %766 = vmatpush1.bf16.msra.mxu0 0
      %767 = vmatprep.subr.bf16.mxu0 0
      %768 = vmatpush1.bf16.msra.mxu0 0
      %769 = vmatprep.mubr.bf16.mxu0 0
      %770 = vmatmul.mubr.bf16.gmra.mrb[0].mxu0 %v687
      %v771 = vpop.f32.mrb[0].mxu0
      %v772 = vadd.f32 0.0, %v771
      %v773 = vpop.f32.mrb[0].mxu0
      %v774 = vpop.f32.mrb[0].mxu0
      %v775 = vadd.f32 0.0, %v774
      %v776 = vpop.f32.mrb[0].mxu0
      %777 = vdwg.mxu0
      %v780 = vunpack.c.l.b16 %v641
      %v781 = vunpack.c.l.b16 %v642
      %v782 = vpack.c.b16 %v781, %v780
      %v800 = vunpack.c.l.b16 %v651
      %v801 = vunpack.c.l.b16 %v652
      %v802 = vunpack.c.l.b16 %v653
      %v803 = vunpack.c.l.b16 %v654
      %v804 = vunpack.c.l.b16 %v655
      %v805 = vunpack.c.l.b16 %v656
      %v806 = vunpack.c.l.b16 %v657
      %v807 = vunpack.c.l.b16 %v658
      %v808 = vunpack.c.l.b16 %v659
      %v809 = vunpack.c.l.b16 %v660
      %v810 = vunpack.c.l.b16 %v661
      %v811 = vunpack.c.l.b16 %v662
      %v812 = vunpack.c.l.b16 %v663
      %v813 = vunpack.c.l.b16 %v664
      %v814 = vunpack.c.l.b16 %v665
      %v815 = vunpack.c.l.b16 %v666
      %v816 = vpack.c.b16 %v801, %v800
      %v817 = vpack.c.b16 %v803, %v802
      %v818 = vpack.c.b16 %v805, %v804
      %v819 = vpack.c.b16 %v807, %v806
      %v820 = vpack.c.b16 %v809, %v808
      %v821 = vpack.c.b16 %v811, %v810
      %v822 = vpack.c.b16 %v813, %v812
      %v823 = vpack.c.b16 %v815, %v814
      %832 = vmatprep.subr.bf16.mxu0 0
      %833 = vmatpush1.bf16.msra.mxu0 %v816
      %834 = vmatprep.subr.bf16.mxu0 0
      %835 = vmatpush1.bf16.msra.mxu0 %v817
      %836 = vmatprep.subr.bf16.mxu0 0
      %837 = vmatpush1.bf16.msra.mxu0 %v818
      %838 = vmatprep.subr.bf16.mxu0 0
      %839 = vmatpush1.bf16.msra.mxu0 %v819
      %840 = vmatprep.subr.bf16.mxu0 0
      %841 = vmatpush1.bf16.msra.mxu0 %v820
      %842 = vmatprep.subr.bf16.mxu0 0
      %843 = vmatpush1.bf16.msra.mxu0 %v821
      %844 = vmatprep.subr.bf16.mxu0 0
      %845 = vmatpush1.bf16.msra.mxu0 %v822
      %846 = vmatprep.subr.bf16.mxu0 0
      %847 = vmatpush1.bf16.msra.mxu0 %v823
      %848 = vmatprep.subr.bf16.mxu0 0
      %849 = vmatpush1.bf16.msra.mxu0 0
      %850 = vmatprep.subr.bf16.mxu0 0
      %851 = vmatpush1.bf16.msra.mxu0 0
      %852 = vmatprep.subr.bf16.mxu0 0
      %853 = vmatpush1.bf16.msra.mxu0 0
      %854 = vmatprep.subr.bf16.mxu0 0
      %855 = vmatpush1.bf16.msra.mxu0 0
      %856 = vmatprep.subr.bf16.mxu0 0
      %857 = vmatpush1.bf16.msra.mxu0 0
      %858 = vmatprep.subr.bf16.mxu0 0
      %859 = vmatpush1.bf16.msra.mxu0 0
      %860 = vmatprep.subr.bf16.mxu0 0
      %861 = vmatpush1.bf16.msra.mxu0 0
      %862 = vmatprep.subr.bf16.mxu0 0
      %863 = vmatpush1.bf16.msra.mxu0 0
      %864 = vmatprep.mubr.bf16.mxu0 0
      %865 = vmatmul.mubr.bf16.gmra.mrb[0].mxu0 %v782
      %v866 = vpop.f32.mrb[0].mxu0
      %v867 = vadd.f32 %v772, %v866
      %v868 = vpop.f32.mrb[0].mxu0
      %v869 = vpop.f32.mrb[0].mxu0
      %v870 = vadd.f32 %v775, %v869
      %v871 = vpop.f32.mrb[0].mxu0
      %872 = vdwg.mxu0
      %v873 = vld [vmem:[%s7] sm:$0xf]
      %v874 = vld [vmem:[%s7 + $0x4] sm:$0xf]
      %v875 = vld [vmem:[%s7 + $0x8] sm:$0xf]
      %v876 = vld [vmem:[%s7 + $0xc] sm:$0xf]
      %v877 = vld [vmem:[%s7 + $0x10] sm:$0xf]
      %v878 = vld [vmem:[%s7 + $0x14] sm:$0xf]
      %v879 = vld [vmem:[%s7 + $0x18] sm:$0xf]
      %v880 = vld [vmem:[%s7 + $0x1c] sm:$0xf]
      %v881 = vld [vmem:[%s7 + $0x20] sm:$0xf]
      %v882 = vld [vmem:[%s7 + $0x24] sm:$0xf]
      %v883 = vld [vmem:[%s7 + $0x28] sm:$0xf]
      %v884 = vld [vmem:[%s7 + $0x2c] sm:$0xf]
      %v885 = vld [vmem:[%s7 + $0x30] sm:$0xf]
      %v886 = vld [vmem:[%s7 + $0x34] sm:$0xf]
      %v887 = vld [vmem:[%s7 + $0x38] sm:$0xf]
      %v888 = vld [vmem:[%s7 + $0x3c] sm:$0xf]
      %v891 = vunpack.c.l.b16 %v649
      %v892 = vunpack.c.l.b16 %v650
      %v893 = vpack.c.b16 %v892, %v891
      %v911 = vunpack.c.l.b16 %v873
      %v912 = vunpack.c.l.b16 %v874
      %v913 = vunpack.c.l.b16 %v875
      %v914 = vunpack.c.l.b16 %v876
      %v915 = vunpack.c.l.b16 %v877
      %v916 = vunpack.c.l.b16 %v878
      %v917 = vunpack.c.l.b16 %v879
      %v918 = vunpack.c.l.b16 %v880
      %v919 = vunpack.c.l.b16 %v881
      %v920 = vunpack.c.l.b16 %v882
      %v921 = vunpack.c.l.b16 %v883
      %v922 = vunpack.c.l.b16 %v884
      %v923 = vunpack.c.l.b16 %v885
      %v924 = vunpack.c.l.b16 %v886
      %v925 = vunpack.c.l.b16 %v887
      %v926 = vunpack.c.l.b16 %v888
      %v927 = vpack.c.b16 %v912, %v911
      %v928 = vpack.c.b16 %v914, %v913
      %v929 = vpack.c.b16 %v916, %v915
      %v930 = vpack.c.b16 %v918, %v917
      %v931 = vpack.c.b16 %v920, %v919
      %v932 = vpack.c.b16 %v922, %v921
      %v933 = vpack.c.b16 %v924, %v923
      %v934 = vpack.c.b16 %v926, %v925
      %943 = vmatprep.subr.bf16.mxu0 0
      %944 = vmatpush1.bf16.msra.mxu0 %v927
      %945 = vmatprep.subr.bf16.mxu0 0
      %946 = vmatpush1.bf16.msra.mxu0 %v928
      %947 = vmatprep.subr.bf16.mxu0 0
      %948 = vmatpush1.bf16.msra.mxu0 %v929
      %949 = vmatprep.subr.bf16.mxu0 0
      %950 = vmatpush1.bf16.msra.mxu0 %v930
      %951 = vmatprep.subr.bf16.mxu0 0
      %952 = vmatpush1.bf16.msra.mxu0 %v931
      %953 = vmatprep.subr.bf16.mxu0 0
      %954 = vmatpush1.bf16.msra.mxu0 %v932
      %955 = vmatprep.subr.bf16.mxu0 0
      %956 = vmatpush1.bf16.msra.mxu0 %v933
      %957 = vmatprep.subr.bf16.mxu0 0
      %958 = vmatpush1.bf16.msra.mxu0 %v934
      %959 = vmatprep.subr.bf16.mxu0 0
      %960 = vmatpush1.bf16.msra.mxu0 0
      %961 = vmatprep.subr.bf16.mxu0 0
      %962 = vmatpush1.bf16.msra.mxu0 0
      %963 = vmatprep.subr.bf16.mxu0 0
      %964 = vmatpush1.bf16.msra.mxu0 0
      %965 = vmatprep.subr.bf16.mxu0 0
      %966 = vmatpush1.bf16.msra.mxu0 0
      %967 = vmatprep.subr.bf16.mxu0 0
      %968 = vmatpush1.bf16.msra.mxu0 0
      %969 = vmatprep.subr.bf16.mxu0 0
      %970 = vmatpush1.bf16.msra.mxu0 0
      %971 = vmatprep.subr.bf16.mxu0 0
      %972 = vmatpush1.bf16.msra.mxu0 0
      %973 = vmatprep.subr.bf16.mxu0 0
      %974 = vmatpush1.bf16.msra.mxu0 0
      %975 = vmatprep.mubr.bf16.mxu0 0
      %976 = vmatmul.mubr.bf16.gmra.mrb[0].mxu0 %v893
      %v977 = vpop.f32.mrb[0].mxu0
      %v978 = vadd.f32 0.0, %v977
      %v979 = vpop.f32.mrb[0].mxu0
      %v980 = vpop.f32.mrb[0].mxu0
      %v981 = vadd.f32 0.0, %v980
      %v982 = vpop.f32.mrb[0].mxu0
      %983 = vdwg.mxu0
      %v984 = vadd.f32 %v867, %v978
      %v985 = vadd.f32 %v870, %v981
      %v986 = vld [vmem:[%s13] sm:$0x1]
      %v988 = vlaneseq
      %v989 = vshrl.u32 %v988, 7
      %v990 = vsub.s32 0, %v989
      %v991 = vrot.slane %v986, %v990
      %v993 = vadd.f32 %v984, %v991
      %v994 = vadd.f32 %v985, %v991
      %v995 = vld [vmem:[%s8] sm:$0xf]
      %v996 = vld [vmem:[%s8 + $0x4] sm:$0xf]
      %v997 = vld [vmem:[%s8 + $0x8] sm:$0xf]
      %v998 = vld [vmem:[%s8 + $0xc] sm:$0xf]
      %v999 = vld [vmem:[%s8 + $0x10] sm:$0xf]
      %v1000 = vld [vmem:[%s8 + $0x14] sm:$0xf]
      %v1001 = vld [vmem:[%s8 + $0x18] sm:$0xf]
      %v1002 = vld [vmem:[%s8 + $0x1c] sm:$0xf]
      %v1003 = vld [vmem:[%s8 + $0x20] sm:$0xf]
      %v1004 = vld [vmem:[%s8 + $0x24] sm:$0xf]
      %v1005 = vld [vmem:[%s8 + $0x28] sm:$0xf]
      %v1006 = vld [vmem:[%s8 + $0x2c] sm:$0xf]
      %v1007 = vld [vmem:[%s8 + $0x30] sm:$0xf]
      %v1008 = vld [vmem:[%s8 + $0x34] sm:$0xf]
      %v1009 = vld [vmem:[%s8 + $0x38] sm:$0xf]
      %v1010 = vld [vmem:[%s8 + $0x3c] sm:$0xf]
      %v1011 = vld [vmem:[%s9] sm:$0xf]
      %v1012 = vld [vmem:[%s9 + $0x4] sm:$0xf]
      %v1013 = vld [vmem:[%s9 + $0x8] sm:$0xf]
      %v1014 = vld [vmem:[%s9 + $0xc] sm:$0xf]
      %v1015 = vld [vmem:[%s9 + $0x10] sm:$0xf]
      %v1016 = vld [vmem:[%s9 + $0x14] sm:$0xf]
      %v1017 = vld [vmem:[%s9 + $0x18] sm:$0xf]
      %v1018 = vld [vmem:[%s9 + $0x1c] sm:$0xf]
      %v1019 = vld [vmem:[%s9 + $0x20] sm:$0xf]
      %v1020 = vld [vmem:[%s9 + $0x24] sm:$0xf]
      %v1021 = vld [vmem:[%s9 + $0x28] sm:$0xf]
      %v1022 = vld [vmem:[%s9 + $0x2c] sm:$0xf]
      %v1023 = vld [vmem:[%s9 + $0x30] sm:$0xf]
      %v1024 = vld [vmem:[%s9 + $0x34] sm:$0xf]
      %v1025 = vld [vmem:[%s9 + $0x38] sm:$0xf]
      %v1026 = vld [vmem:[%s9 + $0x3c] sm:$0xf]
      %v1029 = vunpack.c.l.b16 %v647
      %v1030 = vunpack.c.l.b16 %v648
      %v1031 = vpack.c.b16 %v1030, %v1029
      %v1049 = vunpack.c.l.b16 %v1011
      %v1050 = vunpack.c.l.b16 %v1012
      %v1051 = vunpack.c.l.b16 %v1013
      %v1052 = vunpack.c.l.b16 %v1014
      %v1053 = vunpack.c.l.b16 %v1015
      %v1054 = vunpack.c.l.b16 %v1016
      %v1055 = vunpack.c.l.b16 %v1017
      %v1056 = vunpack.c.l.b16 %v1018
      %v1057 = vunpack.c.l.b16 %v1019
      %v1058 = vunpack.c.l.b16 %v1020
      %v1059 = vunpack.c.l.b16 %v1021
      %v1060 = vunpack.c.l.b16 %v1022
      %v1061 = vunpack.c.l.b16 %v1023
      %v1062 = vunpack.c.l.b16 %v1024
      %v1063 = vunpack.c.l.b16 %v1025
      %v1064 = vunpack.c.l.b16 %v1026
      %v1065 = vpack.c.b16 %v1050, %v1049
      %v1066 = vpack.c.b16 %v1052, %v1051
      %v1067 = vpack.c.b16 %v1054, %v1053
      %v1068 = vpack.c.b16 %v1056, %v1055
      %v1069 = vpack.c.b16 %v1058, %v1057
      %v1070 = vpack.c.b16 %v1060, %v1059
      %v1071 = vpack.c.b16 %v1062, %v1061
      %v1072 = vpack.c.b16 %v1064, %v1063
      %1081 = vmatprep.subr.bf16.mxu0 0
      %1082 = vmatpush1.bf16.msra.mxu0 %v1065
      %1083 = vmatprep.subr.bf16.mxu0 0
      %1084 = vmatpush1.bf16.msra.mxu0 %v1066
      %1085 = vmatprep.subr.bf16.mxu0 0
      %1086 = vmatpush1.bf16.msra.mxu0 %v1067
      %1087 = vmatprep.subr.bf16.mxu0 0
      %1088 = vmatpush1.bf16.msra.mxu0 %v1068
      %1089 = vmatprep.subr.bf16.mxu0 0
      %1090 = vmatpush1.bf16.msra.mxu0 %v1069
      %1091 = vmatprep.subr.bf16.mxu0 0
      %1092 = vmatpush1.bf16.msra.mxu0 %v1070
      %1093 = vmatprep.subr.bf16.mxu0 0
      %1094 = vmatpush1.bf16.msra.mxu0 %v1071
      %1095 = vmatprep.subr.bf16.mxu0 0
      %1096 = vmatpush1.bf16.msra.mxu0 %v1072
      %1097 = vmatprep.subr.bf16.mxu0 0
      %1098 = vmatpush1.bf16.msra.mxu0 0
      %1099 = vmatprep.subr.bf16.mxu0 0
      %1100 = vmatpush1.bf16.msra.mxu0 0
      %1101 = vmatprep.subr.bf16.mxu0 0
      %1102 = vmatpush1.bf16.msra.mxu0 0
      %1103 = vmatprep.subr.bf16.mxu0 0
      %1104 = vmatpush1.bf16.msra.mxu0 0
      %1105 = vmatprep.subr.bf16.mxu0 0
      %1106 = vmatpush1.bf16.msra.mxu0 0
      %1107 = vmatprep.subr.bf16.mxu0 0
      %1108 = vmatpush1.bf16.msra.mxu0 0
      %1109 = vmatprep.subr.bf16.mxu0 0
      %1110 = vmatpush1.bf16.msra.mxu0 0
      %1111 = vmatprep.subr.bf16.mxu0 0
      %1112 = vmatpush1.bf16.msra.mxu0 0
      %1113 = vmatprep.mubr.bf16.mxu0 0
      %1114 = vmatmul.mubr.bf16.gmra.mrb[0].mxu0 %v1031
      %v1115 = vpop.f32.mrb[0].mxu0
      %v1116 = vadd.f32 0.0, %v1115
      %v1117 = vpop.f32.mrb[0].mxu0
      %v1118 = vpop.f32.mrb[0].mxu0
      %v1119 = vadd.f32 0.0, %v1118
      %v1120 = vpop.f32.mrb[0].mxu0
      %1121 = vdwg.mxu0
      %v1124 = vunpack.c.l.b16 %v645
      %v1125 = vunpack.c.l.b16 %v646
      %v1126 = vpack.c.b16 %v1125, %v1124
      %v1144 = vunpack.c.l.b16 %v995
      %v1145 = vunpack.c.l.b16 %v996
      %v1146 = vunpack.c.l.b16 %v997
      %v1147 = vunpack.c.l.b16 %v998
      %v1148 = vunpack.c.l.b16 %v999
      %v1149 = vunpack.c.l.b16 %v1000
      %v1150 = vunpack.c.l.b16 %v1001
      %v1151 = vunpack.c.l.b16 %v1002
      %v1152 = vunpack.c.l.b16 %v1003
      %v1153 = vunpack.c.l.b16 %v1004
      %v1154 = vunpack.c.l.b16 %v1005
      %v1155 = vunpack.c.l.b16 %v1006
      %v1156 = vunpack.c.l.b16 %v1007
      %v1157 = vunpack.c.l.b16 %v1008
      %v1158 = vunpack.c.l.b16 %v1009
      %v1159 = vunpack.c.l.b16 %v1010
      %v1160 = vpack.c.b16 %v1145, %v1144
      %v1161 = vpack.c.b16 %v1147, %v1146
      %v1162 = vpack.c.b16 %v1149, %v1148
      %v1163 = vpack.c.b16 %v1151, %v1150
      %v1164 = vpack.c.b16 %v1153, %v1152
      %v1165 = vpack.c.b16 %v1155, %v1154
      %v1166 = vpack.c.b16 %v1157, %v1156
      %v1167 = vpack.c.b16 %v1159, %v1158
      %1176 = vmatprep.subr.bf16.mxu0 0
      %1177 = vmatpush1.bf16.msra.mxu0 %v1160
      %1178 = vmatprep.subr.bf16.mxu0 0
      %1179 = vmatpush1.bf16.msra.mxu0 %v1161
      %1180 = vmatprep.subr.bf16.mxu0 0
      %1181 = vmatpush1.bf16.msra.mxu0 %v1162
      %1182 = vmatprep.subr.bf16.mxu0 0
      %1183 = vmatpush1.bf16.msra.mxu0 %v1163
      %1184 = vmatprep.subr.bf16.mxu0 0
      %1185 = vmatpush1.bf16.msra.mxu0 %v1164
      %1186 = vmatprep.subr.bf16.mxu0 0
      %1187 = vmatpush1.bf16.msra.mxu0 %v1165
      %1188 = vmatprep.subr.bf16.mxu0 0
      %1189 = vmatpush1.bf16.msra.mxu0 %v1166
      %1190 = vmatprep.subr.bf16.mxu0 0
      %1191 = vmatpush1.bf16.msra.mxu0 %v1167
      %1192 = vmatprep.subr.bf16.mxu0 0
      %1193 = vmatpush1.bf16.msra.mxu0 0
      %1194 = vmatprep.subr.bf16.mxu0 0
      %1195 = vmatpush1.bf16.msra.mxu0 0
      %1196 = vmatprep.subr.bf16.mxu0 0
      %1197 = vmatpush1.bf16.msra.mxu0 0
      %1198 = vmatprep.subr.bf16.mxu0 0
      %1199 = vmatpush1.bf16.msra.mxu0 0
      %1200 = vmatprep.subr.bf16.mxu0 0
      %1201 = vmatpush1.bf16.msra.mxu0 0
      %1202 = vmatprep.subr.bf16.mxu0 0
      %1203 = vmatpush1.bf16.msra.mxu0 0
      %1204 = vmatprep.subr.bf16.mxu0 0
      %1205 = vmatpush1.bf16.msra.mxu0 0
      %1206 = vmatprep.subr.bf16.mxu0 0
      %1207 = vmatpush1.bf16.msra.mxu0 0
      %1208 = vmatprep.mubr.bf16.mxu0 0
      %1209 = vmatmul.mubr.bf16.gmra.mrb[0].mxu0 %v1126
      %v1210 = vpop.f32.mrb[0].mxu0
      %v1211 = vadd.f32 %v1116, %v1210
      %v1212 = vpop.f32.mrb[0].mxu0
      %v1213 = vpop.f32.mrb[0].mxu0
      %v1214 = vadd.f32 %v1119, %v1213
      %v1215 = vpop.f32.mrb[0].mxu0
      %1216 = vdwg.mxu0
      %v1217 = vld [vmem:[%s10] sm:$0xf]
      %v1218 = vld [vmem:[%s10 + $0x4] sm:$0xf]
      %v1219 = vld [vmem:[%s10 + $0x8] sm:$0xf]
      %v1220 = vld [vmem:[%s10 + $0xc] sm:$0xf]
      %v1221 = vld [vmem:[%s10 + $0x10] sm:$0xf]
      %v1222 = vld [vmem:[%s10 + $0x14] sm:$0xf]
      %v1223 = vld [vmem:[%s10 + $0x18] sm:$0xf]
      %v1224 = vld [vmem:[%s10 + $0x1c] sm:$0xf]
      %v1225 = vld [vmem:[%s10 + $0x20] sm:$0xf]
      %v1226 = vld [vmem:[%s10 + $0x24] sm:$0xf]
      %v1227 = vld [vmem:[%s10 + $0x28] sm:$0xf]
      %v1228 = vld [vmem:[%s10 + $0x2c] sm:$0xf]
      %v1229 = vld [vmem:[%s10 + $0x30] sm:$0xf]
      %v1230 = vld [vmem:[%s10 + $0x34] sm:$0xf]
      %v1231 = vld [vmem:[%s10 + $0x38] sm:$0xf]
      %v1232 = vld [vmem:[%s10 + $0x3c] sm:$0xf]
      %v1249 = vunpack.c.l.b16 %v1217
      %v1250 = vunpack.c.l.b16 %v1218
      %v1251 = vunpack.c.l.b16 %v1219
      %v1252 = vunpack.c.l.b16 %v1220
      %v1253 = vunpack.c.l.b16 %v1221
      %v1254 = vunpack.c.l.b16 %v1222
      %v1255 = vunpack.c.l.b16 %v1223
      %v1256 = vunpack.c.l.b16 %v1224
      %v1257 = vunpack.c.l.b16 %v1225
      %v1258 = vunpack.c.l.b16 %v1226
      %v1259 = vunpack.c.l.b16 %v1227
      %v1260 = vunpack.c.l.b16 %v1228
      %v1261 = vunpack.c.l.b16 %v1229
      %v1262 = vunpack.c.l.b16 %v1230
      %v1263 = vunpack.c.l.b16 %v1231
      %v1264 = vunpack.c.l.b16 %v1232
      %v1265 = vpack.c.b16 %v1250, %v1249
      %v1266 = vpack.c.b16 %v1252, %v1251
      %v1267 = vpack.c.b16 %v1254, %v1253
      %v1268 = vpack.c.b16 %v1256, %v1255
      %v1269 = vpack.c.b16 %v1258, %v1257
      %v1270 = vpack.c.b16 %v1260, %v1259
      %v1271 = vpack.c.b16 %v1262, %v1261
      %v1272 = vpack.c.b16 %v1264, %v1263
      %1281 = vmatprep.subr.bf16.mxu0 0
      %1282 = vmatpush1.bf16.msra.mxu0 %v1265
      %1283 = vmatprep.subr.bf16.mxu0 0
      %1284 = vmatpush1.bf16.msra.mxu0 %v1266
      %1285 = vmatprep.subr.bf16.mxu0 0
      %1286 = vmatpush1.bf16.msra.mxu0 %v1267
      %1287 = vmatprep.subr.bf16.mxu0 0
      %1288 = vmatpush1.bf16.msra.mxu0 %v1268
      %1289 = vmatprep.subr.bf16.mxu0 0
      %1290 = vmatpush1.bf16.msra.mxu0 %v1269
      %1291 = vmatprep.subr.bf16.mxu0 0
      %1292 = vmatpush1.bf16.msra.mxu0 %v1270
      %1293 = vmatprep.subr.bf16.mxu0 0
      %1294 = vmatpush1.bf16.msra.mxu0 %v1271
      %1295 = vmatprep.subr.bf16.mxu0 0
      %1296 = vmatpush1.bf16.msra.mxu0 %v1272
      %1297 = vmatprep.subr.bf16.mxu0 0
      %1298 = vmatpush1.bf16.msra.mxu0 0
      %1299 = vmatprep.subr.bf16.mxu0 0
      %1300 = vmatpush1.bf16.msra.mxu0 0
      %1301 = vmatprep.subr.bf16.mxu0 0
      %1302 = vmatpush1.bf16.msra.mxu0 0
      %1303 = vmatprep.subr.bf16.mxu0 0
      %1304 = vmatpush1.bf16.msra.mxu0 0
      %1305 = vmatprep.subr.bf16.mxu0 0
      %1306 = vmatpush1.bf16.msra.mxu0 0
      %1307 = vmatprep.subr.bf16.mxu0 0
      %1308 = vmatpush1.bf16.msra.mxu0 0
      %1309 = vmatprep.subr.bf16.mxu0 0
      %1310 = vmatpush1.bf16.msra.mxu0 0
      %1311 = vmatprep.subr.bf16.mxu0 0
      %1312 = vmatpush1.bf16.msra.mxu0 0
      %1313 = vmatprep.mubr.bf16.mxu0 0
      %1314 = vmatmul.mubr.bf16.gmra.mrb[0].mxu0 %v893
      %v1315 = vpop.f32.mrb[0].mxu0
      %v1316 = vadd.f32 0.0, %v1315
      %v1317 = vpop.f32.mrb[0].mxu0
      %v1318 = vpop.f32.mrb[0].mxu0
      %v1319 = vadd.f32 0.0, %v1318
      %v1320 = vpop.f32.mrb[0].mxu0
      %1321 = vdwg.mxu0
      %v1322 = vadd.f32 %v1211, %v1316
      %v1323 = vadd.f32 %v1214, %v1319
      %v1324 = vld [vmem:[%s14] sm:$0x1]
      %v1326 = vlaneseq
      %v1327 = vshrl.u32 %v1326, 7
      %v1328 = vsub.s32 0, %v1327
      %v1329 = vrot.slane %v1324, %v1328
      %v1331 = vadd.f32 %v1322, %v1329
      %v1332 = vadd.f32 %v1323, %v1329
      %v1333 = vld [vmem:[%s11] sm:$0xf]
      %v1334 = vld [vmem:[%s11 + $0x4] sm:$0xf]
      %v1335 = vld [vmem:[%s11 + $0x8] sm:$0xf]
      %v1336 = vld [vmem:[%s11 + $0xc] sm:$0xf]
      %v1337 = vld [vmem:[%s11 + $0x10] sm:$0xf]
      %v1338 = vld [vmem:[%s11 + $0x14] sm:$0xf]
      %v1339 = vld [vmem:[%s11 + $0x18] sm:$0xf]
      %v1340 = vld [vmem:[%s11 + $0x1c] sm:$0xf]
      %v1341 = vld [vmem:[%s11 + $0x20] sm:$0xf]
      %v1342 = vld [vmem:[%s11 + $0x24] sm:$0xf]
      %v1343 = vld [vmem:[%s11 + $0x28] sm:$0xf]
      %v1344 = vld [vmem:[%s11 + $0x2c] sm:$0xf]
      %v1345 = vld [vmem:[%s11 + $0x30] sm:$0xf]
      %v1346 = vld [vmem:[%s11 + $0x34] sm:$0xf]
      %v1347 = vld [vmem:[%s11 + $0x38] sm:$0xf]
      %v1348 = vld [vmem:[%s11 + $0x3c] sm:$0xf]
      %v1349 = vld [vmem:[%s12] sm:$0xf]
      %v1350 = vld [vmem:[%s12 + $0x4] sm:$0xf]
      %v1351 = vld [vmem:[%s12 + $0x8] sm:$0xf]
      %v1352 = vld [vmem:[%s12 + $0xc] sm:$0xf]
      %v1353 = vld [vmem:[%s12 + $0x10] sm:$0xf]
      %v1354 = vld [vmem:[%s12 + $0x14] sm:$0xf]
      %v1355 = vld [vmem:[%s12 + $0x18] sm:$0xf]
      %v1356 = vld [vmem:[%s12 + $0x1c] sm:$0xf]
      %v1357 = vld [vmem:[%s12 + $0x20] sm:$0xf]
      %v1358 = vld [vmem:[%s12 + $0x24] sm:$0xf]
      %v1359 = vld [vmem:[%s12 + $0x28] sm:$0xf]
      %v1360 = vld [vmem:[%s12 + $0x2c] sm:$0xf]
      %v1361 = vld [vmem:[%s12 + $0x30] sm:$0xf]
      %v1362 = vld [vmem:[%s12 + $0x34] sm:$0xf]
      %v1363 = vld [vmem:[%s12 + $0x38] sm:$0xf]
      %v1364 = vld [vmem:[%s12 + $0x3c] sm:$0xf]
      %v1381 = vunpack.c.l.b16 %v1349
      %v1382 = vunpack.c.l.b16 %v1350
      %v1383 = vunpack.c.l.b16 %v1351
      %v1384 = vunpack.c.l.b16 %v1352
      %v1385 = vunpack.c.l.b16 %v1353
      %v1386 = vunpack.c.l.b16 %v1354
      %v1387 = vunpack.c.l.b16 %v1355
      %v1388 = vunpack.c.l.b16 %v1356
      %v1389 = vunpack.c.l.b16 %v1357
      %v1390 = vunpack.c.l.b16 %v1358
      %v1391 = vunpack.c.l.b16 %v1359
      %v1392 = vunpack.c.l.b16 %v1360
      %v1393 = vunpack.c.l.b16 %v1361
      %v1394 = vunpack.c.l.b16 %v1362
      %v1395 = vunpack.c.l.b16 %v1363
      %v1396 = vunpack.c.l.b16 %v1364
      %v1397 = vpack.c.b16 %v1382, %v1381
      %v1398 = vpack.c.b16 %v1384, %v1383
      %v1399 = vpack.c.b16 %v1386, %v1385
      %v1400 = vpack.c.b16 %v1388, %v1387
      %v1401 = vpack.c.b16 %v1390, %v1389
      %v1402 = vpack.c.b16 %v1392, %v1391
      %v1403 = vpack.c.b16 %v1394, %v1393
      %v1404 = vpack.c.b16 %v1396, %v1395
      %1413 = vmatprep.subr.bf16.mxu0 0
      %1414 = vmatpush1.bf16.msra.mxu0 %v1397
      %1415 = vmatprep.subr.bf16.mxu0 0
      %1416 = vmatpush1.bf16.msra.mxu0 %v1398
      %1417 = vmatprep.subr.bf16.mxu0 0
      %1418 = vmatpush1.bf16.msra.mxu0 %v1399
      %1419 = vmatprep.subr.bf16.mxu0 0
      %1420 = vmatpush1.bf16.msra.mxu0 %v1400
      %1421 = vmatprep.subr.bf16.mxu0 0
      %1422 = vmatpush1.bf16.msra.mxu0 %v1401
      %1423 = vmatprep.subr.bf16.mxu0 0
      %1424 = vmatpush1.bf16.msra.mxu0 %v1402
      %1425 = vmatprep.subr.bf16.mxu0 0
      %1426 = vmatpush1.bf16.msra.mxu0 %v1403
      %1427 = vmatprep.subr.bf16.mxu0 0
      %1428 = vmatpush1.bf16.msra.mxu0 %v1404
      %1429 = vmatprep.subr.bf16.mxu0 0
      %1430 = vmatpush1.bf16.msra.mxu0 0
      %1431 = vmatprep.subr.bf16.mxu0 0
      %1432 = vmatpush1.bf16.msra.mxu0 0
      %1433 = vmatprep.subr.bf16.mxu0 0
      %1434 = vmatpush1.bf16.msra.mxu0 0
      %1435 = vmatprep.subr.bf16.mxu0 0
      %1436 = vmatpush1.bf16.msra.mxu0 0
      %1437 = vmatprep.subr.bf16.mxu0 0
      %1438 = vmatpush1.bf16.msra.mxu0 0
      %1439 = vmatprep.subr.bf16.mxu0 0
      %1440 = vmatpush1.bf16.msra.mxu0 0
      %1441 = vmatprep.subr.bf16.mxu0 0
      %1442 = vmatpush1.bf16.msra.mxu0 0
      %1443 = vmatprep.subr.bf16.mxu0 0
      %1444 = vmatpush1.bf16.msra.mxu0 0
      %1445 = vmatprep.mubr.bf16.mxu0 0
      %1446 = vmatmul.mubr.bf16.gmra.mrb[0].mxu0 %v1031
      %v1447 = vpop.f32.mrb[0].mxu0
      %v1448 = vadd.f32 0.0, %v1447
      %v1449 = vpop.f32.mrb[0].mxu0
      %v1450 = vpop.f32.mrb[0].mxu0
      %v1451 = vadd.f32 0.0, %v1450
      %v1452 = vpop.f32.mrb[0].mxu0
      %1453 = vdwg.mxu0
      %v1470 = vunpack.c.l.b16 %v1333
      %v1471 = vunpack.c.l.b16 %v1334
      %v1472 = vunpack.c.l.b16 %v1335
      %v1473 = vunpack.c.l.b16 %v1336
      %v1474 = vunpack.c.l.b16 %v1337
      %v1475 = vunpack.c.l.b16 %v1338
      %v1476 = vunpack.c.l.b16 %v1339
      %v1477 = vunpack.c.l.b16 %v1340
      %v1478 = vunpack.c.l.b16 %v1341
      %v1479 = vunpack.c.l.b16 %v1342
      %v1480 = vunpack.c.l.b16 %v1343
      %v1481 = vunpack.c.l.b16 %v1344
      %v1482 = vunpack.c.l.b16 %v1345
      %v1483 = vunpack.c.l.b16 %v1346
      %v1484 = vunpack.c.l.b16 %v1347
      %v1485 = vunpack.c.l.b16 %v1348
      %v1486 = vpack.c.b16 %v1471, %v1470
      %v1487 = vpack.c.b16 %v1473, %v1472
      %v1488 = vpack.c.b16 %v1475, %v1474
      %v1489 = vpack.c.b16 %v1477, %v1476
      %v1490 = vpack.c.b16 %v1479, %v1478
      %v1491 = vpack.c.b16 %v1481, %v1480
      %v1492 = vpack.c.b16 %v1483, %v1482
      %v1493 = vpack.c.b16 %v1485, %v1484
      %1502 = vmatprep.subr.bf16.mxu0 0
      %1503 = vmatpush1.bf16.msra.mxu0 %v1486
      %1504 = vmatprep.subr.bf16.mxu0 0
      %1505 = vmatpush1.bf16.msra.mxu0 %v1487
      %1506 = vmatprep.subr.bf16.mxu0 0
      %1507 = vmatpush1.bf16.msra.mxu0 %v1488
      %1508 = vmatprep.subr.bf16.mxu0 0
      %1509 = vmatpush1.bf16.msra.mxu0 %v1489
      %1510 = vmatprep.subr.bf16.mxu0 0
      %1511 = vmatpush1.bf16.msra.mxu0 %v1490
      %1512 = vmatprep.subr.bf16.mxu0 0
      %1513 = vmatpush1.bf16.msra.mxu0 %v1491
      %1514 = vmatprep.subr.bf16.mxu0 0
      %1515 = vmatpush1.bf16.msra.mxu0 %v1492
      %1516 = vmatprep.subr.bf16.mxu0 0
      %1517 = vmatpush1.bf16.msra.mxu0 %v1493
      %1518 = vmatprep.subr.bf16.mxu0 0
      %1519 = vmatpush1.bf16.msra.mxu0 0
      %1520 = vmatprep.subr.bf16.mxu0 0
      %1521 = vmatpush1.bf16.msra.mxu0 0
      %1522 = vmatprep.subr.bf16.mxu0 0
      %1523 = vmatpush1.bf16.msra.mxu0 0
      %1524 = vmatprep.subr.bf16.mxu0 0
      %1525 = vmatpush1.bf16.msra.mxu0 0
      %1526 = vmatprep.subr.bf16.mxu0 0
      %1527 = vmatpush1.bf16.msra.mxu0 0
      %1528 = vmatprep.subr.bf16.mxu0 0
      %1529 = vmatpush1.bf16.msra.mxu0 0
      %1530 = vmatprep.subr.bf16.mxu0 0
      %1531 = vmatpush1.bf16.msra.mxu0 0
      %1532 = vmatprep.subr.bf16.mxu0 0
      %1533 = vmatpush1.bf16.msra.mxu0 0
      %1534 = vmatprep.mubr.bf16.mxu0 0
      %1535 = vmatmul.mubr.bf16.gmra.mrb[0].mxu0 %v1126
      %v1536 = vpop.f32.mrb[0].mxu0
      %v1537 = vadd.f32 %v1448, %v1536
      %v1538 = vpop.f32.mrb[0].mxu0
      %v1539 = vpop.f32.mrb[0].mxu0
      %v1540 = vadd.f32 %v1451, %v1539
      %v1541 = vpop.f32.mrb[0].mxu0
      %1542 = vdwg.mxu0
      %v1543 = vld [vmem:[%s15] sm:$0x1]
      %v1545 = vlaneseq
      %v1546 = vshrl.u32 %v1545, 7
      %v1547 = vsub.s32 0, %v1546
      %v1548 = vrot.slane %v1543, %v1547
      %v1550 = vadd.f32 %v1537, %v1548
      %v1551 = vadd.f32 %v1540, %v1548
      %v1552 = vmul.f32 %v1550, 0.35355338
      %v1553 = vmul.f32 %v1551, 0.35355338
      %v1554 = vmul.f32 %v993, %v1552
      %v1555 = vmul.f32 %v994, %v1553
      %v1556 = vld [vmem:[%s16] sm:$0xff]
      %v1557 = vld [vmem:[%s16 + $0x8] sm:$0xff]
      %v1558 = vld [vmem:[%s16 + $0x10] sm:$0xff]
      %v1559 = vld [vmem:[%s16 + $0x18] sm:$0xff]
      %v1560 = vld [vmem:[%s16 + $0x20] sm:$0xff]
      %v1561 = vld [vmem:[%s16 + $0x28] sm:$0xff]
      %v1562 = vld [vmem:[%s16 + $0x30] sm:$0xff]
      %v1563 = vld [vmem:[%s16 + $0x38] sm:$0xff]
      %v1564 = vld [vmem:[%s16 + $0x40] sm:$0xff]
      %v1565 = vld [vmem:[%s16 + $0x48] sm:$0xff]
      %v1566 = vld [vmem:[%s16 + $0x50] sm:$0xff]
      %v1567 = vld [vmem:[%s16 + $0x58] sm:$0xff]
      %v1568 = vld [vmem:[%s16 + $0x60] sm:$0xff]
      %v1569 = vld [vmem:[%s16 + $0x68] sm:$0xff]
      %v1570 = vld [vmem:[%s16 + $0x70] sm:$0xff]
      %v1571 = vld [vmem:[%s16 + $0x78] sm:$0xff]
      %1572 = vmatprep.subr.mxu0 0.0
      %1573 = vmatpush1.msra.mxu0 %v1556
      %1574 = vmatprep.subr.mxu0 0.0
      %1575 = vmatpush1.msra.mxu0 %v1557
      %1576 = vmatprep.subr.mxu0 0.0
      %1577 = vmatpush1.msra.mxu0 %v1558
      %1578 = vmatprep.subr.mxu0 0.0
      %1579 = vmatpush1.msra.mxu0 %v1559
      %1580 = vmatprep.subr.mxu0 0.0
      %1581 = vmatpush1.msra.mxu0 %v1560
      %1582 = vmatprep.subr.mxu0 0.0
      %1583 = vmatpush1.msra.mxu0 %v1561
      %1584 = vmatprep.subr.mxu0 0.0
      %1585 = vmatpush1.msra.mxu0 %v1562
      %1586 = vmatprep.subr.mxu0 0.0
      %1587 = vmatpush1.msra.mxu0 %v1563
      %1588 = vmatprep.subr.mxu0 0.0
      %1589 = vmatpush1.msra.mxu0 %v1564
      %1590 = vmatprep.subr.mxu0 0.0
      %1591 = vmatpush1.msra.mxu0 %v1565
      %1592 = vmatprep.subr.mxu0 0.0
      %1593 = vmatpush1.msra.mxu0 %v1566
      %1594 = vmatprep.subr.mxu0 0.0
      %1595 = vmatpush1.msra.mxu0 %v1567
      %1596 = vmatprep.subr.mxu0 0.0
      %1597 = vmatpush1.msra.mxu0 %v1568
      %1598 = vmatprep.subr.mxu0 0.0
      %1599 = vmatpush1.msra.mxu0 %v1569
      %1600 = vmatprep.subr.mxu0 0.0
      %1601 = vmatpush1.msra.mxu0 %v1570
      %1602 = vmatprep.subr.mxu0 0.0
      %1603 = vmatpush1.msra.mxu0 %v1571
      %1604 = vmatprep.subr.mxu0 0.0
      %1605 = vmatpush1.msra.mxu0 0.0
      %1606 = vmatprep.subr.mxu0 0.0
      %1607 = vmatpush1.msra.mxu0 0.0
      %1608 = vmatprep.subr.mxu0 0.0
      %1609 = vmatpush1.msra.mxu0 0.0
      %1610 = vmatprep.subr.mxu0 0.0
      %1611 = vmatpush1.msra.mxu0 0.0
      %1612 = vmatprep.subr.mxu0 0.0
      %1613 = vmatpush1.msra.mxu0 0.0
      %1614 = vmatprep.subr.mxu0 0.0
      %1615 = vmatpush1.msra.mxu0 0.0
      %1616 = vmatprep.subr.mxu0 0.0
      %1617 = vmatpush1.msra.mxu0 0.0
      %1618 = vmatprep.subr.mxu0 0.0
      %1619 = vmatpush1.msra.mxu0 0.0
      %1620 = vmatprep.subr.mxu0 0.0
      %1621 = vmatpush1.msra.mxu0 0.0
      %1622 = vmatprep.subr.mxu0 0.0
      %1623 = vmatpush1.msra.mxu0 0.0
      %1624 = vmatprep.subr.mxu0 0.0
      %1625 = vmatpush1.msra.mxu0 0.0
      %1626 = vmatprep.subr.mxu0 0.0
      %1627 = vmatpush1.msra.mxu0 0.0
      %1628 = vmatprep.subr.mxu0 0.0
      %1629 = vmatpush1.msra.mxu0 0.0
      %1630 = vmatprep.subr.mxu0 0.0
      %1631 = vmatpush1.msra.mxu0 0.0
      %1632 = vmatprep.subr.mxu0 0.0
      %1633 = vmatpush1.msra.mxu0 0.0
      %1634 = vmatprep.subr.mxu0 0.0
      %1635 = vmatpush1.msra.mxu0 0.0
      %1636 = vmatprep.mubr.f32.mxu0 0.0
      %1637 = vmatmul.mubr.f32.gmra.mrb[0].mxu0 %v1554
      %v1638 = vpop.f32.mrb[0].mxu0
      %v1639 = vadd.f32 0.0, %v1638
      %v1640 = vpop.f32.mrb[0].mxu0
      %1641 = vmatprep.mubr.f32.mxu0 0.0
      %1642 = vmatmul.mubr.f32.gmra.mrb[0].mxu0 %v1555
      %v1643 = vpop.f32.mrb[0].mxu0
      %v1644 = vadd.f32 0.0, %v1643
      %v1645 = vpop.f32.mrb[0].mxu0
      %1646 = vdwg.mxu0
      %v1647 = vadd.f32 %v1331, %v1639
      %v1648 = vadd.f32 %v1332, %v1644
      %1649 = vst [vmem:[%s638] sm:$0xff] %v1647
      %1650 = vst [vmem:[%s638 + $0x8] sm:$0xff] %v1648
      %s1651 = smul.u32 2, %s28
      %p1652 = scmp.lt.s32.totalorder %s1651, 3
      %s1653 = scalar_select %p1652, %s1651, 3
      %s1654 = smul.addr %s1653, 8
      %s1655 = scalar_lea.vmem %s17, %s1654
      // Predicated region
      $region89: #{qagnn_forward.10} parent=87 // pred_check
        %p1656 = pneg %p428
      $region90: #{qagnn_forward.10} parent=87 // pred_check_branch
        %1658 = sbr.rel (%p1656) target = $region92
      $region91: #{qagnn_forward.10} parent=87 // pred_region
        %s1659 = smul.u32 2, %s28
      $region92: #{qagnn_forward.10} parent=87 // pred_fallthru
        _
    $region88: #{qagnn_forward.10} parent=5 // pred_fallthru
      _
    %p1660 = scmp.le.s32.totalorder 2, %s23
    // Predicated region
    $region93: #{qagnn_forward.10} parent=5 // pred_check
      %p1661 = pneg %p1660
    $region94: #{qagnn_forward.10} parent=5 // pred_check_branch
      %1663 = sbr.rel (%p1661) target = $region96
    $region95: #{qagnn_forward.10} parent=5 // pred_region
      %s1664 = ssub.s32 %s23, 2
      // Predicated region
      $region97: #{qagnn_forward.10} parent=95 // pred_check
        %p1665 = pneg %p434
      $region98: #{qagnn_forward.10} parent=95 // pred_check_branch
        %1667 = sbr.rel (%p1665) target = $region100
      $region99: #{qagnn_forward.10} parent=95 // pred_region
        %s1668 = smul.u32 2, %s29
        %p1669 = scmp.lt.s32.totalorder %s1668, 3
        %s1670 = scalar_select %p1669, %s1668, 3
        %s1671 = smul.addr %s1670, 8
        %s1672 = scalar_lea.vmem %s17, %s1671
      $region100: #{qagnn_forward.10} parent=95 // pred_fallthru
        _
    $region96: #{qagnn_forward.10} parent=5 // pred_fallthru
      _
  $region6: #{qagnn_forward.10} parent=0 // loop_footer
    %s27 = sadd.s32 1, %s23
  $region7: #{qagnn_forward.10} parent=0 // loop_footer_branch
    %22 = sbr.rel target = $region3
  $region8: #{qagnn_forward.10} parent=0 // loop_exit
    _

// kernel: qagnn_forward.14
$region0: #{qagnn_forward.14}
  #allocation0 [shape = 'u32[]', space=smem, size = 0x4, offset = 0x4, fixed_abs, tag = 'smem constant byte address 0x4 - core index']
  #allocation1 [shape = 'u32[144,128]{1,0:T(1,128)}', space=vmem, size = 0x12000, scoped, tag = 'internal scratch']
  %s0 = inlined_call_operand.vmem [shape: bf16[32,32], index: 0, kind: input, shape index: {}]
  %s1 = inlined_call_operand.vmem [shape: bf16[32,128], index: 1, kind: input, shape index: {}]
  %s2 = inlined_call_operand.vmem [shape: bf16[32,128], index: 2, kind: input, shape index: {}]
  %s3 = inlined_call_operand.vmem [shape: bf16[128,128], index: 3, kind: input, shape index: {}]
  %s4 = inlined_call_operand.vmem [shape: f32[1,128], index: 4, kind: input, shape index: {}]
  %s5 = inlined_call_operand.vmem [shape: f32[32,128], index: 5, kind: output, shape index: {}]
  %s6 = sld [smem:[#allocation0]]
  $region53: #{qagnn_forward.14} parent=0
    _
  %s8 = ssub.s32 1, %s6
  %s9 = scalar_select 0, %s8, %s6
  loop: start=0, step=1, limit=4
  $region2: #{qagnn_forward.14} parent=0 // loop_pre_header
    _
  $region3: #{qagnn_forward.14} parent=0 // loop_header
    %s11 = sphi 0, %s15
    %p12 = scmp.ge.s32.totalorder %s11, 4
    %s21 = sphi 0, %s23
    %s24 = sphi 0, %s21
    %s25 = sphi 0, %s24
    %s41 = sphi 0, %s25
    %s47 = sphi 0, %s49
    %s50 = sphi 0, %s47
    %s51 = sphi 0, %s50
    %s67 = sphi 0, %s51
    %s71 = sphi 0, %s71
    %s73 = sphi 0, %s71
    %s74 = sphi 0, %s73
    %s88 = sphi 0, %s74
    %s92 = sphi 0, %s92
    %s94 = sphi 0, %s92
    %s95 = sphi 0, %s94
    %s109 = sphi 0, %s95
    %s113 = sphi 0, %s113
    %s115 = sphi 0, %s113
    %s116 = sphi 0, %s115
    %s130 = sphi 0, %s116
    %s136 = sphi 0, %s138
    %s139 = sphi 0, %s136
    %s140 = sphi 0, %s139
    %s156 = sphi 0, %s140
  $region4: #{qagnn_forward.14} parent=0 // loop_header_branch
    %14 = sbr.rel (%p12) target = $region8
  $region5: #{qagnn_forward.14} parent=0 // loop_body
    %s16 = ssub.s32 %s11, 1
    %s17 = ssub.s32 %s11, 2
    %s18 = sadd.s32 %s11, 1
    %s19 = ssub.s32 %s11, %s18
    %p20 = scmp.eq.s32.totalorder %s19, 0
    %s22 = sadd.s32 %s21, 1
    %s23 = scalar_select %p20, %s21, %s22
    %p26 = pneg %p20
    %p27 = scmp.eq.s32.totalorder %s11, 1
    %p28 = por %p26, %p27
    %p29 = scmp.ne.s32.totalorder %s21, %s24
    %p30 = scmp.eq.s32.totalorder %s11, 0
    %p31 = por %p29, %p30
    %p32 = scmp.ne.s32.totalorder %s21, %s24
    %p33 = scmp.eq.s32.totalorder %s16, 1
    %p34 = por %p32, %p33
    %p35 = scmp.ne.s32.totalorder %s24, %s25
    %p36 = scmp.eq.s32.totalorder %s16, 0
    %p37 = por %p35, %p36
    %p38 = scmp.ne.s32.totalorder %s24, %s25
    %p39 = scmp.eq.s32.totalorder %s17, 1
    %p40 = por %p38, %p39
    %p42 = scmp.ne.s32.totalorder %s25, %s41
    %p43 = scmp.eq.s32.totalorder %s17, 0
    %p44 = por %p42, %p43
    %s45 = ssub.s32 %s11, %s18
    %p46 = scmp.eq.s32.totalorder %s45, 0
    %s48 = sadd.s32 %s47, 1
    %s49 = scalar_select %p46, %s47, %s48
    %p52 = pneg %p46
    %p53 = scmp.eq.s32.totalorder %s11, 1
    %p54 = por %p52, %p53
    %p55 = scmp.ne.s32.totalorder %s47, %s50
    %p56 = scmp.eq.s32.totalorder %s11, 0
    %p57 = por %p55, %p56
    %p58 = scmp.ne.s32.totalorder %s47, %s50
    %p59 = scmp.eq.s32.totalorder %s16, 1
    %p60 = por %p58, %p59
    %p61 = scmp.ne.s32.totalorder %s50, %s51
    %p62 = scmp.eq.s32.totalorder %s16, 0
    %p63 = por %p61, %p62
    %p64 = scmp.ne.s32.totalorder %s50, %s51
    %p65 = scmp.eq.s32.totalorder %s17, 1
    %p66 = por %p64, %p65
    %p68 = scmp.ne.s32.totalorder %s51, %s67
    %p69 = scmp.eq.s32.totalorder %s17, 0
    %p70 = por %p68, %p69
    %s72 = sadd.s32 %s71, 1
    %p75 = scmp.eq.s32.totalorder %s11, 1
    %p76 = scmp.ne.s32.totalorder %s71, %s73
    %p77 = scmp.eq.s32.totalorder %s11, 0
    %p78 = por %p76, %p77
    %p79 = scmp.ne.s32.totalorder %s71, %s73
    %p80 = scmp.eq.s32.totalorder %s16, 1
    %p81 = por %p79, %p80
    %p82 = scmp.ne.s32.totalorder %s73, %s74
    %p83 = scmp.eq.s32.totalorder %s16, 0
    %p84 = por %p82, %p83
    %p85 = scmp.ne.s32.totalorder %s73, %s74
    %p86 = scmp.eq.s32.totalorder %s17, 1
    %p87 = por %p85, %p86
    %p89 = scmp.ne.s32.totalorder %s74, %s88
    %p90 = scmp.eq.s32.totalorder %s17, 0
    %p91 = por %p89, %p90
    %s93 = sadd.s32 %s92, 1
    %p96 = scmp.eq.s32.totalorder %s11, 1
    %p97 = scmp.ne.s32.totalorder %s92, %s94
    %p98 = scmp.eq.s32.totalorder %s11, 0
    %p99 = por %p97, %p98
    %p100 = scmp.ne.s32.totalorder %s92, %s94
    %p101 = scmp.eq.s32.totalorder %s16, 1
    %p102 = por %p100, %p101
    %p103 = scmp.ne.s32.totalorder %s94, %s95
    %p104 = scmp.eq.s32.totalorder %s16, 0
    %p105 = por %p103, %p104
    %p106 = scmp.ne.s32.totalorder %s94, %s95
    %p107 = scmp.eq.s32.totalorder %s17, 1
    %p108 = por %p106, %p107
    %p110 = scmp.ne.s32.totalorder %s95, %s109
    %p111 = scmp.eq.s32.totalorder %s17, 0
    %p112 = por %p110, %p111
    %s114 = sadd.s32 %s113, 1
    %p117 = scmp.eq.s32.totalorder %s11, 1
    %p118 = scmp.ne.s32.totalorder %s113, %s115
    %p119 = scmp.eq.s32.totalorder %s11, 0
    %p120 = por %p118, %p119
    %p121 = scmp.ne.s32.totalorder %s113, %s115
    %p122 = scmp.eq.s32.totalorder %s16, 1
    %p123 = por %p121, %p122
    %p124 = scmp.ne.s32.totalorder %s115, %s116
    %p125 = scmp.eq.s32.totalorder %s16, 0
    %p126 = por %p124, %p125
    %p127 = scmp.ne.s32.totalorder %s115, %s116
    %p128 = scmp.eq.s32.totalorder %s17, 1
    %p129 = por %p127, %p128
    %p131 = scmp.ne.s32.totalorder %s116, %s130
    %p132 = scmp.eq.s32.totalorder %s17, 0
    %p133 = por %p131, %p132
    %s134 = ssub.s32 %s11, %s18
    %p135 = scmp.eq.s32.totalorder %s134, 0
    %s137 = sadd.s32 %s136, 1
    %s138 = scalar_select %p135, %s136, %s137
    %p141 = pneg %p135
    %p142 = scmp.eq.s32.totalorder %s11, 1
    %p143 = por %p141, %p142
    %p144 = scmp.ne.s32.totalorder %s136, %s139
    %p145 = scmp.eq.s32.totalorder %s11, 0
    %p146 = por %p144, %p145
    %p147 = scmp.ne.s32.totalorder %s136, %s139
    %p148 = scmp.eq.s32.totalorder %s16, 1
    %p149 = por %p147, %p148
    %p150 = scmp.ne.s32.totalorder %s139, %s140
    %p151 = scmp.eq.s32.totalorder %s16, 0
    %p152 = por %p150, %p151
    %p153 = scmp.ne.s32.totalorder %s139, %s140
    %p154 = scmp.eq.s32.totalorder %s17, 1
    %p155 = por %p153, %p154
    %p157 = scmp.ne.s32.totalorder %s140, %s156
    %p158 = scmp.eq.s32.totalorder %s17, 0
    %p159 = por %p157, %p158
    %p160 = scmp.le.s32.totalorder 1, %s11
    %p161 = scmp.lt.s32.totalorder %s11, 3
    %p162 = pnand %p160, %p161
    %p163 = pneg %p162
    // Predicated region
    $region9: #{qagnn_forward.14} parent=5 // pred_check
      _
    $region10: #{qagnn_forward.14} parent=5 // pred_check_branch
      %165 = sbr.rel (%p162) target = $region12
    $region11: #{qagnn_forward.14} parent=5 // pred_region
      %s166 = ssub.s32 %s11, 1
      // Predicated region
      $region13: #{qagnn_forward.14} parent=11 // pred_check
        %p167 = pneg %p84
      $region14: #{qagnn_forward.14} parent=11 // pred_check_branch
        %169 = sbr.rel (%p167) target = $region16
      $region15: #{qagnn_forward.14} parent=11 // pred_region
        _
      $region16: #{qagnn_forward.14} parent=11 // pred_fallthru
        _
      // Predicated region
      $region17: #{qagnn_forward.14} parent=11 // pred_check
        %p170 = pneg %p105
      $region18: #{qagnn_forward.14} parent=11 // pred_check_branch
        %172 = sbr.rel (%p170) target = $region20
      $region19: #{qagnn_forward.14} parent=11 // pred_region
        _
      $region20: #{qagnn_forward.14} parent=11 // pred_fallthru
        _
      // Predicated region
      $region21: #{qagnn_forward.14} parent=11 // pred_check
        %p173 = pneg %p126
      $region22: #{qagnn_forward.14} parent=11 // pred_check_branch
        %175 = sbr.rel (%p173) target = $region24
      $region23: #{qagnn_forward.14} parent=11 // pred_region
        _
      $region24: #{qagnn_forward.14} parent=11 // pred_fallthru
        _
    $region12: #{qagnn_forward.14} parent=5 // pred_fallthru
      _
    %p176 = scmp.lt.s32.totalorder %s11, 2
    // Predicated region
    $region25: #{qagnn_forward.14} parent=5 // pred_check
      %p177 = pneg %p176
    $region26: #{qagnn_forward.14} parent=5 // pred_check_branch
      %179 = sbr.rel (%p177) target = $region28
    $region27: #{qagnn_forward.14} parent=5 // pred_region
      // Predicated region
      $region29: #{qagnn_forward.14} parent=27 // pred_check
        %p180 = pneg %p31
      $region30: #{qagnn_forward.14} parent=27 // pred_check_branch
        %182 = sbr.rel (%p180) target = $region32
      $region31: #{qagnn_forward.14} parent=27 // pred_region
        %s183 = smul.u32 2, %s11
        %p184 = scmp.lt.s32.totalorder %s183, 3
        %s185 = scalar_select %p184, %s183, 3
        %s186 = smul.addr %s185, 4
        %s187 = scalar_lea.vmem %s0, %s186
        %s188 = smul.u32 2, %s11
      $region32: #{qagnn_forward.14} parent=27 // pred_fallthru
        _
      // Predicated region
      $region33: #{qagnn_forward.14} parent=27 // pred_check
        %p189 = pneg %p57
      $region34: #{qagnn_forward.14} parent=27 // pred_check_branch
        %191 = sbr.rel (%p189) target = $region36
      $region35: #{qagnn_forward.14} parent=27 // pred_region
        %s192 = smul.u32 2, %s11
        %p193 = scmp.lt.s32.totalorder %s192, 3
        %s194 = scalar_select %p193, %s192, 3
        %s195 = smul.addr %s194, 4
        %s196 = scalar_lea.vmem %s1, %s195
        %s197 = smul.u32 2, %s11
      $region36: #{qagnn_forward.14} parent=27 // pred_fallthru
        _
    $region28: #{qagnn_forward.14} parent=5 // pred_fallthru
      _
    %p198 = scmp.le.s32.totalorder 1, %s11
    %p199 = scmp.lt.s32.totalorder %s11, 3
    %p200 = pnand %p198, %p199
    %p201 = pneg %p200
    // Predicated region
    $region37: #{qagnn_forward.14} parent=5 // pred_check
      _
    $region38: #{qagnn_forward.14} parent=5 // pred_check_branch
      %203 = sbr.rel (%p200) target = $region40
    $region39: #{qagnn_forward.14} parent=5 // pred_region
      %s204 = ssub.s32 %s11, 1
      %s205 = smul.u32 2, %s16
      %p206 = scmp.lt.s32.totalorder %s205, 3
      %s207 = scalar_select %p206, %s205, 3
      %s208 = smul.addr %s207, 4
      %s209 = scalar_lea.vmem %s0, %s208
      %p210 = pneg %p37
      %p211 = pneg %p34
      %s212 = smul.u32 2, %s16
      %p213 = scmp.lt.s32.totalorder %s212, 3
      %s214 = scalar_select %p213, %s212, 3
      %s215 = smul.addr %s214, 4
      %s216 = scalar_lea.vmem %s1, %s215
      %p217 = pneg %p63
      %p218 = pneg %p60
      %p219 = pneg %p84
      %p220 = pneg %p81
      %p221 = pneg %p105
      %p222 = pneg %p102
      %p223 = pneg %p126
      %p224 = pneg %p123
      %p225 = pneg %p152
      %p226 = pneg %p149
      %s227 = smul.u32 2, %s16
      %p228 = scmp.lt.s32.totalorder %s227, 3
      %s229 = scalar_select %p228, %s227, 3
      %s230 = smul.addr %s229, 8
      %s231 = scalar_lea.vmem %s5, %s230
      %s232 = smul.u32 2, %s16
      %p233 = scmp.lt.s32.totalorder %s232, 3
      %s234 = scalar_select %p233, %s232, 3
      %s235 = smul.addr %s234, 4
      %s236 = scalar_lea.vmem %s0, %s235
      %s237 = smul.u32 2, %s16
      %s238 = smul.u32 2, %s16
      %p239 = scmp.lt.s32.totalorder %s238, 3
      %s240 = scalar_select %p239, %s238, 3
      %s241 = smul.addr %s240, 4
      %s242 = scalar_lea.vmem %s1, %s241
      %s243 = smul.u32 2, %s16
      %s244 = smul.u32 2, %s16
      %p245 = scmp.lt.s32.totalorder %s244, 3
      %s246 = scalar_select %p245, %s244, 3
      %s247 = smul.addr %s246, 8
      %s248 = scalar_lea.vmem %s5, %s247
      %s249 = smul.u32 2, %s16
      %v251 = vld [vmem:[%s236] sm:$0xf]
      %v252 = vld [vmem:[%s236 + $0x4] sm:$0xf]
      %v253 = vld [vmem:[%s2] sm:$0xf]
      %v254 = vld [vmem:[%s2 + $0x4] sm:$0xf]
      %v255 = vld [vmem:[%s2 + $0x8] sm:$0xf]
      %v256 = vld [vmem:[%s2 + $0xc] sm:$0xf]
      %v257 = vld [vmem:[%s242] sm:$0xf]
      %v258 = vld [vmem:[%s242 + $0x4] sm:$0xf]
      %v259 = vld [vmem:[%s3] sm:$0xf]
      %v260 = vld [vmem:[%s3 + $0x4] sm:$0xf]
      %v261 = vld [vmem:[%s3 + $0x8] sm:$0xf]
      %v262 = vld [vmem:[%s3 + $0xc] sm:$0xf]
      %v263 = vld [vmem:[%s3 + $0x10] sm:$0xf]
      %v264 = vld [vmem:[%s3 + $0x14] sm:$0xf]
      %v265 = vld [vmem:[%s3 + $0x18] sm:$0xf]
      %v266 = vld [vmem:[%s3 + $0x1c] sm:$0xf]
      %v267 = vld [vmem:[%s3 + $0x20] sm:$0xf]
      %v268 = vld [vmem:[%s3 + $0x24] sm:$0xf]
      %v269 = vld [vmem:[%s3 + $0x28] sm:$0xf]
      %v270 = vld [vmem:[%s3 + $0x2c] sm:$0xf]
      %v271 = vld [vmem:[%s3 + $0x30] sm:$0xf]
      %v272 = vld [vmem:[%s3 + $0x34] sm:$0xf]
      %v273 = vld [vmem:[%s3 + $0x38] sm:$0xf]
      %v274 = vld [vmem:[%s3 + $0x3c] sm:$0xf]
      %v277 = vunpack.c.l.b16 %v257
      %v278 = vunpack.c.l.b16 %v258
      %v279 = vpack.c.b16 %v278, %v277
      %v297 = vunpack.c.l.b16 %v259
      %v298 = vunpack.c.l.b16 %v260
      %v299 = vunpack.c.l.b16 %v261
      %v300 = vunpack.c.l.b16 %v262
      %v301 = vunpack.c.l.b16 %v263
      %v302 = vunpack.c.l.b16 %v264
      %v303 = vunpack.c.l.b16 %v265
      %v304 = vunpack.c.l.b16 %v266
      %v305 = vunpack.c.l.b16 %v267
      %v306 = vunpack.c.l.b16 %v268
      %v307 = vunpack.c.l.b16 %v269
      %v308 = vunpack.c.l.b16 %v270
      %v309 = vunpack.c.l.b16 %v271
      %v310 = vunpack.c.l.b16 %v272
      %v311 = vunpack.c.l.b16 %v273
      %v312 = vunpack.c.l.b16 %v274
      %v313 = vpack.c.b16 %v298, %v297
      %v314 = vpack.c.b16 %v300, %v299
      %v315 = vpack.c.b16 %v302, %v301
      %v316 = vpack.c.b16 %v304, %v303
      %v317 = vpack.c.b16 %v306, %v305
      %v318 = vpack.c.b16 %v308, %v307
      %v319 = vpack.c.b16 %v310, %v309
      %v320 = vpack.c.b16 %v312, %v311
      %329 = vmatprep.subr.bf16.mxu0 0
      %330 = vmatpush1.bf16.msra.mxu0 %v313
      %331 = vmatprep.subr.bf16.mxu0 0
      %332 = vmatpush1.bf16.msra.mxu0 %v314
      %333 = vmatprep.subr.bf16.mxu0 0
      %334 = vmatpush1.bf16.msra.mxu0 %v315
      %335 = vmatprep.subr.bf16.mxu0 0
      %336 = vmatpush1.bf16.msra.mxu0 %v316
      %337 = vmatprep.subr.bf16.mxu0 0
      %338 = vmatpush1.bf16.msra.mxu0 %v317
      %339 = vmatprep.subr.bf16.mxu0 0
      %340 = vmatpush1.bf16.msra.mxu0 %v318
      %341 = vmatprep.subr.bf16.mxu0 0
      %342 = vmatpush1.bf16.msra.mxu0 %v319
      %343 = vmatprep.subr.bf16.mxu0 0
      %344 = vmatpush1.bf16.msra.mxu0 %v320
      %345 = vmatprep.subr.bf16.mxu0 0
      %346 = vmatpush1.bf16.msra.mxu0 0
      %347 = vmatprep.subr.bf16.mxu0 0
      %348 = vmatpush1.bf16.msra.mxu0 0
      %349 = vmatprep.subr.bf16.mxu0 0
      %350 = vmatpush1.bf16.msra.mxu0 0
      %351 = vmatprep.subr.bf16.mxu0 0
      %352 = vmatpush1.bf16.msra.mxu0 0
      %353 = vmatprep.subr.bf16.mxu0 0
      %354 = vmatpush1.bf16.msra.mxu0 0
      %355 = vmatprep.subr.bf16.mxu0 0
      %356 = vmatpush1.bf16.msra.mxu0 0
      %357 = vmatprep.subr.bf16.mxu0 0
      %358 = vmatpush1.bf16.msra.mxu0 0
      %359 = vmatprep.subr.bf16.mxu0 0
      %360 = vmatpush1.bf16.msra.mxu0 0
      %361 = vmatprep.mubr.bf16.mxu0 0
      %362 = vmatmul.mubr.bf16.gmra.mrb[0].mxu0 %v279
      %v363 = vpop.f32.mrb[0].mxu0
      %v364 = vadd.f32 0.0, %v363
      %v365 = vpop.f32.mrb[0].mxu0
      %v366 = vpop.f32.mrb[0].mxu0
      %v367 = vadd.f32 0.0, %v366
      %v368 = vpop.f32.mrb[0].mxu0
      %369 = vdwg.mxu0
      %v372 = vunpack.c.l.b16 %v251
      %v373 = vunpack.c.l.b16 %v252
      %v374 = vpack.c.b16 %v373, %v372
      %v379 = vunpack.c.l.b16 %v253
      %v380 = vunpack.c.l.b16 %v254
      %v381 = vunpack.c.l.b16 %v255
      %v382 = vunpack.c.l.b16 %v256
      %v383 = vpack.c.b16 %v380, %v379
      %v384 = vpack.c.b16 %v382, %v381
      %vm387 = vcmask 261120
      %v389 = vsel %vm387, %v374, 0
      %391 = vmatprep.subr.bf16.mxu0 0
      %392 = vmatpush1.bf16.msra.mxu0 %v383
      %393 = vmatprep.subr.bf16.mxu0 0
      %394 = vmatpush1.bf16.msra.mxu0 %v384
      %395 = vmatprep.subr.bf16.mxu0 0
      %396 = vmatpush1.bf16.msra.mxu0 0
      %397 = vmatprep.subr.bf16.mxu0 0
      %398 = vmatpush1.bf16.msra.mxu0 0
      %399 = vmatprep.subr.bf16.mxu0 0
      %400 = vmatpush1.bf16.msra.mxu0 0
      %401 = vmatprep.subr.bf16.mxu0 0
      %402 = vmatpush1.bf16.msra.mxu0 0
      %403 = vmatprep.subr.bf16.mxu0 0
      %404 = vmatpush1.bf16.msra.mxu0 0
      %405 = vmatprep.subr.bf16.mxu0 0
      %406 = vmatpush1.bf16.msra.mxu0 0
      %407 = vmatprep.subr.bf16.mxu0 0
      %408 = vmatpush1.bf16.msra.mxu0 0
      %409 = vmatprep.subr.bf16.mxu0 0
      %410 = vmatpush1.bf16.msra.mxu0 0
      %411 = vmatprep.subr.bf16.mxu0 0
      %412 = vmatpush1.bf16.msra.mxu0 0
      %413 = vmatprep.subr.bf16.mxu0 0
      %414 = vmatpush1.bf16.msra.mxu0 0
      %415 = vmatprep.subr.bf16.mxu0 0
      %416 = vmatpush1.bf16.msra.mxu0 0
      %417 = vmatprep.subr.bf16.mxu0 0
      %418 = vmatpush1.bf16.msra.mxu0 0
      %419 = vmatprep.subr.bf16.mxu0 0
      %420 = vmatpush1.bf16.msra.mxu0 0
      %421 = vmatprep.subr.bf16.mxu0 0
      %422 = vmatpush1.bf16.msra.mxu0 0
      %423 = vmatprep.mubr.bf16.mxu0 0
      %424 = vmatmul.mubr.bf16.gmra.mrb[0].mxu0 %v389
      %v425 = vpop.f32.mrb[0].mxu0
      %v426 = vadd.f32 %v364, %v425
      %v427 = vpop.f32.mrb[0].mxu0
      %v428 = vpop.f32.mrb[0].mxu0
      %v429 = vadd.f32 %v367, %v428
      %v430 = vpop.f32.mrb[0].mxu0
      %431 = vdwg.mxu0
      %v432 = vld [vmem:[%s4] sm:$0x1]
      %v434 = vlaneseq
      %v435 = vshrl.u32 %v434, 7
      %v436 = vsub.s32 0, %v435
      %v437 = vrot.slane %v432, %v436
      %v439 = vadd.f32 %v426, %v437
      %v440 = vadd.f32 %v429, %v437
      %v441 = vmul.f32 %v439, 0.5
      %v442 = vmul.f32 %v440, 0.5
      %v443 = vmul.f32 %v439, 0.044715
      %v444 = vmul.f32 %v440, 0.044715
      %v445 = vmul.f32 %v443, %v439
      %v446 = vmul.f32 %v444, %v440
      %v447 = vmul.f32 %v445, %v439
      %v448 = vmul.f32 %v446, %v440
      %v449 = vadd.f32 %v439, %v447
      %v450 = vadd.f32 %v440, %v448
      %v451 = vmul.f32 %v449, 0.7978846
      %v452 = vmul.f32 %v450, 0.7978846
      %v453 = vtanh.pop %v451
      %v454 = vtanh.pop %v452
      %v455 = vadd.f32 %v453, 1.0
      %v456 = vadd.f32 %v454, 1.0
      %v457 = vmul.f32 %v441, %v455
      %v458 = vmul.f32 %v442, %v456
      %459 = vst [vmem:[%s248] sm:$0xff] %v457
      %460 = vst [vmem:[%s248 + $0x8] sm:$0xff] %v458
      %s461 = smul.u32 2, %s16
      %p462 = scmp.lt.s32.totalorder %s461, 3
      %s463 = scalar_select %p462, %s461, 3
      %s464 = smul.addr %s463, 8
      %s465 = scalar_lea.vmem %s5, %s464
      // Predicated region
      $region41: #{qagnn_forward.14} parent=39 // pred_check
        %p466 = pneg %p149
      $region42: #{qagnn_forward.14} parent=39 // pred_check_branch
        %468 = sbr.rel (%p466) target = $region44
      $region43: #{qagnn_forward.14} parent=39 // pred_region
        %s469 = smul.u32 2, %s16
      $region44: #{qagnn_forward.14} parent=39 // pred_fallthru
        _
    $region40: #{qagnn_forward.14} parent=5 // pred_fallthru
      _
    %p470 = scmp.le.s32.totalorder 2, %s11
    // Predicated region
    $region45: #{qagnn_forward.14} parent=5 // pred_check
      %p471 = pneg %p470
    $region46: #{qagnn_forward.14} parent=5 // pred_check_branch
      %473 = sbr.rel (%p471) target = $region48
    $region47: #{qagnn_forward.14} parent=5 // pred_region
      %s474 = ssub.s32 %s11, 2
      // Predicated region
      $region49: #{qagnn_forward.14} parent=47 // pred_check
        %p475 = pneg %p155
      $region50: #{qagnn_forward.14} parent=47 // pred_check_branch
        %477 = sbr.rel (%p475) target = $region52
      $region51: #{qagnn_forward.14} parent=47 // pred_region
        %s478 = smul.u32 2, %s17
        %p479 = scmp.lt.s32.totalorder %s478, 3
        %s480 = scalar_select %p479, %s478, 3
        %s481 = smul.addr %s480, 8
        %s482 = scalar_lea.vmem %s5, %s481
      $region52: #{qagnn_forward.14} parent=47 // pred_fallthru
        _
    $region48: #{qagnn_forward.14} parent=5 // pred_fallthru
      _
  $region6: #{qagnn_forward.14} parent=0 // loop_footer
    %s15 = sadd.s32 1, %s11
  $region7: #{qagnn_forward.14} parent=0 // loop_footer_branch
    %10 = sbr.rel target = $region3
  $region8: #{qagnn_forward.14} parent=0 // loop_exit
    _

// kernel: qagnn_forward.11
$region0: #{qagnn_forward.11}
  #allocation0 [shape = 'u32[]', space=smem, size = 0x4, offset = 0x4, fixed_abs, tag = 'smem constant byte address 0x4 - core index']
  #allocation1 [shape = 'u32[144,128]{1,0:T(1,128)}', space=vmem, size = 0x12000, scoped, tag = 'internal scratch']
  %s0 = inlined_call_operand.vmem [shape: bf16[32,32], index: 0, kind: input, shape index: {}]
  %s1 = inlined_call_operand.vmem [shape: bf16[32,32], index: 1, kind: input, shape index: {}]
  %s2 = inlined_call_operand.vmem [shape: f32[1,32], index: 2, kind: input, shape index: {}]
  %s3 = inlined_call_operand.vmem [shape: bf16[32,128], index: 3, kind: input, shape index: {}]
  %s4 = inlined_call_operand.vmem [shape: f32[1,128], index: 4, kind: input, shape index: {}]
  %s5 = inlined_call_operand.vmem [shape: bf16[32,128], index: 5, kind: output, shape index: {}]
  %s6 = sld [smem:[#allocation0]]
  $region53: #{qagnn_forward.11} parent=0
    _
  %s8 = ssub.s32 1, %s6
  %s9 = scalar_select 0, %s8, %s6
  loop: start=0, step=1, limit=4
  $region2: #{qagnn_forward.11} parent=0 // loop_pre_header
    _
  $region3: #{qagnn_forward.11} parent=0 // loop_header
    %s11 = sphi 0, %s15
    %p12 = scmp.ge.s32.totalorder %s11, 4
    %s21 = sphi 0, %s23
    %s24 = sphi 0, %s21
    %s25 = sphi 0, %s24
    %s41 = sphi 0, %s25
    %s45 = sphi 0, %s45
    %s47 = sphi 0, %s45
    %s48 = sphi 0, %s47
    %s62 = sphi 0, %s48
    %s66 = sphi 0, %s66
    %s68 = sphi 0, %s66
    %s69 = sphi 0, %s68
    %s83 = sphi 0, %s69
    %s87 = sphi 0, %s87
    %s89 = sphi 0, %s87
    %s90 = sphi 0, %s89
    %s104 = sphi 0, %s90
    %s108 = sphi 0, %s108
    %s110 = sphi 0, %s108
    %s111 = sphi 0, %s110
    %s125 = sphi 0, %s111
    %s131 = sphi 0, %s133
    %s134 = sphi 0, %s131
    %s135 = sphi 0, %s134
    %s151 = sphi 0, %s135
  $region4: #{qagnn_forward.11} parent=0 // loop_header_branch
    %14 = sbr.rel (%p12) target = $region8
  $region5: #{qagnn_forward.11} parent=0 // loop_body
    %s16 = ssub.s32 %s11, 1
    %s17 = ssub.s32 %s11, 2
    %s18 = sadd.s32 %s11, 1
    %s19 = ssub.s32 %s11, %s18
    %p20 = scmp.eq.s32.totalorder %s19, 0
    %s22 = sadd.s32 %s21, 1
    %s23 = scalar_select %p20, %s21, %s22
    %p26 = pneg %p20
    %p27 = scmp.eq.s32.totalorder %s11, 1
    %p28 = por %p26, %p27
    %p29 = scmp.ne.s32.totalorder %s21, %s24
    %p30 = scmp.eq.s32.totalorder %s11, 0
    %p31 = por %p29, %p30
    %p32 = scmp.ne.s32.totalorder %s21, %s24
    %p33 = scmp.eq.s32.totalorder %s16, 1
    %p34 = por %p32, %p33
    %p35 = scmp.ne.s32.totalorder %s24, %s25
    %p36 = scmp.eq.s32.totalorder %s16, 0
    %p37 = por %p35, %p36
    %p38 = scmp.ne.s32.totalorder %s24, %s25
    %p39 = scmp.eq.s32.totalorder %s17, 1
    %p40 = por %p38, %p39
    %p42 = scmp.ne.s32.totalorder %s25, %s41
    %p43 = scmp.eq.s32.totalorder %s17, 0
    %p44 = por %p42, %p43
    %s46 = sadd.s32 %s45, 1
    %p49 = scmp.eq.s32.totalorder %s11, 1
    %p50 = scmp.ne.s32.totalorder %s45, %s47
    %p51 = scmp.eq.s32.totalorder %s11, 0
    %p52 = por %p50, %p51
    %p53 = scmp.ne.s32.totalorder %s45, %s47
    %p54 = scmp.eq.s32.totalorder %s16, 1
    %p55 = por %p53, %p54
    %p56 = scmp.ne.s32.totalorder %s47, %s48
    %p57 = scmp.eq.s32.totalorder %s16, 0
    %p58 = por %p56, %p57
    %p59 = scmp.ne.s32.totalorder %s47, %s48
    %p60 = scmp.eq.s32.totalorder %s17, 1
    %p61 = por %p59, %p60
    %p63 = scmp.ne.s32.totalorder %s48, %s62
    %p64 = scmp.eq.s32.totalorder %s17, 0
    %p65 = por %p63, %p64
    %s67 = sadd.s32 %s66, 1
    %p70 = scmp.eq.s32.totalorder %s11, 1
    %p71 = scmp.ne.s32.totalorder %s66, %s68
    %p72 = scmp.eq.s32.totalorder %s11, 0
    %p73 = por %p71, %p72
    %p74 = scmp.ne.s32.totalorder %s66, %s68
    %p75 = scmp.eq.s32.totalorder %s16, 1
    %p76 = por %p74, %p75
    %p77 = scmp.ne.s32.totalorder %s68, %s69
    %p78 = scmp.eq.s32.totalorder %s16, 0
    %p79 = por %p77, %p78
    %p80 = scmp.ne.s32.totalorder %s68, %s69
    %p81 = scmp.eq.s32.totalorder %s17, 1
    %p82 = por %p80, %p81
    %p84 = scmp.ne.s32.totalorder %s69, %s83
    %p85 = scmp.eq.s32.totalorder %s17, 0
    %p86 = por %p84, %p85
    %s88 = sadd.s32 %s87, 1
    %p91 = scmp.eq.s32.totalorder %s11, 1
    %p92 = scmp.ne.s32.totalorder %s87, %s89
    %p93 = scmp.eq.s32.totalorder %s11, 0
    %p94 = por %p92, %p93
    %p95 = scmp.ne.s32.totalorder %s87, %s89
    %p96 = scmp.eq.s32.totalorder %s16, 1
    %p97 = por %p95, %p96
    %p98 = scmp.ne.s32.totalorder %s89, %s90
    %p99 = scmp.eq.s32.totalorder %s16, 0
    %p100 = por %p98, %p99
    %p101 = scmp.ne.s32.totalorder %s89, %s90
    %p102 = scmp.eq.s32.totalorder %s17, 1
    %p103 = por %p101, %p102
    %p105 = scmp.ne.s32.totalorder %s90, %s104
    %p106 = scmp.eq.s32.totalorder %s17, 0
    %p107 = por %p105, %p106
    %s109 = sadd.s32 %s108, 1
    %p112 = scmp.eq.s32.totalorder %s11, 1
    %p113 = scmp.ne.s32.totalorder %s108, %s110
    %p114 = scmp.eq.s32.totalorder %s11, 0
    %p115 = por %p113, %p114
    %p116 = scmp.ne.s32.totalorder %s108, %s110
    %p117 = scmp.eq.s32.totalorder %s16, 1
    %p118 = por %p116, %p117
    %p119 = scmp.ne.s32.totalorder %s110, %s111
    %p120 = scmp.eq.s32.totalorder %s16, 0
    %p121 = por %p119, %p120
    %p122 = scmp.ne.s32.totalorder %s110, %s111
    %p123 = scmp.eq.s32.totalorder %s17, 1
    %p124 = por %p122, %p123
    %p126 = scmp.ne.s32.totalorder %s111, %s125
    %p127 = scmp.eq.s32.totalorder %s17, 0
    %p128 = por %p126, %p127
    %s129 = ssub.s32 %s11, %s18
    %p130 = scmp.eq.s32.totalorder %s129, 0
    %s132 = sadd.s32 %s131, 1
    %s133 = scalar_select %p130, %s131, %s132
    %p136 = pneg %p130
    %p137 = scmp.eq.s32.totalorder %s11, 1
    %p138 = por %p136, %p137
    %p139 = scmp.ne.s32.totalorder %s131, %s134
    %p140 = scmp.eq.s32.totalorder %s11, 0
    %p141 = por %p139, %p140
    %p142 = scmp.ne.s32.totalorder %s131, %s134
    %p143 = scmp.eq.s32.totalorder %s16, 1
    %p144 = por %p142, %p143
    %p145 = scmp.ne.s32.totalorder %s134, %s135
    %p146 = scmp.eq.s32.totalorder %s16, 0
    %p147 = por %p145, %p146
    %p148 = scmp.ne.s32.totalorder %s134, %s135
    %p149 = scmp.eq.s32.totalorder %s17, 1
    %p150 = por %p148, %p149
    %p152 = scmp.ne.s32.totalorder %s135, %s151
    %p153 = scmp.eq.s32.totalorder %s17, 0
    %p154 = por %p152, %p153
    %p155 = scmp.le.s32.totalorder 1, %s11
    %p156 = scmp.lt.s32.totalorder %s11, 3
    %p157 = pnand %p155, %p156
    %p158 = pneg %p157
    // Predicated region
    $region9: #{qagnn_forward.11} parent=5 // pred_check
      _
    $region10: #{qagnn_forward.11} parent=5 // pred_check_branch
      %160 = sbr.rel (%p157) target = $region12
    $region11: #{qagnn_forward.11} parent=5 // pred_region
      %s161 = ssub.s32 %s11, 1
      // Predicated region
      $region13: #{qagnn_forward.11} parent=11 // pred_check
        %p162 = pneg %p58
      $region14: #{qagnn_forward.11} parent=11 // pred_check_branch
        %164 = sbr.rel (%p162) target = $region16
      $region15: #{qagnn_forward.11} parent=11 // pred_region
        _
      $region16: #{qagnn_forward.11} parent=11 // pred_fallthru
        _
      // Predicated region
      $region17: #{qagnn_forward.11} parent=11 // pred_check
        %p165 = pneg %p79
      $region18: #{qagnn_forward.11} parent=11 // pred_check_branch
        %167 = sbr.rel (%p165) target = $region20
      $region19: #{qagnn_forward.11} parent=11 // pred_region
        _
      $region20: #{qagnn_forward.11} parent=11 // pred_fallthru
        _
      // Predicated region
      $region21: #{qagnn_forward.11} parent=11 // pred_check
        %p168 = pneg %p100
      $region22: #{qagnn_forward.11} parent=11 // pred_check_branch
        %170 = sbr.rel (%p168) target = $region24
      $region23: #{qagnn_forward.11} parent=11 // pred_region
        _
      $region24: #{qagnn_forward.11} parent=11 // pred_fallthru
        _
      // Predicated region
      $region25: #{qagnn_forward.11} parent=11 // pred_check
        %p171 = pneg %p121
      $region26: #{qagnn_forward.11} parent=11 // pred_check_branch
        %173 = sbr.rel (%p171) target = $region28
      $region27: #{qagnn_forward.11} parent=11 // pred_region
        _
      $region28: #{qagnn_forward.11} parent=11 // pred_fallthru
        _
    $region12: #{qagnn_forward.11} parent=5 // pred_fallthru
      _
    %p174 = scmp.lt.s32.totalorder %s11, 2
    // Predicated region
    $region29: #{qagnn_forward.11} parent=5 // pred_check
      %p175 = pneg %p174
    $region30: #{qagnn_forward.11} parent=5 // pred_check_branch
      %177 = sbr.rel (%p175) target = $region32
    $region31: #{qagnn_forward.11} parent=5 // pred_region
      // Predicated region
      $region33: #{qagnn_forward.11} parent=31 // pred_check
        %p178 = pneg %p31
      $region34: #{qagnn_forward.11} parent=31 // pred_check_branch
        %180 = sbr.rel (%p178) target = $region36
      $region35: #{qagnn_forward.11} parent=31 // pred_region
        %s181 = smul.u32 2, %s11
        %p182 = scmp.lt.s32.totalorder %s181, 3
        %s183 = scalar_select %p182, %s181, 3
        %s184 = smul.addr %s183, 4
        %s185 = scalar_lea.vmem %s0, %s184
        %s186 = smul.u32 2, %s11
      $region36: #{qagnn_forward.11} parent=31 // pred_fallthru
        _
    $region32: #{qagnn_forward.11} parent=5 // pred_fallthru
      _
    %p187 = scmp.le.s32.totalorder 1, %s11
    %p188 = scmp.lt.s32.totalorder %s11, 3
    %p189 = pnand %p187, %p188
    %p190 = pneg %p189
    // Predicated region
    $region37: #{qagnn_forward.11} parent=5 // pred_check
      _
    $region38: #{qagnn_forward.11} parent=5 // pred_check_branch
      %192 = sbr.rel (%p189) target = $region40
    $region39: #{qagnn_forward.11} parent=5 // pred_region
      %s193 = ssub.s32 %s11, 1
      %s194 = smul.u32 2, %s16
      %p195 = scmp.lt.s32.totalorder %s194, 3
      %s196 = scalar_select %p195, %s194, 3
      %s197 = smul.addr %s196, 4
      %s198 = scalar_lea.vmem %s0, %s197
      %p199 = pneg %p37
      %p200 = pneg %p34
      %p201 = pneg %p58
      %p202 = pneg %p55
      %p203 = pneg %p79
      %p204 = pneg %p76
      %p205 = pneg %p100
      %p206 = pneg %p97
      %p207 = pneg %p121
      %p208 = pneg %p118
      %p209 = pneg %p147
      %p210 = pneg %p144
      %s211 = smul.u32 2, %s16
      %p212 = scmp.lt.s32.totalorder %s211, 3
      %s213 = scalar_select %p212, %s211, 3
      %s214 = smul.addr %s213, 4
      %s215 = scalar_lea.vmem %s5, %s214
      %s216 = smul.u32 2, %s16
      %p217 = scmp.lt.s32.totalorder %s216, 3
      %s218 = scalar_select %p217, %s216, 3
      %s219 = smul.addr %s218, 4
      %s220 = scalar_lea.vmem %s0, %s219
      %s221 = smul.u32 2, %s16
      %s222 = smul.u32 2, %s16
      %p223 = scmp.lt.s32.totalorder %s222, 3
      %s224 = scalar_select %p223, %s222, 3
      %s225 = smul.addr %s224, 4
      %s226 = scalar_lea.vmem %s5, %s225
      %s227 = smul.u32 2, %s16
      %v229 = vld [vmem:[%s220] sm:$0xf]
      %v230 = vld [vmem:[%s220 + $0x4] sm:$0xf]
      %v231 = vld [vmem:[%s1] sm:$0xf]
      %v232 = vld [vmem:[%s1 + $0x4] sm:$0xf]
      %v233 = vld [vmem:[%s1 + $0x8] sm:$0xf]
      %v234 = vld [vmem:[%s1 + $0xc] sm:$0xf]
      %v235 = vld [vmem:[%s2] sm:$0x1]
      %v237 = vlaneseq
      %v238 = vshrl.u32 %v237, 7
      %v239 = vsub.s32 0, %v238
      %v240 = vrot.slane %v235, %v239
      %v244 = vunpack.c.l.b16 %v229
      %v245 = vunpack.c.l.b16 %v230
      %v246 = vpack.c.b16 %v245, %v244
      %v251 = vunpack.c.l.b16 %v231
      %v252 = vunpack.c.l.b16 %v232
      %v253 = vunpack.c.l.b16 %v233
      %v254 = vunpack.c.l.b16 %v234
      %v255 = vpack.c.b16 %v252, %v251
      %v256 = vpack.c.b16 %v254, %v253
      %vm259 = vcmask 261120
      %v261 = vsel %vm259, %v246, 0
      %263 = vmatprep.subr.bf16.mxu0 0
      %264 = vmatpush1.bf16.msra.mxu0 %v255
      %265 = vmatprep.subr.bf16.mxu0 0
      %266 = vmatpush1.bf16.msra.mxu0 %v256
      %267 = vmatprep.subr.bf16.mxu0 0
      %268 = vmatpush1.bf16.msra.mxu0 0
      %269 = vmatprep.subr.bf16.mxu0 0
      %270 = vmatpush1.bf16.msra.mxu0 0
      %271 = vmatprep.subr.bf16.mxu0 0
      %272 = vmatpush1.bf16.msra.mxu0 0
      %273 = vmatprep.subr.bf16.mxu0 0
      %274 = vmatpush1.bf16.msra.mxu0 0
      %275 = vmatprep.subr.bf16.mxu0 0
      %276 = vmatpush1.bf16.msra.mxu0 0
      %277 = vmatprep.subr.bf16.mxu0 0
      %278 = vmatpush1.bf16.msra.mxu0 0
      %279 = vmatprep.subr.bf16.mxu0 0
      %280 = vmatpush1.bf16.msra.mxu0 0
      %281 = vmatprep.subr.bf16.mxu0 0
      %282 = vmatpush1.bf16.msra.mxu0 0
      %283 = vmatprep.subr.bf16.mxu0 0
      %284 = vmatpush1.bf16.msra.mxu0 0
      %285 = vmatprep.subr.bf16.mxu0 0
      %286 = vmatpush1.bf16.msra.mxu0 0
      %287 = vmatprep.subr.bf16.mxu0 0
      %288 = vmatpush1.bf16.msra.mxu0 0
      %289 = vmatprep.subr.bf16.mxu0 0
      %290 = vmatpush1.bf16.msra.mxu0 0
      %291 = vmatprep.subr.bf16.mxu0 0
      %292 = vmatpush1.bf16.msra.mxu0 0
      %293 = vmatprep.subr.bf16.mxu0 0
      %294 = vmatpush1.bf16.msra.mxu0 0
      %295 = vmatprep.mubr.bf16.mxu0 0
      %296 = vmatmul.mubr.bf16.gmra.mrb[0].mxu0 %v261
      %v297 = vpop.f32.mrb[0].mxu0
      %v298 = vadd.f32 %v240, %v297
      %v299 = vpop.f32.mrb[0].mxu0
      %v300 = vpop.f32.mrb[0].mxu0
      %v301 = vadd.f32 %v240, %v300
      %v302 = vpop.f32.mrb[0].mxu0
      %303 = vdwg.mxu0
      %v304 = vmax.f32 %v298, 0.0
      %v305 = vmax.f32 %v301, 0.0
      %v306 = vpack.c.bf16 %v305, %v304
      %v307 = vld [vmem:[%s3] sm:$0xf]
      %v308 = vld [vmem:[%s3 + $0x4] sm:$0xf]
      %v309 = vld [vmem:[%s3 + $0x8] sm:$0xf]
      %v310 = vld [vmem:[%s3 + $0xc] sm:$0xf]
      %v311 = vld [vmem:[%s4] sm:$0x1]
      %v313 = vlaneseq
      %v314 = vshrl.u32 %v313, 7
      %v315 = vsub.s32 0, %v314
      %v316 = vrot.slane %v311, %v315
      %v322 = vunpack.c.l.b16 %v307
      %v323 = vunpack.c.l.b16 %v308
      %v324 = vunpack.c.l.b16 %v309
      %v325 = vunpack.c.l.b16 %v310
      %v326 = vpack.c.b16 %v323, %v322
      %v327 = vpack.c.b16 %v325, %v324
      %v331 = vsel %vm259, %v306, 0
      %333 = vmatprep.subr.bf16.mxu0 0
      %334 = vmatpush1.bf16.msra.mxu0 %v326
      %335 = vmatprep.subr.bf16.mxu0 0
      %336 = vmatpush1.bf16.msra.mxu0 %v327
      %337 = vmatprep.subr.bf16.mxu0 0
      %338 = vmatpush1.bf16.msra.mxu0 0
      %339 = vmatprep.subr.bf16.mxu0 0
      %340 = vmatpush1.bf16.msra.mxu0 0
      %341 = vmatprep.subr.bf16.mxu0 0
      %342 = vmatpush1.bf16.msra.mxu0 0
      %343 = vmatprep.subr.bf16.mxu0 0
      %344 = vmatpush1.bf16.msra.mxu0 0
      %345 = vmatprep.subr.bf16.mxu0 0
      %346 = vmatpush1.bf16.msra.mxu0 0
      %347 = vmatprep.subr.bf16.mxu0 0
      %348 = vmatpush1.bf16.msra.mxu0 0
      %349 = vmatprep.subr.bf16.mxu0 0
      %350 = vmatpush1.bf16.msra.mxu0 0
      %351 = vmatprep.subr.bf16.mxu0 0
      %352 = vmatpush1.bf16.msra.mxu0 0
      %353 = vmatprep.subr.bf16.mxu0 0
      %354 = vmatpush1.bf16.msra.mxu0 0
      %355 = vmatprep.subr.bf16.mxu0 0
      %356 = vmatpush1.bf16.msra.mxu0 0
      %357 = vmatprep.subr.bf16.mxu0 0
      %358 = vmatpush1.bf16.msra.mxu0 0
      %359 = vmatprep.subr.bf16.mxu0 0
      %360 = vmatpush1.bf16.msra.mxu0 0
      %361 = vmatprep.subr.bf16.mxu0 0
      %362 = vmatpush1.bf16.msra.mxu0 0
      %363 = vmatprep.subr.bf16.mxu0 0
      %364 = vmatpush1.bf16.msra.mxu0 0
      %365 = vmatprep.mubr.bf16.mxu0 0
      %366 = vmatmul.mubr.bf16.gmra.mrb[0].mxu0 %v331
      %v367 = vpop.f32.mrb[0].mxu0
      %v368 = vadd.f32 %v316, %v367
      %v369 = vpop.f32.mrb[0].mxu0
      %v370 = vpop.f32.mrb[0].mxu0
      %v371 = vadd.f32 %v316, %v370
      %v372 = vpop.f32.mrb[0].mxu0
      %373 = vdwg.mxu0
      %v374 = vmul.f32 %v368, 0.5
      %v375 = vmul.f32 %v371, 0.5
      %v376 = vmul.f32 %v368, 0.044715
      %v377 = vmul.f32 %v371, 0.044715
      %v378 = vmul.f32 %v376, %v368
      %v379 = vmul.f32 %v377, %v371
      %v380 = vmul.f32 %v378, %v368
      %v381 = vmul.f32 %v379, %v371
      %v382 = vadd.f32 %v368, %v380
      %v383 = vadd.f32 %v371, %v381
      %v384 = vmul.f32 %v382, 0.7978846
      %v385 = vmul.f32 %v383, 0.7978846
      %v386 = vtanh.pop %v384
      %v387 = vtanh.pop %v385
      %v388 = vadd.f32 %v386, 1.0
      %v389 = vadd.f32 %v387, 1.0
      %v390 = vmul.f32 %v374, %v388
      %v391 = vmul.f32 %v375, %v389
      %v392 = vpack.c.bf16 %v391, %v390
      %v394 = vunpack.c.l.b16 %v392
      %v395 = vunpack.c.h.b16 %v392
      %v396 = vpack.c.b16 %v394, %v394
      %v397 = vpack.c.b16 %v395, %v395
      %400 = vst [vmem:[%s226] sm:$0xf] %v396
      %401 = vst [vmem:[%s226 + $0x4] sm:$0xf] %v397
      %s402 = smul.u32 2, %s16
      %p403 = scmp.lt.s32.totalorder %s402, 3
      %s404 = scalar_select %p403, %s402, 3
      %s405 = smul.addr %s404, 4
      %s406 = scalar_lea.vmem %s5, %s405
      // Predicated region
      $region41: #{qagnn_forward.11} parent=39 // pred_check
        %p407 = pneg %p144
      $region42: #{qagnn_forward.11} parent=39 // pred_check_branch
        %409 = sbr.rel (%p407) target = $region44
      $region43: #{qagnn_forward.11} parent=39 // pred_region
        %s410 = smul.u32 2, %s16
      $region44: #{qagnn_forward.11} parent=39 // pred_fallthru
        _
    $region40: #{qagnn_forward.11} parent=5 // pred_fallthru
      _
    %p411 = scmp.le.s32.totalorder 2, %s11
    // Predicated region
    $region45: #{qagnn_forward.11} parent=5 // pred_check
      %p412 = pneg %p411
    $region46: #{qagnn_forward.11} parent=5 // pred_check_branch
      %414 = sbr.rel (%p412) target = $region48
    $region47: #{qagnn_forward.11} parent=5 // pred_region
      %s415 = ssub.s32 %s11, 2
      // Predicated region
      $region49: #{qagnn_forward.11} parent=47 // pred_check
        %p416 = pneg %p150
      $region50: #{qagnn_forward.11} parent=47 // pred_check_branch
        %418 = sbr.rel (%p416) target = $region52
      $region51: #{qagnn_forward.11} parent=47 // pred_region
        %s419 = smul.u32 2, %s17
        %p420 = scmp.lt.s32.totalorder %s419, 3
        %s421 = scalar_select %p420, %s419, 3
        %s422 = smul.addr %s421, 4
        %s423 = scalar_lea.vmem %s5, %s422
      $region52: #{qagnn_forward.11} parent=47 // pred_fallthru
        _
    $region48: #{qagnn_forward.11} parent=5 // pred_fallthru
      _
  $region6: #{qagnn_forward.11} parent=0 // loop_footer
    %s15 = sadd.s32 1, %s11
  $region7: #{qagnn_forward.11} parent=0 // loop_footer_branch
    %10 = sbr.rel target = $region3
  $region8: #{qagnn_forward.11} parent=0 // loop_exit
    _

// kernel: qagnn_forward.15
$region0: #{qagnn_forward.15}
  #allocation0 [shape = 'u32[]', space=smem, size = 0x4, offset = 0x4, fixed_abs, tag = 'smem constant byte address 0x4 - core index']
  #allocation1 [shape = 'u32[144,128]{1,0:T(1,128)}', space=vmem, size = 0x12000, scoped, tag = 'internal scratch']
  %s0 = inlined_call_operand.vmem [shape: bf16[16,128], index: 0, kind: input, shape index: {}]
  %s1 = inlined_call_operand.vmem [shape: bf16[128,128], index: 1, kind: input, shape index: {}]
  %s2 = inlined_call_operand.vmem [shape: f32[1,128], index: 2, kind: input, shape index: {}]
  %s3 = inlined_call_operand.vmem [shape: f32[16,128], index: 3, kind: output, shape index: {}]
  %s4 = sld [smem:[#allocation0]]
  $region22: #{qagnn_forward.15} parent=0
    _
  %s6 = ssub.s32 1, %s4
  %s7 = scalar_select 0, %s6, %s4
  // Predicated region
  $region2: #{qagnn_forward.15} parent=0 // pred_check
    _
  $region3: #{qagnn_forward.15} parent=0 // pred_check_branch
    %9 = sbr.rel (0) target = $region5
  $region4: #{qagnn_forward.15} parent=0 // pred_region
    _
  $region5: #{qagnn_forward.15} parent=0 // pred_fallthru
    _
  // Predicated region
  $region6: #{qagnn_forward.15} parent=0 // pred_check
    _
  $region7: #{qagnn_forward.15} parent=0 // pred_check_branch
    %11 = sbr.rel (0) target = $region9
  $region8: #{qagnn_forward.15} parent=0 // pred_region
    _
  $region9: #{qagnn_forward.15} parent=0 // pred_fallthru
    _
  // Predicated region
  $region10: #{qagnn_forward.15} parent=0 // pred_check
    _
  $region11: #{qagnn_forward.15} parent=0 // pred_check_branch
    %13 = sbr.rel (0) target = $region13
  $region12: #{qagnn_forward.15} parent=0 // pred_region
    _
  $region13: #{qagnn_forward.15} parent=0 // pred_fallthru
    _
  %v15 = vld [vmem:[%s0] sm:$0xf]
  %v16 = vld [vmem:[%s0 + $0x4] sm:$0xf]
  %v17 = vld [vmem:[%s1] sm:$0xf]
  %v18 = vld [vmem:[%s1 + $0x4] sm:$0xf]
  %v19 = vld [vmem:[%s1 + $0x8] sm:$0xf]
  %v20 = vld [vmem:[%s1 + $0xc] sm:$0xf]
  %v21 = vld [vmem:[%s1 + $0x10] sm:$0xf]
  %v22 = vld [vmem:[%s1 + $0x14] sm:$0xf]
  %v23 = vld [vmem:[%s1 + $0x18] sm:$0xf]
  %v24 = vld [vmem:[%s1 + $0x1c] sm:$0xf]
  %v25 = vld [vmem:[%s1 + $0x20] sm:$0xf]
  %v26 = vld [vmem:[%s1 + $0x24] sm:$0xf]
  %v27 = vld [vmem:[%s1 + $0x28] sm:$0xf]
  %v28 = vld [vmem:[%s1 + $0x2c] sm:$0xf]
  %v29 = vld [vmem:[%s1 + $0x30] sm:$0xf]
  %v30 = vld [vmem:[%s1 + $0x34] sm:$0xf]
  %v31 = vld [vmem:[%s1 + $0x38] sm:$0xf]
  %v32 = vld [vmem:[%s1 + $0x3c] sm:$0xf]
  %v33 = vld [vmem:[%s2] sm:$0x1]
  %v35 = vlaneseq
  %v36 = vshrl.u32 %v35, 7
  %v37 = vsub.s32 0, %v36
  %v38 = vrot.slane %v33, %v37
  %v42 = vunpack.c.l.b16 %v15
  %v43 = vunpack.c.l.b16 %v16
  %v44 = vpack.c.b16 %v43, %v42
  %v62 = vunpack.c.l.b16 %v17
  %v63 = vunpack.c.l.b16 %v18
  %v64 = vunpack.c.l.b16 %v19
  %v65 = vunpack.c.l.b16 %v20
  %v66 = vunpack.c.l.b16 %v21
  %v67 = vunpack.c.l.b16 %v22
  %v68 = vunpack.c.l.b16 %v23
  %v69 = vunpack.c.l.b16 %v24
  %v70 = vunpack.c.l.b16 %v25
  %v71 = vunpack.c.l.b16 %v26
  %v72 = vunpack.c.l.b16 %v27
  %v73 = vunpack.c.l.b16 %v28
  %v74 = vunpack.c.l.b16 %v29
  %v75 = vunpack.c.l.b16 %v30
  %v76 = vunpack.c.l.b16 %v31
  %v77 = vunpack.c.l.b16 %v32
  %v78 = vpack.c.b16 %v63, %v62
  %v79 = vpack.c.b16 %v65, %v64
  %v80 = vpack.c.b16 %v67, %v66
  %v81 = vpack.c.b16 %v69, %v68
  %v82 = vpack.c.b16 %v71, %v70
  %v83 = vpack.c.b16 %v73, %v72
  %v84 = vpack.c.b16 %v75, %v74
  %v85 = vpack.c.b16 %v77, %v76
  %94 = vmatprep.subr.bf16.mxu0 0
  %95 = vmatpush1.bf16.msra.mxu0 %v78
  %96 = vmatprep.subr.bf16.mxu0 0
  %97 = vmatpush1.bf16.msra.mxu0 %v79
  %98 = vmatprep.subr.bf16.mxu0 0
  %99 = vmatpush1.bf16.msra.mxu0 %v80
  %100 = vmatprep.subr.bf16.mxu0 0
  %101 = vmatpush1.bf16.msra.mxu0 %v81
  %102 = vmatprep.subr.bf16.mxu0 0
  %103 = vmatpush1.bf16.msra.mxu0 %v82
  %104 = vmatprep.subr.bf16.mxu0 0
  %105 = vmatpush1.bf16.msra.mxu0 %v83
  %106 = vmatprep.subr.bf16.mxu0 0
  %107 = vmatpush1.bf16.msra.mxu0 %v84
  %108 = vmatprep.subr.bf16.mxu0 0
  %109 = vmatpush1.bf16.msra.mxu0 %v85
  %110 = vmatprep.subr.bf16.mxu0 0
  %111 = vmatpush1.bf16.msra.mxu0 0
  %112 = vmatprep.subr.bf16.mxu0 0
  %113 = vmatpush1.bf16.msra.mxu0 0
  %114 = vmatprep.subr.bf16.mxu0 0
  %115 = vmatpush1.bf16.msra.mxu0 0
  %116 = vmatprep.subr.bf16.mxu0 0
  %117 = vmatpush1.bf16.msra.mxu0 0
  %118 = vmatprep.subr.bf16.mxu0 0
  %119 = vmatpush1.bf16.msra.mxu0 0
  %120 = vmatprep.subr.bf16.mxu0 0
  %121 = vmatpush1.bf16.msra.mxu0 0
  %122 = vmatprep.subr.bf16.mxu0 0
  %123 = vmatpush1.bf16.msra.mxu0 0
  %124 = vmatprep.subr.bf16.mxu0 0
  %125 = vmatpush1.bf16.msra.mxu0 0
  %126 = vmatprep.mubr.bf16.mxu0 0
  %127 = vmatmul.mubr.bf16.gmra.mrb[0].mxu0 %v44
  %v128 = vpop.f32.mrb[0].mxu0
  %v129 = vadd.f32 %v38, %v128
  %v130 = vpop.f32.mrb[0].mxu0
  %v131 = vpop.f32.mrb[0].mxu0
  %v132 = vadd.f32 %v38, %v131
  %v133 = vpop.f32.mrb[0].mxu0
  %134 = vdwg.mxu0
  %135 = vst [vmem:[%s3] sm:$0xff] %v129
  %136 = vst [vmem:[%s3 + $0x8] sm:$0xff] %v132
  // Predicated region
  $region14: #{qagnn_forward.15} parent=0 // pred_check
    _
  $region15: #{qagnn_forward.15} parent=0 // pred_check_branch
    %138 = sbr.rel (0) target = $region17
  $region16: #{qagnn_forward.15} parent=0 // pred_region
    _
  $region17: #{qagnn_forward.15} parent=0 // pred_fallthru
    _
  // Predicated region
  $region18: #{qagnn_forward.15} parent=0 // pred_check
    _
  $region19: #{qagnn_forward.15} parent=0 // pred_check_branch
    %140 = sbr.rel (0) target = $region21
  $region20: #{qagnn_forward.15} parent=0 // pred_region
    _
  $region21: #{qagnn_forward.15} parent=0 // pred_fallthru
    _

</llo_original>
